<compile_context>
chip_gen: v7x
topology: tpu7x:2x2x1
jax: 0.10.0
libtpu: 0.0.40
codegen_flags: <defaults>
</compile_context>

<pallas_src>
import functools

import jax
import jax.numpy as jnp
from jax import lax
from jax.experimental import pallas as pl
from jax.experimental.pallas import tpu as pltpu

# ----------------------------- config (cfg.*) --------------------------------
CLASSES = ("__background__", "car", "person", "dog")
N_CLASSES = len(CLASSES)
FEAT_STRIDE = 16
POOLING_SIZE = 4          # cfg.POOLING_SIZE (small synthetic value)
POOLING_MODE = "align"    # cfg.POOLING_MODE
FEATURE_OUT_DIM = 32      # backbone output channels
N_ANCHORS = 3             # anchors per location
N_ROIS = 8                # post-"NMS" proposals per image
HEAD_HIDDEN = 64          # head_to_tail hidden width
SAMPLING_RATIO = 2        # ROIAlign sampling ratio (fixed)
LANE_PAD = 128            # lane-dense output width for narrow heads


# ============================ Pallas kernels ==================================

def _base_rpn_kernel(x_ref, wb_ref, bb_ref, wc_ref, bc_ref, wh_ref, bh_ref,
                     feat_ref, rpn_ref, pad_ref, *, hf, wf):
    """Per-image: backbone patchify conv + ReLU, 3x3 RPN conv (one K=9C matmul
    on ref-read shifted windows of a zero-padded VMEM buffer), ReLU, fused
    cls+bbox head with lane-dense 128-wide output."""
    wp = wf + 2
    nv = hf * wp

    # ---- RCNN_base: stride-16 patchify conv + ReLU (bf16 operands, f32 acc) ---
    feat = jnp.dot(x_ref[0], wb_ref[...], preferred_element_type=jnp.float32)
    feat = jnp.maximum(feat + bb_ref[...], 0.0).astype(jnp.bfloat16)   # (L, C)
    feat_ref[0] = feat                      # bf16 base features (used by kernel 2)

    # ---- zero-pad into the flattened (hf+2, wf+2) row layout (+2 slack rows) --
    pad_ref[...] = jnp.zeros_like(pad_ref)
    for y in range(hf):
        pad_ref[pl.ds((y + 1) * wp + 1, wf), :] = feat[y * wf:(y + 1) * wf, :]

    # ---- 3x3 'same' conv as ONE K=9*C matmul over 9 ref-read shifted windows --
    # Invariant: cropped output column c < wf never wraps a padded row because
    # c + dx <= wf + 1 < wp; the +2 slack rows make the largest read in-bounds.
    taps = [pad_ref[pl.ds(dy * wp + dx, nv), :]
            for dy in range(3) for dx in range(3)]        # 9 x (nv, C) bf16
    conv_in = jnp.concatenate(taps, axis=-1)              # (nv, 9*C) bf16
    h = jnp.dot(conv_in, wc_ref[...], preferred_element_type=jnp.float32)
    h = jnp.maximum(h + bc_ref[...], 0.0).astype(jnp.bfloat16)

    # ---- fused RPN cls+bbox 1x1 conv, lane-dense (nv, 128) f32 store ----------
    rpn = jnp.dot(h, wh_ref[...], preferred_element_type=jnp.float32) + bh_ref[...]
    rpn_ref[0] = rpn.astype(rpn_ref.dtype)


def pallas_base_rpn(xcol, wb, bb, wc, bc, wh, bh, hf, wf):
    B, L, Kb = xcol.shape
    C = wb.shape[1]
    NOp = wh.shape[1]
    nv = hf * (wf + 2)
    kernel = functools.partial(_base_rpn_kernel, hf=hf, wf=wf)
    flops = B * 2 * (L * Kb * C + nv * 9 * C * C + nv * C * NOp)
    bytes_accessed = (xcol.size * 2 + wb.size * 2 + wc.size * 2 + wh.size * 2
                      + B * L * C * 2 + B * nv * NOp * 4)
    return pl.pallas_call(
        kernel,
        out_shape=(jax.ShapeDtypeStruct((B, L, C), jnp.bfloat16),
                   jax.ShapeDtypeStruct((B, nv, NOp), jnp.float32)),
        grid=(B,),
        in_specs=[
            pl.BlockSpec((1, L, Kb), lambda b: (b, 0, 0)),
            pl.BlockSpec((Kb, C), lambda b: (0, 0)),
            pl.BlockSpec((1, C), lambda b: (0, 0)),
            pl.BlockSpec((9 * C, C), lambda b: (0, 0)),
            pl.BlockSpec((1, C), lambda b: (0, 0)),
            pl.BlockSpec((C, NOp), lambda b: (0, 0)),
            pl.BlockSpec((1, NOp), lambda b: (0, 0)),
        ],
        out_specs=(pl.BlockSpec((1, L, C), lambda b: (b, 0, 0)),
                   pl.BlockSpec((1, nv, NOp), lambda b: (b, 0, 0))),
        scratch_shapes=[pltpu.VMEM(((hf + 2) * (wf + 2) + 2, C), jnp.bfloat16)],
        compiler_params=pltpu.CompilerParams(
            dimension_semantics=("parallel",),
            vmem_limit_bytes=32 * 1024 * 1024),
        cost_estimate=pl.CostEstimate(flops=flops, transcendentals=0,
                                      bytes_accessed=bytes_accessed),
    )(xcol, wb, bb.reshape(1, -1), wc, bc.reshape(1, -1), wh, bh.reshape(1, -1))


def _roi_head_kernel(feat_ref, wroi_ref, w1_ref, b1_ref, w2_ref, b2_ref,
                     wcb_ref, bcb_ref, out_ref, *, n_rois, pp, n_classes):
    """Per-image: ROIAlign as one matmul, fc1/fc2 + fused cls/bbox head,
    masked softmax in-kernel; single lane-dense (N_ROIS, 128) store."""
    # ROIAlign: (P*P*N, H*W) @ (H*W, C) -> (P*P*N, C); rows ordered (bin, roi)
    pooled = jnp.dot(wroi_ref[0], feat_ref[0],
                     preferred_element_type=jnp.float32).astype(jnp.bfloat16)
    # fc1 input: contiguous per-bin row slices concatenated along lanes
    # -> (N, P*P*C); w1 rows were permuted in JAX to match this ordering.
    x = jnp.concatenate(
        [pooled[q * n_rois:(q + 1) * n_rois, :] for q in range(pp)], axis=-1)
    h = jnp.dot(x, w1_ref[...], preferred_element_type=jnp.float32)
    h = jnp.maximum(h + b1_ref[...], 0.0).astype(jnp.bfloat16)
    h = jnp.dot(h, w2_ref[...], preferred_element_type=jnp.float32)
    h = jnp.maximum(h + b2_ref[...], 0.0).astype(jnp.bfloat16)
    comb = jnp.dot(h, wcb_ref[...], preferred_element_type=jnp.float32) + bcb_ref[...]
    # masked softmax over the first n_classes columns; bbox / zero-padded
    # columns pass through raw -> one wide unmasked store, split in JAX.
    col = lax.broadcasted_iota(jnp.int32, comb.shape, 1)
    is_cls = col < n_classes
    m = jnp.max(jnp.where(is_cls, comb, -1e30), axis=1, keepdims=True)
    e = jnp.where(is_cls, jnp.exp(comb - m), 0.0)
    inv = pl.reciprocal(jnp.sum(e, axis=1, keepdims=True), approx=True)
    out_ref[0] = jnp.where(is_cls, e * inv, comb).astype(out_ref.dtype)


def pallas_roi_head(feat, wroi, w1p, b1, w2, b2, wcb, bcb, *, n_rois, n_classes):
    B, HW, C = feat.shape
    RPP = wroi.shape[1]
    pp = RPP // n_rois
    K1 = w1p.shape[0]
    H1 = w1p.shape[1]
    H2 = w2.shape[1]
    NOp = wcb.shape[1]
    kernel = functools.partial(_roi_head_kernel, n_rois=n_rois, pp=pp,
                               n_classes=n_classes)
    flops = B * 2 * (RPP * HW * C + n_rois * (K1 * H1 + H1 * H2 + H2 * NOp))
    bytes_accessed = (feat.size * 2 + wroi.size * 2 + w1p.size * 2 + w2.size * 2
                      + wcb.size * 2 + B * n_rois * NOp * 4)
    return pl.pallas_call(
        kernel,
        out_shape=jax.ShapeDtypeStruct((B, n_rois, NOp), jnp.float32),
        grid=(B,),
        in_specs=[
            pl.BlockSpec((1, HW, C), lambda b: (b, 0, 0)),
            pl.BlockSpec((1, RPP, HW), lambda b: (b, 0, 0)),
            pl.BlockSpec((K1, H1), lambda b: (0, 0)),
            pl.BlockSpec((1, H1), lambda b: (0, 0)),
            pl.BlockSpec((H1, H2), lambda b: (0, 0)),
            pl.BlockSpec((1, H2), lambda b: (0, 0)),
            pl.BlockSpec((H2, NOp), lambda b: (0, 0)),
            pl.BlockSpec((1, NOp), lambda b: (0, 0)),
        ],
        out_specs=pl.BlockSpec((1, n_rois, NOp), lambda b: (b, 0, 0)),
        compiler_params=pltpu.CompilerParams(
            dimension_semantics=("parallel",),
            vmem_limit_bytes=32 * 1024 * 1024),
        cost_estimate=pl.CostEstimate(flops=flops,
                                      transcendentals=B * n_rois * NOp,
                                      bytes_accessed=bytes_accessed),
    )(feat, wroi, w1p, b1.reshape(1, -1), w2, b2.reshape(1, -1),
      wcb, bcb.reshape(1, -1))


# ============================ JAX glue helpers ================================

def patchify_im2col(x, k):
    """(B, C, H, W) -> (B, (H//k)*(W//k), C*k*k), stride-k non-overlap patches."""
    B, C, H, W = x.shape
    x = x.reshape(B, C, H // k, k, W // k, k)
    x = jnp.transpose(x, (0, 2, 4, 1, 3, 5))
    return x.reshape(B, (H // k) * (W // k), C * k * k)


def make_anchors(hf, wf, stride, sizes):
    ys = (jnp.arange(hf, dtype=jnp.float32) * stride + stride / 2.0)
    xs = (jnp.arange(wf, dtype=jnp.float32) * stride + stride / 2.0)
    cy, cx = jnp.meshgrid(ys, xs, indexing="ij")          # (hf, wf)
    ctr = jnp.stack([cx, cy], axis=-1).reshape(-1, 1, 2)  # (L, 1, 2)
    half = jnp.asarray(sizes, jnp.float32).reshape(1, -1, 1) / 2.0
    return jnp.concatenate([ctr - half, ctr + half], axis=-1)  # (L, A, 4)


def apply_deltas(anchors, deltas):
    w = anchors[..., 2] - anchors[..., 0] + 1.0
    h = anchors[..., 3] - anchors[..., 1] + 1.0
    cx = anchors[..., 0] + 0.5 * w
    cy = anchors[..., 1] + 0.5 * h
    pcx = deltas[..., 0] * w + cx
    pcy = deltas[..., 1] * h + cy
    pw = jnp.exp(deltas[..., 2]) * w
    ph = jnp.exp(deltas[..., 3]) * h
    return jnp.stack([pcx - 0.5 * pw, pcy - 0.5 * ph,
                      pcx + 0.5 * pw, pcy + 0.5 * ph], axis=-1)


def roi_interp_weights(start, length, pooled, dim, ns):
    """Separable ROIAlign interpolation matrix (pooled, dim)."""
    length = jnp.maximum(length, 1.0)
    bin_size = length / pooled
    p = jnp.arange(pooled, dtype=jnp.float32)[:, None]                 # (P, 1)
    s = (jnp.arange(ns, dtype=jnp.float32)[None, :] + 0.5) / ns        # (1, ns)
    coords = start + (p + s) * bin_size                                # (P, ns)
    valid = ((coords >= -1.0) & (coords <= dim)).astype(jnp.float32)
    c = jnp.clip(coords, 0.0, dim - 1.0)
    lo = jnp.floor(c)
    hi = jnp.minimum(lo + 1.0, dim - 1.0)
    frac = c - lo
    w_lo = (1.0 - frac) * valid / ns
    w_hi = frac * valid / ns
    p_idx = jnp.broadcast_to(jnp.arange(pooled, dtype=jnp.int32)[:, None],
                             (pooled, ns))
    w = jnp.zeros((pooled, dim), jnp.float32)
    w = w.at[p_idx, lo.astype(jnp.int32)].add(w_lo)
    w = w.at[p_idx, hi.astype(jnp.int32)].add(w_hi)
    return w                                                            # (P, dim)


def compute_roi_matrices(rois, hf, wf, pooled_size, ns, stride):
    """Per-ROI separable ROIAlign matrices, returned as (B, N, P*P, hf*wf) f32."""
    B, N, _ = rois.shape
    rf = rois.reshape(-1, 5)
    scale = 1.0 / stride
    sx = rf[:, 1] * scale
    sy = rf[:, 2] * scale
    lw = (rf[:, 3] - rf[:, 1]) * scale
    lh = (rf[:, 4] - rf[:, 2]) * scale
    wy = jax.vmap(lambda s, l: roi_interp_weights(s, l, pooled_size, hf, ns))(sy, lh)
    wx = jax.vmap(lambda s, l: roi_interp_weights(s, l, pooled_size, wf, ns))(sx, lw)
    wroi = jnp.einsum("rph,rqw->rpqhw", wy, wx)          # (B*N, P, P, hf, wf)
    return wroi.reshape(B, N, pooled_size * pooled_size, hf * wf)


# ============================ parameter init ==================================

def init_params(key):
    C_in = 3
    k_base = FEAT_STRIDE
    kdim_base = C_in * k_base * k_base
    head_in = FEATURE_OUT_DIM * POOLING_SIZE * POOLING_SIZE
    ks = jax.random.split(key, 8)
    n01 = lambda k, shape, std: (jax.random.normal(k, shape, jnp.float32) * std)
    w_rpn_cls = n01(ks[2], (FEATURE_OUT_DIM, 2 * N_ANCHORS), 0.01)
    w_rpn_box = n01(ks[3], (FEATURE_OUT_DIM, 4 * N_ANCHORS), 0.01)
    w_cls = n01(ks[6], (HEAD_HIDDEN, N_CLASSES), 0.01)
    w_bbox = n01(ks[7], (HEAD_HIDDEN, 4 * N_CLASSES), 0.001)
    return {
        # backbone (RCNN_base): stride-16 patchify conv
        "w_base": n01(ks[0], (kdim_base, FEATURE_OUT_DIM), 0.01),
        "b_base": jnp.zeros((FEATURE_OUT_DIM,), jnp.float32),
        # RPN 3x3 conv, weights as (9, C_in, C_out)
        "w_rpn_conv": n01(ks[1], (9, FEATURE_OUT_DIM, FEATURE_OUT_DIM), 0.01),
        "b_rpn_conv": jnp.zeros((FEATURE_OUT_DIM,), jnp.float32),
        # fused RPN cls(6) + bbox(12) head
        "w_rpn_head": jnp.concatenate([w_rpn_cls, w_rpn_box], axis=1),
        "b_rpn_head": jnp.zeros((6 * N_ANCHORS,), jnp.float32),
        # head_to_tail (fc1 rows are channel-major: index = c*P*P + py*P + px)
        "w_fc1": n01(ks[4], (head_in, HEAD_HIDDEN), 0.01),
        "b_fc1": jnp.zeros((HEAD_HIDDEN,), jnp.float32),
        "w_fc2": n01(ks[5], (HEAD_HIDDEN, HEAD_HIDDEN), 0.01),
        "b_fc2": jnp.zeros((HEAD_HIDDEN,), jnp.float32),
        # fused RCNN_cls_score(n_classes) + RCNN_bbox_pred(4*n_classes)
        "w_cls_bbox": jnp.concatenate([w_cls, w_bbox], axis=1),
        "b_cls_bbox": jnp.zeros((5 * N_CLASSES,), jnp.float32),
    }


# ============================ forward pass ====================================

def faster_rcnn_forward(params, im_data, im_info, gt_boxes, num_boxes,
                        return_debug=False):
    """Inference-mode Faster_RCNN.forward. im_data: (B, 3, H, W) NCHW float32."""
    del gt_boxes, num_boxes  # only used in training mode
    B, _, H, W = im_data.shape
    hf, wf = H // FEAT_STRIDE, W // FEAT_STRIDE
    L = hf * wf
    C = FEATURE_OUT_DIM
    P = POOLING_SIZE
    A = N_ANCHORS
    rpn_no = 6 * A
    no = 5 * N_CLASSES
    bf16 = jnp.bfloat16

    # ---- Kernel 1: RCNN_base + RCNN_rpn (fused, bf16 features written once) ---
    xcol = patchify_im2col(im_data, FEAT_STRIDE).astype(bf16)      # (B, L, 3*16*16)
    wh_pad = jnp.pad(params["w_rpn_head"],
                     ((0, 0), (0, LANE_PAD - rpn_no))).astype(bf16)
    bh_pad = jnp.pad(params["b_rpn_head"], (0, LANE_PAD - rpn_no))
    base_feat, rpn_raw = pallas_base_rpn(
        xcol,
        params["w_base"].astype(bf16), params["b_base"],
        params["w_rpn_conv"].reshape(9 * C, C).astype(bf16), params["b_rpn_conv"],
        wh_pad, bh_pad, hf, wf)                                    # bf16 / f32
    # crop padded columns (wf+2 -> wf) and padded lanes (128 -> 18)
    rpn_out = rpn_raw.reshape(B, hf, wf + 2, LANE_PAD)[:, :, :wf, :rpn_no]
    rpn_out = rpn_out.reshape(B, L, rpn_no)
    rpn_cls = rpn_out[..., :2 * A].reshape(B, L, A, 2)
    rpn_box = rpn_out[..., 2 * A:].reshape(B, L, A, 4)
    fg_prob = jax.nn.softmax(rpn_cls, axis=-1)[..., 1]             # (B, L, A)

    # ---- proposal layer: anchor decode + clip + score top-k (NMS -> TODO) -----
    anchors = make_anchors(hf, wf, FEAT_STRIDE,
                           [FEAT_STRIDE, 2 * FEAT_STRIDE, 3 * FEAT_STRIDE])
    anchors = jnp.broadcast_to(anchors[None], (B, L, A, 4))
    proposals = apply_deltas(anchors, rpn_box).reshape(B, L * A, 4)
    im_h = im_info[:, 0].reshape(B, 1)
    im_w = im_info[:, 1].reshape(B, 1)
    proposals = jnp.stack([
        jnp.clip(proposals[..., 0], 0.0, im_w - 1.0),
        jnp.clip(proposals[..., 1], 0.0, im_h - 1.0),
        jnp.clip(proposals[..., 2], 0.0, im_w - 1.0),
        jnp.clip(proposals[..., 3], 0.0, im_h - 1.0)], axis=-1)
    scores = fg_prob.reshape(B, L * A)
    _, top_idx = lax.top_k(scores, N_ROIS)                         # (B, N)
    top_props = jnp.take_along_axis(proposals, top_idx[..., None], axis=1)
    batch_col = jnp.broadcast_to(
        jnp.arange(B, dtype=jnp.float32)[:, None, None], (B, N_ROIS, 1))
    rois = jnp.concatenate([batch_col, top_props], axis=-1)        # (B, N, 5)
    rpn_loss_cls = 0
    rpn_loss_box = 0
    rois_labels = None

    # ---- Kernel 2: ROIAlign-as-matmul fused with head_to_tail + cls/bbox ------
    wroi4 = compute_roi_matrices(rois, hf, wf, P, SAMPLING_RATIO, FEAT_STRIDE)
    # (bin, roi)-major row ordering so the fc1 input is built from contiguous
    # row slices in-kernel (no pooled-tile transpose/reshape)
    wroi = jnp.transpose(wroi4, (0, 2, 1, 3)).reshape(
        B, P * P * N_ROIS, L).astype(bf16)
    # one-time permutation of fc1 rows: channel-major -> (bin, channel)-major
    w1p = params["w_fc1"].reshape(C, P * P, HEAD_HIDDEN).transpose(1, 0, 2)
    w1p = w1p.reshape(P * P * C, HEAD_HIDDEN).astype(bf16)
    wcb_pad = jnp.pad(params["w_cls_bbox"],
                      ((0, 0), (0, LANE_PAD - no))).astype(bf16)
    bcb_pad = jnp.pad(params["b_cls_bbox"], (0, LANE_PAD - no))
    head_out = pallas_roi_head(
        base_feat, wroi,
        w1p, params["b_fc1"],
        params["w_fc2"].astype(bf16), params["b_fc2"],
        wcb_pad, bcb_pad, n_rois=N_ROIS, n_classes=N_CLASSES)      # (B, N, 128)
    rcnn_cls_prob = head_out[..., :N_CLASSES]
    rcnn_bbox_pred = head_out[..., N_CLASSES:no]

    outs = (rois, rois_labels, rcnn_cls_prob, rcnn_bbox_pred,
            rpn_loss_cls, rpn_loss_box, 0, 0)
    if return_debug:
        return outs, {"base_feat": base_feat, "rpn_out": rpn_out}
    return outs


# ===================== pure-JAX f32 reference (for checks) ===================

def reference_forward(params, im_data, rois, hf, wf):
    """f32 reference of the same math; head evaluated on the given rois."""
    B = im_data.shape[0]
    C = FEATURE_OUT_DIM
    P = POOLING_SIZE
    L = hf * wf
    xcol = patchify_im2col(im_data, FEAT_STRIDE)
    base = jnp.maximum(xcol @ params["w_base"] + params["b_base"], 0.0)  # (B,L,C)
    xp = jnp.pad(base.reshape(B, hf, wf, C), ((0, 0), (1, 1), (1, 1), (0, 0)))
    conv = sum(jnp.einsum("bhwc,cd->bhwd", xp[:, dy:dy + hf, dx:dx + wf, :],
                          params["w_rpn_conv"][dy * 3 + dx])
               for dy in range(3) for dx in range(3))
    conv = jnp.maximum(conv + params["b_rpn_conv"], 0.0).reshape(B, L, C)
    rpn = conv @ params["w_rpn_head"] + params["b_rpn_head"]             # (B,L,18)
    wroi4 = compute_roi_matrices(rois, hf, wf, P, SAMPLING_RATIO, FEAT_STRIDE)
    pooled = jnp.einsum("bnph,bhc->bnpc", wroi4, base)                   # (B,N,PP,C)
    x = jnp.transpose(pooled, (0, 1, 3, 2)).reshape(B * N_ROIS, C * P * P)
    h = jnp.maximum(x @ params["w_fc1"] + params["b_fc1"], 0.0)
    h = jnp.maximum(h @ params["w_fc2"] + params["b_fc2"], 0.0)
    comb = h @ params["w_cls_bbox"] + params["b_cls_bbox"]
    cls_prob = jax.nn.softmax(comb[:, :N_CLASSES], axis=1)
    return (base, rpn,
            cls_prob.reshape(B, N_ROIS, N_CLASSES),
            comb[:, N_CLASSES:].reshape(B, N_ROIS, 4 * N_CLASSES))


# ================================ main ========================================

if __name__ == "__main__":
    key = jax.random.PRNGKey(0)
    k_param, k_im, k_gt = jax.random.split(key, 3)
    params = init_params(k_param)

    B, C_in, H, W = 2, 3, 64, 64
    im_data = jax.random.normal(k_im, (B, C_in, H, W), jnp.float32)
    im_info = jnp.tile(jnp.array([[H, W, 1.0]], jnp.float32), (B, 1))
    gt_boxes = jax.random.uniform(k_gt, (B, 5, 5), jnp.float32) * 32.0
    num_boxes = jnp.array([3, 2], jnp.int32)

    fwd = jax.jit(faster_rcnn_forward, static_argnames=("return_debug",))
    outs, dbg = fwd(params, im_data, im_info, gt_boxes, num_boxes,
                    return_debug=True)
    rois, rois_labels, cls_prob, bbox_pred = outs[0], outs[1], outs[2], outs[3]
    jax.block_until_ready((rois, cls_prob, bbox_pred,
                           dbg["base_feat"], dbg["rpn_out"]))

    assert rois.shape == (B, N_ROIS, 5)
    assert cls_prob.shape == (B, N_ROIS, N_CLASSES)
    assert bbox_pred.shape == (B, N_ROIS, 4 * N_CLASSES)
    assert bool(jnp.all(jnp.isfinite(cls_prob)))
    assert bool(jnp.all(jnp.isfinite(bbox_pred)))

    # tolerance check vs pure-JAX f32 reference (bf16 MXU operands in kernels)
    hf, wf = H // FEAT_STRIDE, W // FEAT_STRIDE
    base_ref, rpn_ref, cls_ref, bbox_ref = reference_forward(
        params, im_data, rois, hf, wf)
    maxdiff = lambda a, b: float(jnp.max(jnp.abs(a.astype(jnp.float32) - b)))
    assert maxdiff(dbg["base_feat"], base_ref) < 3e-2
    assert maxdiff(dbg["rpn_out"], rpn_ref) < 1e-2
    assert maxdiff(cls_prob, cls_ref) < 2e-2
    assert maxdiff(bbox_pred, bbox_ref) < 1e-2

    print("KERNEL_OK")
</pallas_src>

<mosaic_0001>
module attributes {stable_mosaic.version = 11 : i64} {
  func.func private @main(%arg0: i32) attributes {dimension_semantics = [#tpu.dimension_semantics<core_parallel>], iteration_bounds = array<i64: 2>, tpu.core_type = #tpu.core_type<sc_scalar_subcore>, window_params = []} {
    return
  }
}

module attributes {stable_mosaic.version = 11 : i64} {
  func.func private @main(%arg0: i32) attributes {dimension_semantics = [#tpu.dimension_semantics<core_parallel>], iteration_bounds = array<i64: 2>, tpu.core_type = #tpu.core_type<sc_scalar_subcore>, window_params = []} {
    return
  }
}

module attributes {stable_mosaic.version = 11 : i64} {
  func.func @_base_rpn_kernel(%arg0: i32, %arg1: memref<1x16x768xbf16, #tpu.memory_space<vmem>>, %arg2: memref<768x32xbf16, #tpu.memory_space<vmem>>, %arg3: memref<1x32xf32, #tpu.memory_space<vmem>>, %arg4: memref<288x32xbf16, #tpu.memory_space<vmem>>, %arg5: memref<1x32xf32, #tpu.memory_space<vmem>>, %arg6: memref<32x128xbf16, #tpu.memory_space<vmem>>, %arg7: memref<1x128xf32, #tpu.memory_space<vmem>>, %arg8: memref<1x16x32xbf16, #tpu.memory_space<vmem>>, %arg9: memref<1x24x128xf32, #tpu.memory_space<vmem>>, %arg10: memref<38x32xbf16, #tpu.memory_space<vmem>>) attributes {dimension_semantics = [#tpu.dimension_semantics<parallel>], iteration_bounds = array<i64: 2>, scalar_prefetch = 0 : i64, scratch_operands = 1 : i64, tpu.core_type = #tpu.core_type<tc>, window_params = [{transform_indices = @transform_0, window_bounds = array<i64: 1, 16, 768>}, {pipeline_mode = #tpu.pipeline_mode<synchronous>, transform_indices = @transform_1, window_bounds = array<i64: 768, 32>}, {pipeline_mode = #tpu.pipeline_mode<synchronous>, transform_indices = @transform_2, window_bounds = array<i64: 1, 32>}, {pipeline_mode = #tpu.pipeline_mode<synchronous>, transform_indices = @transform_3, window_bounds = array<i64: 288, 32>}, {pipeline_mode = #tpu.pipeline_mode<synchronous>, transform_indices = @transform_4, window_bounds = array<i64: 1, 32>}, {pipeline_mode = #tpu.pipeline_mode<synchronous>, transform_indices = @transform_5, window_bounds = array<i64: 32, 128>}, {pipeline_mode = #tpu.pipeline_mode<synchronous>, transform_indices = @transform_6, window_bounds = array<i64: 1, 128>}, {transform_indices = @transform_7, window_bounds = array<i64: 1, 16, 32>}, {transform_indices = @transform_8, window_bounds = array<i64: 1, 24, 128>}]} {
    %c0 = arith.constant 0 : index
    %c0_0 = arith.constant 0 : index
    %c0_1 = arith.constant 0 : index
    %0 = vector.load %arg1[%c0, %c0_0, %c0_1] : memref<1x16x768xbf16, #tpu.memory_space<vmem>>, vector<1x16x768xbf16>
    %1 = vector.shape_cast %0 : vector<1x16x768xbf16> to vector<16x768xbf16>
    %c0_2 = arith.constant 0 : index
    %c0_3 = arith.constant 0 : index
    %2 = vector.load %arg2[%c0_2, %c0_3] : memref<768x32xbf16, #tpu.memory_space<vmem>>, vector<768x32xbf16>
    %cst = arith.constant dense<0.000000e+00> : vector<16x32xf32>
    %3 = tpu.matmul %1, %2, %cst {dimension_numbers = #tpu.dot_dimension_numbers<[1], [0], [0], [1], [0, 0, 1, 1], [], []>} : vector<16x768xbf16>, vector<768x32xbf16>, vector<16x32xf32> -> vector<16x32xf32>
    %c0_4 = arith.constant 0 : index
    %c0_5 = arith.constant 0 : index
    %4 = vector.load %arg3[%c0_4, %c0_5] : memref<1x32xf32, #tpu.memory_space<vmem>>, vector<1x32xf32>
    %5 = vector.broadcast %4 : vector<1x32xf32> to vector<16x32xf32>
    %6 = arith.addf %3, %5 : vector<16x32xf32>
    %cst_6 = arith.constant 0.000000e+00 : f32
    %7 = vector.broadcast %cst_6 : f32 to vector<16x32xf32>
    %8 = arith.maximumf %6, %7 : vector<16x32xf32>
    %9 = arith.truncf %8 : vector<16x32xf32> to vector<16x32xbf16>
    %c0_7 = arith.constant 0 : index
    %c0_8 = arith.constant 0 : index
    %c0_9 = arith.constant 0 : index
    %10 = vector.load %arg8[%c0_7, %c0_8, %c0_9] : memref<1x16x32xbf16, #tpu.memory_space<vmem>>, vector<1x16x32xbf16>
    %11 = vector.shape_cast %10 : vector<1x16x32xbf16> to vector<16x32xbf16>
    %12 = vector.shape_cast %9 : vector<16x32xbf16> to vector<1x16x32xbf16>
    tpu.vector_store %arg8[%c0_7, %c0_8, %c0_9], %12 {strides = array<i32>} : memref<1x16x32xbf16, #tpu.memory_space<vmem>>, vector<1x16x32xbf16>,
    %cst_10 = arith.constant 0.000000e+00 : bf16
    %13 = vector.broadcast %cst_10 : bf16 to vector<38x32xbf16>
    %c0_11 = arith.constant 0 : index
    %c0_12 = arith.constant 0 : index
    %14 = vector.load %arg10[%c0_11, %c0_12] : memref<38x32xbf16, #tpu.memory_space<vmem>>, vector<38x32xbf16>
    tpu.vector_store %arg10[%c0_11, %c0_12], %13 {strides = array<i32>} : memref<38x32xbf16, #tpu.memory_space<vmem>>, vector<38x32xbf16>,
    %15 = vector.extract_strided_slice %9 {offsets = [0, 0], sizes = [4, 32], strides = [1, 1]} : vector<16x32xbf16> to vector<4x32xbf16>
    %c7 = arith.constant 7 : index
    %c0_13 = arith.constant 0 : index
    %16 = vector.load %arg10[%c7, %c0_13] : memref<38x32xbf16, #tpu.memory_space<vmem>>, vector<4x32xbf16>
    tpu.vector_store %arg10[%c7, %c0_13], %15 {strides = array<i32>} : memref<38x32xbf16, #tpu.memory_space<vmem>>, vector<4x32xbf16>,
    %17 = vector.extract_strided_slice %9 {offsets = [4, 0], sizes = [4, 32], strides = [1, 1]} : vector<16x32xbf16> to vector<4x32xbf16>
    %c13 = arith.constant 13 : index
    %c0_14 = arith.constant 0 : index
    %18 = vector.load %arg10[%c13, %c0_14] : memref<38x32xbf16, #tpu.memory_space<vmem>>, vector<4x32xbf16>
    tpu.vector_store %arg10[%c13, %c0_14], %17 {strides = array<i32>} : memref<38x32xbf16, #tpu.memory_space<vmem>>, vector<4x32xbf16>,
    %19 = vector.extract_strided_slice %9 {offsets = [8, 0], sizes = [4, 32], strides = [1, 1]} : vector<16x32xbf16> to vector<4x32xbf16>
    %c19 = arith.constant 19 : index
    %c0_15 = arith.constant 0 : index
    %20 = vector.load %arg10[%c19, %c0_15] : memref<38x32xbf16, #tpu.memory_space<vmem>>, vector<4x32xbf16>
    tpu.vector_store %arg10[%c19, %c0_15], %19 {strides = array<i32>} : memref<38x32xbf16, #tpu.memory_space<vmem>>, vector<4x32xbf16>,
    %21 = vector.extract_strided_slice %9 {offsets = [12, 0], sizes = [4, 32], strides = [1, 1]} : vector<16x32xbf16> to vector<4x32xbf16>
    %c25 = arith.constant 25 : index
    %c0_16 = arith.constant 0 : index
    %22 = vector.load %arg10[%c25, %c0_16] : memref<38x32xbf16, #tpu.memory_space<vmem>>, vector<4x32xbf16>
    tpu.vector_store %arg10[%c25, %c0_16], %21 {strides = array<i32>} : memref<38x32xbf16, #tpu.memory_space<vmem>>, vector<4x32xbf16>,
    %c0_17 = arith.constant 0 : index
    %c0_18 = arith.constant 0 : index
    %23 = vector.load %arg10[%c0_17, %c0_18] : memref<38x32xbf16, #tpu.memory_space<vmem>>, vector<24x32xbf16>
    %c1 = arith.constant 1 : index
    %c0_19 = arith.constant 0 : index
    %24 = vector.load %arg10[%c1, %c0_19] : memref<38x32xbf16, #tpu.memory_space<vmem>>, vector<24x32xbf16>
    %c2 = arith.constant 2 : index
    %c0_20 = arith.constant 0 : index
    %25 = vector.load %arg10[%c2, %c0_20] : memref<38x32xbf16, #tpu.memory_space<vmem>>, vector<24x32xbf16>
    %c6 = arith.constant 6 : index
    %c0_21 = arith.constant 0 : index
    %26 = vector.load %arg10[%c6, %c0_21] : memref<38x32xbf16, #tpu.memory_space<vmem>>, vector<24x32xbf16>
    %c7_22 = arith.constant 7 : index
    %c0_23 = arith.constant 0 : index
    %27 = vector.load %arg10[%c7_22, %c0_23] : memref<38x32xbf16, #tpu.memory_space<vmem>>, vector<24x32xbf16>
    %c8 = arith.constant 8 : index
    %c0_24 = arith.constant 0 : index
    %28 = vector.load %arg10[%c8, %c0_24] : memref<38x32xbf16, #tpu.memory_space<vmem>>, vector<24x32xbf16>
    %c12 = arith.constant 12 : index
    %c0_25 = arith.constant 0 : index
    %29 = vector.load %arg10[%c12, %c0_25] : memref<38x32xbf16, #tpu.memory_space<vmem>>, vector<24x32xbf16>
    %c13_26 = arith.constant 13 : index
    %c0_27 = arith.constant 0 : index
    %30 = vector.load %arg10[%c13_26, %c0_27] : memref<38x32xbf16, #tpu.memory_space<vmem>>, vector<24x32xbf16>
    %c14 = arith.constant 14 : index
    %c0_28 = arith.constant 0 : index
    %31 = vector.load %arg10[%c14, %c0_28] : memref<38x32xbf16, #tpu.memory_space<vmem>>, vector<24x32xbf16>
    %32 = tpu.concatenate %23, %24, %25, %26, %27, %28, %29, %30, %31 in 1 : vector<24x32xbf16>, vector<24x32xbf16>, vector<24x32xbf16>, vector<24x32xbf16>, vector<24x32xbf16>, vector<24x32xbf16>, vector<24x32xbf16>, vector<24x32xbf16>, vector<24x32xbf16> -> vector<24x288xbf16>
    %c0_29 = arith.constant 0 : index
    %c0_30 = arith.constant 0 : index
    %33 = vector.load %arg4[%c0_29, %c0_30] : memref<288x32xbf16, #tpu.memory_space<vmem>>, vector<288x32xbf16>
    %cst_31 = arith.constant dense<0.000000e+00> : vector<24x32xf32>
    %34 = tpu.matmul %32, %33, %cst_31 {dimension_numbers = #tpu.dot_dimension_numbers<[1], [0], [0], [1], [0, 0, 1, 1], [], []>} : vector<24x288xbf16>, vector<288x32xbf16>, vector<24x32xf32> -> vector<24x32xf32>
    %c0_32 = arith.constant 0 : index
    %c0_33 = arith.constant 0 : index
    %35 = vector.load %arg5[%c0_32, %c0_33] : memref<1x32xf32, #tpu.memory_space<vmem>>, vector<1x32xf32>
    %36 = vector.broadcast %35 : vector<1x32xf32> to vector<24x32xf32>
    %37 = arith.addf %34, %36 : vector<24x32xf32>
    %cst_34 = arith.constant 0.000000e+00 : f32
    %38 = vector.broadcast %cst_34 : f32 to vector<24x32xf32>
    %39 = arith.maximumf %37, %38 : vector<24x32xf32>
    %40 = arith.truncf %39 : vector<24x32xf32> to vector<24x32xbf16>
    %c0_35 = arith.constant 0 : index
    %c0_36 = arith.constant 0 : index
    %41 = vector.load %arg6[%c0_35, %c0_36] : memref<32x128xbf16, #tpu.memory_space<vmem>>, vector<32x128xbf16>
    %cst_37 = arith.constant dense<0.000000e+00> : vector<24x128xf32>
    %42 = tpu.matmul %40, %41, %cst_37 {dimension_numbers = #tpu.dot_dimension_numbers<[1], [0], [0], [1], [0, 0, 1, 1], [], []>} : vector<24x32xbf16>, vector<32x128xbf16>, vector<24x128xf32> -> vector<24x128xf32>
    %c0_38 = arith.constant 0 : index
    %c0_39 = arith.constant 0 : index
    %43 = vector.load %arg7[%c0_38, %c0_39] : memref<1x128xf32, #tpu.memory_space<vmem>>, vector<1x128xf32>
    %44 = vector.broadcast %43 : vector<1x128xf32> to vector<24x128xf32>
    %45 = arith.addf %42, %44 : vector<24x128xf32>
    %c0_40 = arith.constant 0 : index
    %c0_41 = arith.constant 0 : index
    %c0_42 = arith.constant 0 : index
    %46 = vector.load %arg9[%c0_40, %c0_41, %c0_42] : memref<1x24x128xf32, #tpu.memory_space<vmem>>, vector<1x24x128xf32>
    %47 = vector.shape_cast %46 : vector<1x24x128xf32> to vector<24x128xf32>
    %48 = vector.shape_cast %45 : vector<24x128xf32> to vector<1x24x128xf32>
    tpu.vector_store %arg9[%c0_40, %c0_41, %c0_42], %48 {strides = array<i32>} : memref<1x24x128xf32, #tpu.memory_space<vmem>>, vector<1x24x128xf32>,
    return
  }
  func.func @transform_0(%arg0: i32) -> (i32, i32, i32) {
    %c0_i32 = arith.constant 0 : i32
    %c0_i32_0 = arith.constant 0 : i32
    %c0_i32_1 = arith.constant 0 : i32
    return %arg0, %c0_i32, %c0_i32_0 : i32, i32, i32
  }
  func.func @transform_1(%arg0: i32) -> (i32, i32) {
    %c0_i32 = arith.constant 0 : i32
    %c0_i32_0 = arith.constant 0 : i32
    %c0_i32_1 = arith.constant 0 : i32
    return %c0_i32, %c0_i32_0 : i32, i32
  }
  func.func @transform_2(%arg0: i32) -> (i32, i32) {
    %c0_i32 = arith.constant 0 : i32
    %c0_i32_0 = arith.constant 0 : i32
    %c0_i32_1 = arith.constant 0 : i32
    return %c0_i32, %c0_i32_0 : i32, i32
  }
  func.func @transform_3(%arg0: i32) -> (i32, i32) {
    %c0_i32 = arith.constant 0 : i32
    %c0_i32_0 = arith.constant 0 : i32
    %c0_i32_1 = arith.constant 0 : i32
    return %c0_i32, %c0_i32_0 : i32, i32
  }
  func.func @transform_4(%arg0: i32) -> (i32, i32) {
    %c0_i32 = arith.constant 0 : i32
    %c0_i32_0 = arith.constant 0 : i32
    %c0_i32_1 = arith.constant 0 : i32
    return %c0_i32, %c0_i32_0 : i32, i32
  }
  func.func @transform_5(%arg0: i32) -> (i32, i32) {
    %c0_i32 = arith.constant 0 : i32
    %c0_i32_0 = arith.constant 0 : i32
    %c0_i32_1 = arith.constant 0 : i32
    return %c0_i32, %c0_i32_0 : i32, i32
  }
  func.func @transform_6(%arg0: i32) -> (i32, i32) {
    %c0_i32 = arith.constant 0 : i32
    %c0_i32_0 = arith.constant 0 : i32
    %c0_i32_1 = arith.constant 0 : i32
    return %c0_i32, %c0_i32_0 : i32, i32
  }
  func.func @transform_7(%arg0: i32) -> (i32, i32, i32) {
    %c0_i32 = arith.constant 0 : i32
    %c0_i32_0 = arith.constant 0 : i32
    %c0_i32_1 = arith.constant 0 : i32
    return %arg0, %c0_i32, %c0_i32_0 : i32, i32, i32
  }
  func.func @transform_8(%arg0: i32) -> (i32, i32, i32) {
    %c0_i32 = arith.constant 0 : i32
    %c0_i32_0 = arith.constant 0 : i32
    %c0_i32_1 = arith.constant 0 : i32
    return %arg0, %c0_i32, %c0_i32_0 : i32, i32, i32
  }
}

module attributes {stable_mosaic.version = 11 : i64} {
  func.func @_roi_head_kernel(%arg0: i32, %arg1: memref<1x16x32xbf16, #tpu.memory_space<vmem>>, %arg2: memref<1x128x16xbf16, #tpu.memory_space<vmem>>, %arg3: memref<512x64xbf16, #tpu.memory_space<vmem>>, %arg4: memref<1x64xf32, #tpu.memory_space<vmem>>, %arg5: memref<64x64xbf16, #tpu.memory_space<vmem>>, %arg6: memref<1x64xf32, #tpu.memory_space<vmem>>, %arg7: memref<64x128xbf16, #tpu.memory_space<vmem>>, %arg8: memref<1x128xf32, #tpu.memory_space<vmem>>, %arg9: memref<1x8x128xf32, #tpu.memory_space<vmem>>) attributes {dimension_semantics = [#tpu.dimension_semantics<parallel>], iteration_bounds = array<i64: 2>, scalar_prefetch = 0 : i64, scratch_operands = 0 : i64, tpu.core_type = #tpu.core_type<tc>, window_params = [{transform_indices = @transform_0, window_bounds = array<i64: 1, 16, 32>}, {transform_indices = @transform_1, window_bounds = array<i64: 1, 128, 16>}, {pipeline_mode = #tpu.pipeline_mode<synchronous>, transform_indices = @transform_2, window_bounds = array<i64: 512, 64>}, {pipeline_mode = #tpu.pipeline_mode<synchronous>, transform_indices = @transform_3, window_bounds = array<i64: 1, 64>}, {pipeline_mode = #tpu.pipeline_mode<synchronous>, transform_indices = @transform_4, window_bounds = array<i64: 64, 64>}, {pipeline_mode = #tpu.pipeline_mode<synchronous>, transform_indices = @transform_5, window_bounds = array<i64: 1, 64>}, {pipeline_mode = #tpu.pipeline_mode<synchronous>, transform_indices = @transform_6, window_bounds = array<i64: 64, 128>}, {pipeline_mode = #tpu.pipeline_mode<synchronous>, transform_indices = @transform_7, window_bounds = array<i64: 1, 128>}, {transform_indices = @transform_8, window_bounds = array<i64: 1, 8, 128>}]} {
    %c0 = arith.constant 0 : index
    %c0_0 = arith.constant 0 : index
    %c0_1 = arith.constant 0 : index
    %0 = vector.load %arg2[%c0, %c0_0, %c0_1] : memref<1x128x16xbf16, #tpu.memory_space<vmem>>, vector<1x128x16xbf16>
    %1 = vector.shape_cast %0 : vector<1x128x16xbf16> to vector<128x16xbf16>
    %c0_2 = arith.constant 0 : index
    %c0_3 = arith.constant 0 : index
    %c0_4 = arith.constant 0 : index
    %2 = vector.load %arg1[%c0_2, %c0_3, %c0_4] : memref<1x16x32xbf16, #tpu.memory_space<vmem>>, vector<1x16x32xbf16>
    %3 = vector.shape_cast %2 : vector<1x16x32xbf16> to vector<16x32xbf16>
    %cst = arith.constant dense<0.000000e+00> : vector<128x32xf32>
    %4 = tpu.matmul %1, %3, %cst {dimension_numbers = #tpu.dot_dimension_numbers<[1], [0], [0], [1], [0, 0, 1, 1], [], []>} : vector<128x16xbf16>, vector<16x32xbf16>, vector<128x32xf32> -> vector<128x32xf32>
    %5 = arith.truncf %4 : vector<128x32xf32> to vector<128x32xbf16>
    %6 = vector.extract_strided_slice %5 {offsets = [0, 0], sizes = [8, 32], strides = [1, 1]} : vector<128x32xbf16> to vector<8x32xbf16>
    %7 = vector.extract_strided_slice %5 {offsets = [8, 0], sizes = [8, 32], strides = [1, 1]} : vector<128x32xbf16> to vector<8x32xbf16>
    %8 = vector.extract_strided_slice %5 {offsets = [16, 0], sizes = [8, 32], strides = [1, 1]} : vector<128x32xbf16> to vector<8x32xbf16>
    %9 = vector.extract_strided_slice %5 {offsets = [24, 0], sizes = [8, 32], strides = [1, 1]} : vector<128x32xbf16> to vector<8x32xbf16>
    %10 = vector.extract_strided_slice %5 {offsets = [32, 0], sizes = [8, 32], strides = [1, 1]} : vector<128x32xbf16> to vector<8x32xbf16>
    %11 = vector.extract_strided_slice %5 {offsets = [40, 0], sizes = [8, 32], strides = [1, 1]} : vector<128x32xbf16> to vector<8x32xbf16>
    %12 = vector.extract_strided_slice %5 {offsets = [48, 0], sizes = [8, 32], strides = [1, 1]} : vector<128x32xbf16> to vector<8x32xbf16>
    %13 = vector.extract_strided_slice %5 {offsets = [56, 0], sizes = [8, 32], strides = [1, 1]} : vector<128x32xbf16> to vector<8x32xbf16>
    %14 = vector.extract_strided_slice %5 {offsets = [64, 0], sizes = [8, 32], strides = [1, 1]} : vector<128x32xbf16> to vector<8x32xbf16>
    %15 = vector.extract_strided_slice %5 {offsets = [72, 0], sizes = [8, 32], strides = [1, 1]} : vector<128x32xbf16> to vector<8x32xbf16>
    %16 = vector.extract_strided_slice %5 {offsets = [80, 0], sizes = [8, 32], strides = [1, 1]} : vector<128x32xbf16> to vector<8x32xbf16>
    %17 = vector.extract_strided_slice %5 {offsets = [88, 0], sizes = [8, 32], strides = [1, 1]} : vector<128x32xbf16> to vector<8x32xbf16>
    %18 = vector.extract_strided_slice %5 {offsets = [96, 0], sizes = [8, 32], strides = [1, 1]} : vector<128x32xbf16> to vector<8x32xbf16>
    %19 = vector.extract_strided_slice %5 {offsets = [104, 0], sizes = [8, 32], strides = [1, 1]} : vector<128x32xbf16> to vector<8x32xbf16>
    %20 = vector.extract_strided_slice %5 {offsets = [112, 0], sizes = [8, 32], strides = [1, 1]} : vector<128x32xbf16> to vector<8x32xbf16>
    %21 = vector.extract_strided_slice %5 {offsets = [120, 0], sizes = [8, 32], strides = [1, 1]} : vector<128x32xbf16> to vector<8x32xbf16>
    %22 = tpu.concatenate %6, %7, %8, %9, %10, %11, %12, %13, %14, %15, %16, %17, %18, %19, %20, %21 in 1 : vector<8x32xbf16>, vector<8x32xbf16>, vector<8x32xbf16>, vector<8x32xbf16>, vector<8x32xbf16>, vector<8x32xbf16>, vector<8x32xbf16>, vector<8x32xbf16>, vector<8x32xbf16>, vector<8x32xbf16>, vector<8x32xbf16>, vector<8x32xbf16>, vector<8x32xbf16>, vector<8x32xbf16>, vector<8x32xbf16>, vector<8x32xbf16> -> vector<8x512xbf16>
    %c0_5 = arith.constant 0 : index
    %c0_6 = arith.constant 0 : index
    %23 = vector.load %arg3[%c0_5, %c0_6] : memref<512x64xbf16, #tpu.memory_space<vmem>>, vector<512x64xbf16>
    %cst_7 = arith.constant dense<0.000000e+00> : vector<8x64xf32>
    %24 = tpu.matmul %22, %23, %cst_7 {dimension_numbers = #tpu.dot_dimension_numbers<[1], [0], [0], [1], [0, 0, 1, 1], [], []>} : vector<8x512xbf16>, vector<512x64xbf16>, vector<8x64xf32> -> vector<8x64xf32>
    %c0_8 = arith.constant 0 : index
    %c0_9 = arith.constant 0 : index
    %25 = vector.load %arg4[%c0_8, %c0_9] : memref<1x64xf32, #tpu.memory_space<vmem>>, vector<1x64xf32>
    %26 = vector.broadcast %25 : vector<1x64xf32> to vector<8x64xf32>
    %27 = arith.addf %24, %26 : vector<8x64xf32>
    %cst_10 = arith.constant 0.000000e+00 : f32
    %28 = vector.broadcast %cst_10 : f32 to vector<8x64xf32>
    %29 = arith.maximumf %27, %28 : vector<8x64xf32>
    %30 = arith.truncf %29 : vector<8x64xf32> to vector<8x64xbf16>
    %c0_11 = arith.constant 0 : index
    %c0_12 = arith.constant 0 : index
    %31 = vector.load %arg5[%c0_11, %c0_12] : memref<64x64xbf16, #tpu.memory_space<vmem>>, vector<64x64xbf16>
    %cst_13 = arith.constant dense<0.000000e+00> : vector<8x64xf32>
    %32 = tpu.matmul %30, %31, %cst_13 {dimension_numbers = #tpu.dot_dimension_numbers<[1], [0], [0], [1], [0, 0, 1, 1], [], []>} : vector<8x64xbf16>, vector<64x64xbf16>, vector<8x64xf32> -> vector<8x64xf32>
    %c0_14 = arith.constant 0 : index
    %c0_15 = arith.constant 0 : index
    %33 = vector.load %arg6[%c0_14, %c0_15] : memref<1x64xf32, #tpu.memory_space<vmem>>, vector<1x64xf32>
    %34 = vector.broadcast %33 : vector<1x64xf32> to vector<8x64xf32>
    %35 = arith.addf %32, %34 : vector<8x64xf32>
    %cst_16 = arith.constant 0.000000e+00 : f32
    %36 = vector.broadcast %cst_16 : f32 to vector<8x64xf32>
    %37 = arith.maximumf %35, %36 : vector<8x64xf32>
    %38 = arith.truncf %37 : vector<8x64xf32> to vector<8x64xbf16>
    %c0_17 = arith.constant 0 : index
    %c0_18 = arith.constant 0 : index
    %39 = vector.load %arg7[%c0_17, %c0_18] : memref<64x128xbf16, #tpu.memory_space<vmem>>, vector<64x128xbf16>
    %cst_19 = arith.constant dense<0.000000e+00> : vector<8x128xf32>
    %40 = tpu.matmul %38, %39, %cst_19 {dimension_numbers = #tpu.dot_dimension_numbers<[1], [0], [0], [1], [0, 0, 1, 1], [], []>} : vector<8x64xbf16>, vector<64x128xbf16>, vector<8x128xf32> -> vector<8x128xf32>
    %c0_20 = arith.constant 0 : index
    %c0_21 = arith.constant 0 : index
    %41 = vector.load %arg8[%c0_20, %c0_21] : memref<1x128xf32, #tpu.memory_space<vmem>>, vector<1x128xf32>
    %42 = vector.broadcast %41 : vector<1x128xf32> to vector<8x128xf32>
    %43 = arith.addf %40, %42 : vector<8x128xf32>
    %44 = tpu.iota {dimensions = array<i32: 1>} : vector<8x128xi32>
    %c4_i32 = arith.constant 4 : i32
    %45 = vector.broadcast %c4_i32 : i32 to vector<8x128xi32>
    %46 = arith.cmpi slt, %44, %45 : vector<8x128xi32>
    %cst_22 = arith.constant -1.000000e+30 : f32
    %47 = vector.broadcast %cst_22 : f32 to vector<8x128xf32>
    %48 = arith.select %46, %43, %47 : vector<8x128xi1>, vector<8x128xf32>
    %cst_23 = arith.constant dense<0xFF800000> : vector<8xf32>
    %49 = vector.multi_reduction <maximumf>, %48, %cst_23 [1] : vector<8x128xf32> to vector<8xf32>
    %50 = vector.shape_cast %49 : vector<8xf32> to vector<8x1xf32>
    %51 = vector.broadcast %50 : vector<8x1xf32> to vector<8x128xf32>
    %52 = arith.subf %43, %51 : vector<8x128xf32>
    %53 = math.exp %52 : vector<8x128xf32>
    %cst_24 = arith.constant 0.000000e+00 : f32
    %54 = vector.broadcast %cst_24 : f32 to vector<8x128xf32>
    %55 = arith.select %46, %53, %54 : vector<8x128xi1>, vector<8x128xf32>
    %cst_25 = arith.constant dense<0.000000e+00> : vector<8xf32>
    %56 = vector.multi_reduction <add>, %55, %cst_25 [1] : vector<8x128xf32> to vector<8xf32>
    %57 = vector.shape_cast %56 : vector<8xf32> to vector<8x1xf32>
    %58 = tpu.reciprocal %57 {approx = true} : vector<8x1xf32> -> vector<8x1xf32>
    %59 = vector.broadcast %58 : vector<8x1xf32> to vector<8x128xf32>
    %60 = arith.mulf %55, %59 : vector<8x128xf32>
    %61 = arith.select %46, %60, %43 : vector<8x128xi1>, vector<8x128xf32>
    %c0_26 = arith.constant 0 : index
    %c0_27 = arith.constant 0 : index
    %c0_28 = arith.constant 0 : index
    %62 = vector.load %arg9[%c0_26, %c0_27, %c0_28] : memref<1x8x128xf32, #tpu.memory_space<vmem>>, vector<1x8x128xf32>
    %63 = vector.shape_cast %62 : vector<1x8x128xf32> to vector<8x128xf32>
    %64 = vector.shape_cast %61 : vector<8x128xf32> to vector<1x8x128xf32>
    tpu.vector_store %arg9[%c0_26, %c0_27, %c0_28], %64 {strides = array<i32>} : memref<1x8x128xf32, #tpu.memory_space<vmem>>, vector<1x8x128xf32>,
    return
  }
  func.func @transform_0(%arg0: i32) -> (i32, i32, i32) {
    %c0_i32 = arith.constant 0 : i32
    %c0_i32_0 = arith.constant 0 : i32
    %c0_i32_1 = arith.constant 0 : i32
    return %arg0, %c0_i32, %c0_i32_0 : i32, i32, i32
  }
  func.func @transform_1(%arg0: i32) -> (i32, i32, i32) {
    %c0_i32 = arith.constant 0 : i32
    %c0_i32_0 = arith.constant 0 : i32
    %c0_i32_1 = arith.constant 0 : i32
    return %arg0, %c0_i32, %c0_i32_0 : i32, i32, i32
  }
  func.func @transform_2(%arg0: i32) -> (i32, i32) {
    %c0_i32 = arith.constant 0 : i32
    %c0_i32_0 = arith.constant 0 : i32
    %c0_i32_1 = arith.constant 0 : i32
    return %c0_i32, %c0_i32_0 : i32, i32
  }
  func.func @transform_3(%arg0: i32) -> (i32, i32) {
    %c0_i32 = arith.constant 0 : i32
    %c0_i32_0 = arith.constant 0 : i32
    %c0_i32_1 = arith.constant 0 : i32
    return %c0_i32, %c0_i32_0 : i32, i32
  }
  func.func @transform_4(%arg0: i32) -> (i32, i32) {
    %c0_i32 = arith.constant 0 : i32
    %c0_i32_0 = arith.constant 0 : i32
    %c0_i32_1 = arith.constant 0 : i32
    return %c0_i32, %c0_i32_0 : i32, i32
  }
  func.func @transform_5(%arg0: i32) -> (i32, i32) {
    %c0_i32 = arith.constant 0 : i32
    %c0_i32_0 = arith.constant 0 : i32
    %c0_i32_1 = arith.constant 0 : i32
    return %c0_i32, %c0_i32_0 : i32, i32
  }
  func.func @transform_6(%arg0: i32) -> (i32, i32) {
    %c0_i32 = arith.constant 0 : i32
    %c0_i32_0 = arith.constant 0 : i32
    %c0_i32_1 = arith.constant 0 : i32
    return %c0_i32, %c0_i32_0 : i32, i32
  }
  func.func @transform_7(%arg0: i32) -> (i32, i32) {
    %c0_i32 = arith.constant 0 : i32
    %c0_i32_0 = arith.constant 0 : i32
    %c0_i32_1 = arith.constant 0 : i32
    return %c0_i32, %c0_i32_0 : i32, i32
  }
  func.func @transform_8(%arg0: i32) -> (i32, i32, i32) {
    %c0_i32 = arith.constant 0 : i32
    %c0_i32_0 = arith.constant 0 : i32
    %c0_i32_1 = arith.constant 0 : i32
    return %arg0, %c0_i32, %c0_i32_0 : i32, i32, i32
  }
}

</mosaic_0001>

<llo_original>
// kernel: squeeze.35
$region0: #{squeeze.35}
  %s0 = inlined_call_operand.vmem [shape: f32[2,16,3,1], index: 0, kind: input, shape index: {}]
  %s1 = inlined_call_operand.vmem [shape: f32[2,48], index: 1, kind: output, shape index: {}]
  $region1: #{squeeze.35} parent=0
    #allocation0 [shape = 'u8[4096]{0}', space=vmem, size = 0x1000, scoped, tag = 'scoped mem for output reshape']
    %s2 = smov 3
    %v3 = vld [vmem:[%s0] ss:$16 sm:%s2]
    %vm4 = vcmask 23552
    %5 = vst.msk [vmem:[#allocation0] sm:$0x3] %vm4, %v3
    %s6 = scalar_lea.vmem %s0, 15
    %s7 = smov 3
    %v8 = vld [vmem:[%s6] ss:$16 sm:%s7]
    %9 = vrot.lane.b32.xlu0 %v8, 45
    %v10 = vpop.permute.xlu0 %9
    %vm11 = vcmask 392552
    %12 = vst.msk [vmem:[#allocation0] sm:$0x3] %vm11, %v10
    %s13 = scalar_lea.vmem %s0, 14
    %s14 = smov 3
    %v15 = vld [vmem:[%s13] ss:$16 sm:%s14]
    %16 = vrot.lane.b32.xlu0 %v15, 42
    %v17 = vpop.permute.xlu0 %16
    %vm18 = vcmask 367952
    %19 = vst.msk [vmem:[#allocation0] sm:$0x3] %vm18, %v17
    %s20 = scalar_lea.vmem %s0, 13
    %s21 = smov 3
    %v22 = vld [vmem:[%s20] ss:$16 sm:%s21]
    %23 = vrot.lane.b32.xlu0 %v22, 39
    %v24 = vpop.permute.xlu0 %23
    %vm25 = vcmask 343352
    %26 = vst.msk [vmem:[#allocation0] sm:$0x3] %vm25, %v24
    %s27 = scalar_lea.vmem %s0, 12
    %s28 = smov 3
    %v29 = vld [vmem:[%s27] ss:$16 sm:%s28]
    %30 = vrot.lane.b32.xlu0 %v29, 36
    %v31 = vpop.permute.xlu0 %30
    %vm32 = vcmask 318752
    %33 = vst.msk [vmem:[#allocation0] sm:$0x3] %vm32, %v31
    %s34 = scalar_lea.vmem %s0, 11
    %s35 = smov 3
    %v36 = vld [vmem:[%s34] ss:$16 sm:%s35]
    %37 = vrot.lane.b32.xlu0 %v36, 33
    %v38 = vpop.permute.xlu0 %37
    %vm39 = vcmask 294152
    %40 = vst.msk [vmem:[#allocation0] sm:$0x3] %vm39, %v38
    %s41 = scalar_lea.vmem %s0, 10
    %s42 = smov 3
    %v43 = vld [vmem:[%s41] ss:$16 sm:%s42]
    %44 = vrot.lane.b32.xlu0 %v43, 30
    %v45 = vpop.permute.xlu0 %44
    %vm46 = vcmask 269552
    %47 = vst.msk [vmem:[#allocation0] sm:$0x3] %vm46, %v45
    %s48 = scalar_lea.vmem %s0, 9
    %s49 = smov 3
    %v50 = vld [vmem:[%s48] ss:$16 sm:%s49]
    %51 = vrot.lane.b32.xlu0 %v50, 27
    %v52 = vpop.permute.xlu0 %51
    %vm53 = vcmask 244952
    %54 = vst.msk [vmem:[#allocation0] sm:$0x3] %vm53, %v52
    %s55 = scalar_lea.vmem %s0, 8
    %s56 = smov 3
    %v57 = vld [vmem:[%s55] ss:$16 sm:%s56]
    %58 = vrot.lane.b32.xlu0 %v57, 24
    %v59 = vpop.permute.xlu0 %58
    %vm60 = vcmask 220352
    %61 = vst.msk [vmem:[#allocation0] sm:$0x3] %vm60, %v59
    %s62 = scalar_lea.vmem %s0, 7
    %s63 = smov 3
    %v64 = vld [vmem:[%s62] ss:$16 sm:%s63]
    %65 = vrot.lane.b32.xlu0 %v64, 21
    %v66 = vpop.permute.xlu0 %65
    %vm67 = vcmask 195752
    %68 = vst.msk [vmem:[#allocation0] sm:$0x3] %vm67, %v66
    %s69 = scalar_lea.vmem %s0, 6
    %s70 = smov 3
    %v71 = vld [vmem:[%s69] ss:$16 sm:%s70]
    %72 = vrot.lane.b32.xlu0 %v71, 18
    %v73 = vpop.permute.xlu0 %72
    %vm74 = vcmask 171152
    %75 = vst.msk [vmem:[#allocation0] sm:$0x3] %vm74, %v73
    %s76 = scalar_lea.vmem %s0, 5
    %s77 = smov 3
    %v78 = vld [vmem:[%s76] ss:$16 sm:%s77]
    %79 = vrot.lane.b32.xlu0 %v78, 15
    %v80 = vpop.permute.xlu0 %79
    %vm81 = vcmask 146552
    %82 = vst.msk [vmem:[#allocation0] sm:$0x3] %vm81, %v80
    %s83 = scalar_lea.vmem %s0, 4
    %s84 = smov 3
    %v85 = vld [vmem:[%s83] ss:$16 sm:%s84]
    %86 = vrot.lane.b32.xlu0 %v85, 12
    %v87 = vpop.permute.xlu0 %86
    %vm88 = vcmask 121952
    %89 = vst.msk [vmem:[#allocation0] sm:$0x3] %vm88, %v87
    %s90 = scalar_lea.vmem %s0, 3
    %s91 = smov 3
    %v92 = vld [vmem:[%s90] ss:$16 sm:%s91]
    %93 = vrot.lane.b32.xlu0 %v92, 9
    %v94 = vpop.permute.xlu0 %93
    %vm95 = vcmask 97352
    %96 = vst.msk [vmem:[#allocation0] sm:$0x3] %vm95, %v94
    %s97 = scalar_lea.vmem %s0, 2
    %s98 = smov 3
    %v99 = vld [vmem:[%s97] ss:$16 sm:%s98]
    %100 = vrot.lane.b32.xlu0 %v99, 6
    %v101 = vpop.permute.xlu0 %100
    %vm102 = vcmask 72752
    %103 = vst.msk [vmem:[#allocation0] sm:$0x3] %vm102, %v101
    %s104 = scalar_lea.vmem %s0, 1
    %s105 = smov 3
    %v106 = vld [vmem:[%s104] ss:$16 sm:%s105]
    %107 = vrot.lane.b32.xlu0 %v106, 3
    %v108 = vpop.permute.xlu0 %107
    %vm109 = vcmask 48152
    %110 = vst.msk [vmem:[#allocation0] sm:$0x3] %vm109, %v108
    %s112 = sshllo.u32 0, 2
    %v114 = vld [vmem:[#allocation0] sm:%s112]
    %s115 = sshllo.u32 0, 2
    %116 = vst [vmem:[%s1] sm:%s115] %v114

// kernel: sub.30
$region0: #{sub.30}
  %s0 = inlined_call_operand.vmem [shape: f32[4,4,2], index: 0, kind: input, shape index: {}]
  %s1 = inlined_call_operand.vmem [shape: f32[16,2], index: 1, kind: output, shape index: {}]
  $region1: #{sub.30} parent=0
    #allocation0 [shape = 'u8[4096]{0}', space=vmem, size = 0x1000, scoped, tag = 'scoped mem for output reshape']
    #allocation1 [shape = 'u8[8192]{0}', space=vmem, size = 0x2000, scoped, tag = 'scoped mem for input reshape']
    %s3 = sshllo.u32 0, 4
    %s4 = scalar_lea.vmem %s0, 4
    %v5 = vld [vmem:[%s4] sm:%s3]
    %s6 = scalar_lea.vmem [#allocation1], 8
    %7 = vst [vmem:[%s6] sm:%s3] %v5
    %v8 = vld [vmem:[%s0] sm:%s3]
    %9 = vst [vmem:[#allocation1] sm:%s3] %v8
    %s10 = smov 3
    %v11 = vld [vmem:[#allocation1] ss:$8 sm:%s10]
    %vm12 = vcmask 31744
    %13 = vst.msk [vmem:[#allocation0] sm:$0x3] %vm12, %v11
    %s14 = scalar_lea.vmem [#allocation1], 3
    %s15 = smov 3
    %v16 = vld [vmem:[%s14] ss:$8 sm:%s15]
    %17 = vrot.lane.b32.xlu0 %v16, 12
    %v18 = vpop.permute.xlu0 %17
    %vm19 = vcmask 130144
    %20 = vst.msk [vmem:[#allocation0] sm:$0x3] %vm19, %v18
    %s21 = scalar_lea.vmem [#allocation1], 2
    %s22 = smov 3
    %v23 = vld [vmem:[%s21] ss:$8 sm:%s22]
    %24 = vrot.lane.b32.xlu0 %v23, 8
    %v25 = vpop.permute.xlu0 %24
    %vm26 = vcmask 97344
    %27 = vst.msk [vmem:[#allocation0] sm:$0x3] %vm26, %v25
    %s28 = scalar_lea.vmem [#allocation1], 1
    %s29 = smov 3
    %v30 = vld [vmem:[%s28] ss:$8 sm:%s29]
    %31 = vrot.lane.b32.xlu0 %v30, 4
    %v32 = vpop.permute.xlu0 %31
    %vm33 = vcmask 64544
    %34 = vst.msk [vmem:[#allocation0] sm:$0x3] %vm33, %v32
    %s36 = sshllo.u32 0, 2
    %v38 = vld [vmem:[#allocation0] sm:%s36]
    %s39 = sshllo.u32 0, 2
    %40 = vst [vmem:[%s1] sm:%s39] %v38

// kernel: faster_rcnn_forward.2
$region0: #{faster_rcnn_forward.2}
  #allocation0 [shape = 'u32[]', space=smem, size = 0x4, offset = 0x4, fixed_abs, tag = 'smem constant byte address 0x4 - core index']
  #allocation1 [shape = 'u32[144,128]{1,0:T(1,128)}', space=vmem, size = 0x12000, scoped, tag = 'internal scratch']
  #allocation2 [shape = 'bf16[38,32]{1,0:T(8,128)(2,1)}', space=vmem, size = 0x2800, scoped, tag = 'scratch operand']
  %s0 = inlined_call_operand.vmem [shape: bf16[2,16,768], index: 0, kind: input, shape index: {}]
  %s1 = inlined_call_operand.vmem [shape: bf16[768,32], index: 1, kind: input, shape index: {}]
  %s2 = inlined_call_operand.vmem [shape: f32[1,32], index: 2, kind: input, shape index: {}]
  %s3 = inlined_call_operand.vmem [shape: bf16[288,32], index: 3, kind: input, shape index: {}]
  %s4 = inlined_call_operand.vmem [shape: f32[1,32], index: 4, kind: input, shape index: {}]
  %s5 = inlined_call_operand.vmem [shape: bf16[32,128], index: 5, kind: input, shape index: {}]
  %s6 = inlined_call_operand.vmem [shape: f32[1,128], index: 6, kind: input, shape index: {}]
  %s7 = inlined_call_operand.hbm [shape: bf16[2,16,32], index: 7, kind: output, shape index: {0}]
  %s8 = inlined_call_operand.vmem [shape: f32[2,24,128], index: 8, kind: output, shape index: {1}]
  %9 = xla_tuple %s7, %s8
  %s10 = sld [smem:[#allocation0]]
  $region69: #{faster_rcnn_forward.2} parent=0
    _
  %s12 = ssub.s32 1, %s10
  %s13 = scalar_select 0, %s12, %s10
  $region1: #{faster_rcnn_forward.2} parent=0
    #allocation3 [shape = 'u8[8192]{0}', space=vmem, size = 0x2000, scoped, tag = 'output window, operand 0']
    #allocation4 [shape = 's32[2]{0}', space=sflag, size = 0x8, scoped, tag = 'scoped memory for faster_rcnn_forward.2']
    %14 = vsyncpa [#allocation4], 0
    %s15 = scalar_lea.sflag [#allocation4], 1
    %16 = vsyncpa %s15, 0
    loop: start=0, step=1, limit=4
    $region2: #{faster_rcnn_forward.2} parent=1 // loop_pre_header
      _
    $region3: #{faster_rcnn_forward.2} parent=1 // loop_header
      %s18 = sphi 0, %s22
      %p19 = scmp.ge.s32.totalorder %s18, 4
      %s28 = sphi 0, %s30
      %s31 = sphi 0, %s28
      %s32 = sphi 0, %s31
      %s48 = sphi 0, %s32
      %s52 = sphi 0, %s52
      %s54 = sphi 0, %s52
      %s55 = sphi 0, %s54
      %s69 = sphi 0, %s55
      %s73 = sphi 0, %s73
      %s75 = sphi 0, %s73
      %s76 = sphi 0, %s75
      %s90 = sphi 0, %s76
      %s94 = sphi 0, %s94
      %s96 = sphi 0, %s94
      %s97 = sphi 0, %s96
      %s111 = sphi 0, %s97
      %s115 = sphi 0, %s115
      %s117 = sphi 0, %s115
      %s118 = sphi 0, %s117
      %s132 = sphi 0, %s118
      %s136 = sphi 0, %s136
      %s138 = sphi 0, %s136
      %s139 = sphi 0, %s138
      %s153 = sphi 0, %s139
      %s157 = sphi 0, %s157
      %s159 = sphi 0, %s157
      %s160 = sphi 0, %s159
      %s174 = sphi 0, %s160
      %s180 = sphi 0, %s182
      %s183 = sphi 0, %s180
      %s184 = sphi 0, %s183
      %s200 = sphi 0, %s184
      %s206 = sphi 0, %s208
      %s209 = sphi 0, %s206
      %s210 = sphi 0, %s209
      %s226 = sphi 0, %s210
    $region4: #{faster_rcnn_forward.2} parent=1 // loop_header_branch
      %21 = sbr.rel (%p19) target = $region8
    $region5: #{faster_rcnn_forward.2} parent=1 // loop_body
      %s23 = ssub.s32 %s18, 1
      %s24 = ssub.s32 %s18, 2
      %s25 = sadd.s32 %s18, 1
      %s26 = ssub.s32 %s18, %s25
      %p27 = scmp.eq.s32.totalorder %s26, 0
      %s29 = sadd.s32 %s28, 1
      %s30 = scalar_select %p27, %s28, %s29
      %p33 = pneg %p27
      %p34 = scmp.eq.s32.totalorder %s18, 1
      %p35 = por %p33, %p34
      %p36 = scmp.ne.s32.totalorder %s28, %s31
      %p37 = scmp.eq.s32.totalorder %s18, 0
      %p38 = por %p36, %p37
      %p39 = scmp.ne.s32.totalorder %s28, %s31
      %p40 = scmp.eq.s32.totalorder %s23, 1
      %p41 = por %p39, %p40
      %p42 = scmp.ne.s32.totalorder %s31, %s32
      %p43 = scmp.eq.s32.totalorder %s23, 0
      %p44 = por %p42, %p43
      %p45 = scmp.ne.s32.totalorder %s31, %s32
      %p46 = scmp.eq.s32.totalorder %s24, 1
      %p47 = por %p45, %p46
      %p49 = scmp.ne.s32.totalorder %s32, %s48
      %p50 = scmp.eq.s32.totalorder %s24, 0
      %p51 = por %p49, %p50
      %s53 = sadd.s32 %s52, 1
      %p56 = scmp.eq.s32.totalorder %s18, 1
      %p57 = scmp.ne.s32.totalorder %s52, %s54
      %p58 = scmp.eq.s32.totalorder %s18, 0
      %p59 = por %p57, %p58
      %p60 = scmp.ne.s32.totalorder %s52, %s54
      %p61 = scmp.eq.s32.totalorder %s23, 1
      %p62 = por %p60, %p61
      %p63 = scmp.ne.s32.totalorder %s54, %s55
      %p64 = scmp.eq.s32.totalorder %s23, 0
      %p65 = por %p63, %p64
      %p66 = scmp.ne.s32.totalorder %s54, %s55
      %p67 = scmp.eq.s32.totalorder %s24, 1
      %p68 = por %p66, %p67
      %p70 = scmp.ne.s32.totalorder %s55, %s69
      %p71 = scmp.eq.s32.totalorder %s24, 0
      %p72 = por %p70, %p71
      %s74 = sadd.s32 %s73, 1
      %p77 = scmp.eq.s32.totalorder %s18, 1
      %p78 = scmp.ne.s32.totalorder %s73, %s75
      %p79 = scmp.eq.s32.totalorder %s18, 0
      %p80 = por %p78, %p79
      %p81 = scmp.ne.s32.totalorder %s73, %s75
      %p82 = scmp.eq.s32.totalorder %s23, 1
      %p83 = por %p81, %p82
      %p84 = scmp.ne.s32.totalorder %s75, %s76
      %p85 = scmp.eq.s32.totalorder %s23, 0
      %p86 = por %p84, %p85
      %p87 = scmp.ne.s32.totalorder %s75, %s76
      %p88 = scmp.eq.s32.totalorder %s24, 1
      %p89 = por %p87, %p88
      %p91 = scmp.ne.s32.totalorder %s76, %s90
      %p92 = scmp.eq.s32.totalorder %s24, 0
      %p93 = por %p91, %p92
      %s95 = sadd.s32 %s94, 1
      %p98 = scmp.eq.s32.totalorder %s18, 1
      %p99 = scmp.ne.s32.totalorder %s94, %s96
      %p100 = scmp.eq.s32.totalorder %s18, 0
      %p101 = por %p99, %p100
      %p102 = scmp.ne.s32.totalorder %s94, %s96
      %p103 = scmp.eq.s32.totalorder %s23, 1
      %p104 = por %p102, %p103
      %p105 = scmp.ne.s32.totalorder %s96, %s97
      %p106 = scmp.eq.s32.totalorder %s23, 0
      %p107 = por %p105, %p106
      %p108 = scmp.ne.s32.totalorder %s96, %s97
      %p109 = scmp.eq.s32.totalorder %s24, 1
      %p110 = por %p108, %p109
      %p112 = scmp.ne.s32.totalorder %s97, %s111
      %p113 = scmp.eq.s32.totalorder %s24, 0
      %p114 = por %p112, %p113
      %s116 = sadd.s32 %s115, 1
      %p119 = scmp.eq.s32.totalorder %s18, 1
      %p120 = scmp.ne.s32.totalorder %s115, %s117
      %p121 = scmp.eq.s32.totalorder %s18, 0
      %p122 = por %p120, %p121
      %p123 = scmp.ne.s32.totalorder %s115, %s117
      %p124 = scmp.eq.s32.totalorder %s23, 1
      %p125 = por %p123, %p124
      %p126 = scmp.ne.s32.totalorder %s117, %s118
      %p127 = scmp.eq.s32.totalorder %s23, 0
      %p128 = por %p126, %p127
      %p129 = scmp.ne.s32.totalorder %s117, %s118
      %p130 = scmp.eq.s32.totalorder %s24, 1
      %p131 = por %p129, %p130
      %p133 = scmp.ne.s32.totalorder %s118, %s132
      %p134 = scmp.eq.s32.totalorder %s24, 0
      %p135 = por %p133, %p134
      %s137 = sadd.s32 %s136, 1
      %p140 = scmp.eq.s32.totalorder %s18, 1
      %p141 = scmp.ne.s32.totalorder %s136, %s138
      %p142 = scmp.eq.s32.totalorder %s18, 0
      %p143 = por %p141, %p142
      %p144 = scmp.ne.s32.totalorder %s136, %s138
      %p145 = scmp.eq.s32.totalorder %s23, 1
      %p146 = por %p144, %p145
      %p147 = scmp.ne.s32.totalorder %s138, %s139
      %p148 = scmp.eq.s32.totalorder %s23, 0
      %p149 = por %p147, %p148
      %p150 = scmp.ne.s32.totalorder %s138, %s139
      %p151 = scmp.eq.s32.totalorder %s24, 1
      %p152 = por %p150, %p151
      %p154 = scmp.ne.s32.totalorder %s139, %s153
      %p155 = scmp.eq.s32.totalorder %s24, 0
      %p156 = por %p154, %p155
      %s158 = sadd.s32 %s157, 1
      %p161 = scmp.eq.s32.totalorder %s18, 1
      %p162 = scmp.ne.s32.totalorder %s157, %s159
      %p163 = scmp.eq.s32.totalorder %s18, 0
      %p164 = por %p162, %p163
      %p165 = scmp.ne.s32.totalorder %s157, %s159
      %p166 = scmp.eq.s32.totalorder %s23, 1
      %p167 = por %p165, %p166
      %p168 = scmp.ne.s32.totalorder %s159, %s160
      %p169 = scmp.eq.s32.totalorder %s23, 0
      %p170 = por %p168, %p169
      %p171 = scmp.ne.s32.totalorder %s159, %s160
      %p172 = scmp.eq.s32.totalorder %s24, 1
      %p173 = por %p171, %p172
      %p175 = scmp.ne.s32.totalorder %s160, %s174
      %p176 = scmp.eq.s32.totalorder %s24, 0
      %p177 = por %p175, %p176
      %s178 = ssub.s32 %s18, %s25
      %p179 = scmp.eq.s32.totalorder %s178, 0
      %s181 = sadd.s32 %s180, 1
      %s182 = scalar_select %p179, %s180, %s181
      %p185 = pneg %p179
      %p186 = scmp.eq.s32.totalorder %s18, 1
      %p187 = por %p185, %p186
      %p188 = scmp.ne.s32.totalorder %s180, %s183
      %p189 = scmp.eq.s32.totalorder %s18, 0
      %p190 = por %p188, %p189
      %p191 = scmp.ne.s32.totalorder %s180, %s183
      %p192 = scmp.eq.s32.totalorder %s23, 1
      %p193 = por %p191, %p192
      %p194 = scmp.ne.s32.totalorder %s183, %s184
      %p195 = scmp.eq.s32.totalorder %s23, 0
      %p196 = por %p194, %p195
      %p197 = scmp.ne.s32.totalorder %s183, %s184
      %p198 = scmp.eq.s32.totalorder %s24, 1
      %p199 = por %p197, %p198
      %p201 = scmp.ne.s32.totalorder %s184, %s200
      %p202 = scmp.eq.s32.totalorder %s24, 0
      %p203 = por %p201, %p202
      %s204 = ssub.s32 %s18, %s25
      %p205 = scmp.eq.s32.totalorder %s204, 0
      %s207 = sadd.s32 %s206, 1
      %s208 = scalar_select %p205, %s206, %s207
      %p211 = pneg %p205
      %p212 = scmp.eq.s32.totalorder %s18, 1
      %p213 = por %p211, %p212
      %p214 = scmp.ne.s32.totalorder %s206, %s209
      %p215 = scmp.eq.s32.totalorder %s18, 0
      %p216 = por %p214, %p215
      %p217 = scmp.ne.s32.totalorder %s206, %s209
      %p218 = scmp.eq.s32.totalorder %s23, 1
      %p219 = por %p217, %p218
      %p220 = scmp.ne.s32.totalorder %s209, %s210
      %p221 = scmp.eq.s32.totalorder %s23, 0
      %p222 = por %p220, %p221
      %p223 = scmp.ne.s32.totalorder %s209, %s210
      %p224 = scmp.eq.s32.totalorder %s24, 1
      %p225 = por %p223, %p224
      %p227 = scmp.ne.s32.totalorder %s210, %s226
      %p228 = scmp.eq.s32.totalorder %s24, 0
      %p229 = por %p227, %p228
      %p230 = scmp.le.s32.totalorder 1, %s18
      %p231 = scmp.lt.s32.totalorder %s18, 3
      %p232 = pnand %p230, %p231
      %p233 = pneg %p232
      // Predicated region
      $region9: #{faster_rcnn_forward.2} parent=5 // pred_check
        _
      $region10: #{faster_rcnn_forward.2} parent=5 // pred_check_branch
        %235 = sbr.rel (%p232) target = $region12
      $region11: #{faster_rcnn_forward.2} parent=5 // pred_region
        %s236 = ssub.s32 %s18, 1
        // Predicated region
        $region13: #{faster_rcnn_forward.2} parent=11 // pred_check
          %p237 = pneg %p65
        $region14: #{faster_rcnn_forward.2} parent=11 // pred_check_branch
          %239 = sbr.rel (%p237) target = $region16
        $region15: #{faster_rcnn_forward.2} parent=11 // pred_region
          _
        $region16: #{faster_rcnn_forward.2} parent=11 // pred_fallthru
          _
        // Predicated region
        $region17: #{faster_rcnn_forward.2} parent=11 // pred_check
          %p240 = pneg %p86
        $region18: #{faster_rcnn_forward.2} parent=11 // pred_check_branch
          %242 = sbr.rel (%p240) target = $region20
        $region19: #{faster_rcnn_forward.2} parent=11 // pred_region
          _
        $region20: #{faster_rcnn_forward.2} parent=11 // pred_fallthru
          _
        // Predicated region
        $region21: #{faster_rcnn_forward.2} parent=11 // pred_check
          %p243 = pneg %p107
        $region22: #{faster_rcnn_forward.2} parent=11 // pred_check_branch
          %245 = sbr.rel (%p243) target = $region24
        $region23: #{faster_rcnn_forward.2} parent=11 // pred_region
          _
        $region24: #{faster_rcnn_forward.2} parent=11 // pred_fallthru
          _
        // Predicated region
        $region25: #{faster_rcnn_forward.2} parent=11 // pred_check
          %p246 = pneg %p128
        $region26: #{faster_rcnn_forward.2} parent=11 // pred_check_branch
          %248 = sbr.rel (%p246) target = $region28
        $region27: #{faster_rcnn_forward.2} parent=11 // pred_region
          _
        $region28: #{faster_rcnn_forward.2} parent=11 // pred_fallthru
          _
        // Predicated region
        $region29: #{faster_rcnn_forward.2} parent=11 // pred_check
          %p249 = pneg %p149
        $region30: #{faster_rcnn_forward.2} parent=11 // pred_check_branch
          %251 = sbr.rel (%p249) target = $region32
        $region31: #{faster_rcnn_forward.2} parent=11 // pred_region
          _
        $region32: #{faster_rcnn_forward.2} parent=11 // pred_fallthru
          _
        // Predicated region
        $region33: #{faster_rcnn_forward.2} parent=11 // pred_check
          %p252 = pneg %p170
        $region34: #{faster_rcnn_forward.2} parent=11 // pred_check_branch
          %254 = sbr.rel (%p252) target = $region36
        $region35: #{faster_rcnn_forward.2} parent=11 // pred_region
          _
        $region36: #{faster_rcnn_forward.2} parent=11 // pred_fallthru
          _
      $region12: #{faster_rcnn_forward.2} parent=5 // pred_fallthru
        _
      %p255 = scmp.lt.s32.totalorder %s18, 2
      // Predicated region
      $region37: #{faster_rcnn_forward.2} parent=5 // pred_check
        %p256 = pneg %p255
      $region38: #{faster_rcnn_forward.2} parent=5 // pred_check_branch
        %258 = sbr.rel (%p256) target = $region40
      $region39: #{faster_rcnn_forward.2} parent=5 // pred_region
        // Predicated region
        $region41: #{faster_rcnn_forward.2} parent=39 // pred_check
          %p259 = pneg %p38
        $region42: #{faster_rcnn_forward.2} parent=39 // pred_check_branch
          %261 = sbr.rel (%p259) target = $region44
        $region43: #{faster_rcnn_forward.2} parent=39 // pred_region
          %p262 = scmp.lt.s32.totalorder %s18, 1
          %s263 = scalar_select %p262, %s18, 1
          %s264 = smul.addr %s263, 12
          %s265 = smul.addr %s264, 4
          %s266 = scalar_lea.vmem %s0, %s265
        $region44: #{faster_rcnn_forward.2} parent=39 // pred_fallthru
          _
      $region40: #{faster_rcnn_forward.2} parent=5 // pred_fallthru
        _
      %p267 = scmp.le.s32.totalorder 1, %s18
      %p268 = scmp.lt.s32.totalorder %s18, 3
      %p269 = pnand %p267, %p268
      %p270 = pneg %p269
      // Predicated region
      $region45: #{faster_rcnn_forward.2} parent=5 // pred_check
        _
      $region46: #{faster_rcnn_forward.2} parent=5 // pred_check_branch
        %272 = sbr.rel (%p269) target = $region48
      $region47: #{faster_rcnn_forward.2} parent=5 // pred_region
        %s273 = ssub.s32 %s18, 1
        %p274 = scmp.lt.s32.totalorder %s23, 1
        %s275 = scalar_select %p274, %s23, 1
        %s276 = smul.addr %s275, 12
        %s277 = smul.addr %s276, 4
        %s278 = scalar_lea.vmem %s0, %s277
        %p279 = pneg %p44
        %p280 = pneg %p41
        %p281 = pneg %p65
        %p282 = pneg %p62
        %p283 = pneg %p86
        %p284 = pneg %p83
        %p285 = pneg %p107
        %p286 = pneg %p104
        %p287 = pneg %p128
        %p288 = pneg %p125
        %p289 = pneg %p149
        %p290 = pneg %p146
        %p291 = pneg %p170
        %p292 = pneg %p167
        %p293 = pneg %p196
        %p294 = pneg %p193
        %s295 = sand.u32 %s183, 1
        %s296 = scalar_lea.sflag [#allocation4], %s295
        %s297 = sand.u32 %s183, 1
        %s298 = smul.addr %s297, 8
        %s299 = scalar_lea.vmem [#allocation3], %s298
        %p300 = pneg %p222
        %p301 = pneg %p219
        %p302 = scmp.lt.s32.totalorder %s23, 1
        %s303 = scalar_select %p302, %s23, 1
        %s304 = smul.addr %s303, 3
        %s305 = smul.addr %s304, 8
        %s306 = scalar_lea.vmem %s8, %s305
        %p307 = scmp.lt.s32.totalorder %s23, 1
        %s308 = scalar_select %p307, %s23, 1
        %s309 = smul.addr %s308, 12
        %s310 = smul.addr %s309, 4
        %s311 = scalar_lea.vmem %s0, %s310
        %p312 = scmp.lt.s32.totalorder %s23, 1
        %s313 = scalar_select %p312, %s23, 1
        %s314 = smul.addr %s313, 3
        %s315 = smul.addr %s314, 8
        %s316 = scalar_lea.vmem %s8, %s315
        %v318 = vld [vmem:[%s311] sm:$0xff]
        %v319 = vld [vmem:[%s311 + $0x8] sm:$0xff]
        %v320 = vld [vmem:[%s311 + $0x10] sm:$0xff]
        %v321 = vld [vmem:[%s311 + $0x18] sm:$0xff]
        %v322 = vld [vmem:[%s311 + $0x20] sm:$0xff]
        %v323 = vld [vmem:[%s311 + $0x28] sm:$0xff]
        %v324 = vld [vmem:[%s1] sm:$0xf]
        %v325 = vld [vmem:[%s1 + $0x4] sm:$0xf]
        %v326 = vld [vmem:[%s1 + $0x8] sm:$0xf]
        %v327 = vld [vmem:[%s1 + $0xc] sm:$0xf]
        %v328 = vld [vmem:[%s1 + $0x10] sm:$0xf]
        %v329 = vld [vmem:[%s1 + $0x14] sm:$0xf]
        %v330 = vld [vmem:[%s1 + $0x18] sm:$0xf]
        %v331 = vld [vmem:[%s1 + $0x1c] sm:$0xf]
        %v332 = vld [vmem:[%s1 + $0x20] sm:$0xf]
        %v333 = vld [vmem:[%s1 + $0x24] sm:$0xf]
        %v334 = vld [vmem:[%s1 + $0x28] sm:$0xf]
        %v335 = vld [vmem:[%s1 + $0x2c] sm:$0xf]
        %v336 = vld [vmem:[%s1 + $0x30] sm:$0xf]
        %v337 = vld [vmem:[%s1 + $0x34] sm:$0xf]
        %v338 = vld [vmem:[%s1 + $0x38] sm:$0xf]
        %v339 = vld [vmem:[%s1 + $0x3c] sm:$0xf]
        %v340 = vld [vmem:[%s1 + $0x40] sm:$0xf]
        %v341 = vld [vmem:[%s1 + $0x44] sm:$0xf]
        %v342 = vld [vmem:[%s1 + $0x48] sm:$0xf]
        %v343 = vld [vmem:[%s1 + $0x4c] sm:$0xf]
        %v344 = vld [vmem:[%s1 + $0x50] sm:$0xf]
        %v345 = vld [vmem:[%s1 + $0x54] sm:$0xf]
        %v346 = vld [vmem:[%s1 + $0x58] sm:$0xf]
        %v347 = vld [vmem:[%s1 + $0x5c] sm:$0xf]
        %v348 = vld [vmem:[%s1 + $0x60] sm:$0xf]
        %v349 = vld [vmem:[%s1 + $0x64] sm:$0xf]
        %v350 = vld [vmem:[%s1 + $0x68] sm:$0xf]
        %v351 = vld [vmem:[%s1 + $0x6c] sm:$0xf]
        %v352 = vld [vmem:[%s1 + $0x70] sm:$0xf]
        %v353 = vld [vmem:[%s1 + $0x74] sm:$0xf]
        %v354 = vld [vmem:[%s1 + $0x78] sm:$0xf]
        %v355 = vld [vmem:[%s1 + $0x7c] sm:$0xf]
        %v356 = vld [vmem:[%s1 + $0x80] sm:$0xf]
        %v357 = vld [vmem:[%s1 + $0x84] sm:$0xf]
        %v358 = vld [vmem:[%s1 + $0x88] sm:$0xf]
        %v359 = vld [vmem:[%s1 + $0x8c] sm:$0xf]
        %v360 = vld [vmem:[%s1 + $0x90] sm:$0xf]
        %v361 = vld [vmem:[%s1 + $0x94] sm:$0xf]
        %v362 = vld [vmem:[%s1 + $0x98] sm:$0xf]
        %v363 = vld [vmem:[%s1 + $0x9c] sm:$0xf]
        %v364 = vld [vmem:[%s1 + $0xa0] sm:$0xf]
        %v365 = vld [vmem:[%s1 + $0xa4] sm:$0xf]
        %v366 = vld [vmem:[%s1 + $0xa8] sm:$0xf]
        %v367 = vld [vmem:[%s1 + $0xac] sm:$0xf]
        %v368 = vld [vmem:[%s1 + $0xb0] sm:$0xf]
        %v369 = vld [vmem:[%s1 + $0xb4] sm:$0xf]
        %v370 = vld [vmem:[%s1 + $0xb8] sm:$0xf]
        %v371 = vld [vmem:[%s1 + $0xbc] sm:$0xf]
        %v372 = vld [vmem:[%s1 + $0xc0] sm:$0xf]
        %v373 = vld [vmem:[%s1 + $0xc4] sm:$0xf]
        %v374 = vld [vmem:[%s1 + $0xc8] sm:$0xf]
        %v375 = vld [vmem:[%s1 + $0xcc] sm:$0xf]
        %v376 = vld [vmem:[%s1 + $0xd0] sm:$0xf]
        %v377 = vld [vmem:[%s1 + $0xd4] sm:$0xf]
        %v378 = vld [vmem:[%s1 + $0xd8] sm:$0xf]
        %v379 = vld [vmem:[%s1 + $0xdc] sm:$0xf]
        %v380 = vld [vmem:[%s1 + $0xe0] sm:$0xf]
        %v381 = vld [vmem:[%s1 + $0xe4] sm:$0xf]
        %v382 = vld [vmem:[%s1 + $0xe8] sm:$0xf]
        %v383 = vld [vmem:[%s1 + $0xec] sm:$0xf]
        %v384 = vld [vmem:[%s1 + $0xf0] sm:$0xf]
        %v385 = vld [vmem:[%s1 + $0xf4] sm:$0xf]
        %v386 = vld [vmem:[%s1 + $0xf8] sm:$0xf]
        %v387 = vld [vmem:[%s1 + $0xfc] sm:$0xf]
        %v388 = vld [vmem:[%s1 + $0x100] sm:$0xf]
        %v389 = vld [vmem:[%s1 + $0x104] sm:$0xf]
        %v390 = vld [vmem:[%s1 + $0x108] sm:$0xf]
        %v391 = vld [vmem:[%s1 + $0x10c] sm:$0xf]
        %v392 = vld [vmem:[%s1 + $0x110] sm:$0xf]
        %v393 = vld [vmem:[%s1 + $0x114] sm:$0xf]
        %v394 = vld [vmem:[%s1 + $0x118] sm:$0xf]
        %v395 = vld [vmem:[%s1 + $0x11c] sm:$0xf]
        %v396 = vld [vmem:[%s1 + $0x120] sm:$0xf]
        %v397 = vld [vmem:[%s1 + $0x124] sm:$0xf]
        %v398 = vld [vmem:[%s1 + $0x128] sm:$0xf]
        %v399 = vld [vmem:[%s1 + $0x12c] sm:$0xf]
        %v400 = vld [vmem:[%s1 + $0x130] sm:$0xf]
        %v401 = vld [vmem:[%s1 + $0x134] sm:$0xf]
        %v402 = vld [vmem:[%s1 + $0x138] sm:$0xf]
        %v403 = vld [vmem:[%s1 + $0x13c] sm:$0xf]
        %v404 = vld [vmem:[%s1 + $0x140] sm:$0xf]
        %v405 = vld [vmem:[%s1 + $0x144] sm:$0xf]
        %v406 = vld [vmem:[%s1 + $0x148] sm:$0xf]
        %v407 = vld [vmem:[%s1 + $0x14c] sm:$0xf]
        %v408 = vld [vmem:[%s1 + $0x150] sm:$0xf]
        %v409 = vld [vmem:[%s1 + $0x154] sm:$0xf]
        %v410 = vld [vmem:[%s1 + $0x158] sm:$0xf]
        %v411 = vld [vmem:[%s1 + $0x15c] sm:$0xf]
        %v412 = vld [vmem:[%s1 + $0x160] sm:$0xf]
        %v413 = vld [vmem:[%s1 + $0x164] sm:$0xf]
        %v414 = vld [vmem:[%s1 + $0x168] sm:$0xf]
        %v415 = vld [vmem:[%s1 + $0x16c] sm:$0xf]
        %v416 = vld [vmem:[%s1 + $0x170] sm:$0xf]
        %v417 = vld [vmem:[%s1 + $0x174] sm:$0xf]
        %v418 = vld [vmem:[%s1 + $0x178] sm:$0xf]
        %v419 = vld [vmem:[%s1 + $0x17c] sm:$0xf]
        %v420 = vld [vmem:[%s2] sm:$0x1]
        %v422 = vlaneseq
        %v423 = vshrl.u32 %v422, 7
        %v424 = vsub.s32 0, %v423
        %v425 = vrot.slane %v420, %v424
        %v433 = vunpack.c.l.b16 %v318
        %v434 = vunpack.c.h.b16 %v318
        %v435 = vunpack.c.l.b16 %v319
        %v436 = vunpack.c.h.b16 %v319
        %v437 = vunpack.c.l.b16 %v320
        %v438 = vunpack.c.h.b16 %v320
        %v439 = vunpack.c.l.b16 %v321
        %v440 = vunpack.c.h.b16 %v321
        %v441 = vunpack.c.l.b16 %v322
        %v442 = vunpack.c.h.b16 %v322
        %v443 = vunpack.c.l.b16 %v323
        %v444 = vunpack.c.h.b16 %v323
        %v445 = vpack.c.b16 %v439, %v433
        %v446 = vpack.c.b16 %v440, %v434
        %v447 = vpack.c.b16 %v441, %v435
        %v448 = vpack.c.b16 %v442, %v436
        %v449 = vpack.c.b16 %v443, %v437
        %v450 = vpack.c.b16 %v444, %v438
        %v553 = vunpack.c.l.b16 %v324
        %v554 = vunpack.c.l.b16 %v325
        %v555 = vunpack.c.l.b16 %v326
        %v556 = vunpack.c.l.b16 %v327
        %v557 = vunpack.c.l.b16 %v328
        %v558 = vunpack.c.l.b16 %v329
        %v559 = vunpack.c.l.b16 %v330
        %v560 = vunpack.c.l.b16 %v331
        %v561 = vunpack.c.l.b16 %v332
        %v562 = vunpack.c.l.b16 %v333
        %v563 = vunpack.c.l.b16 %v334
        %v564 = vunpack.c.l.b16 %v335
        %v565 = vunpack.c.l.b16 %v336
        %v566 = vunpack.c.l.b16 %v337
        %v567 = vunpack.c.l.b16 %v338
        %v568 = vunpack.c.l.b16 %v339
        %v569 = vunpack.c.l.b16 %v340
        %v570 = vunpack.c.l.b16 %v341
        %v571 = vunpack.c.l.b16 %v342
        %v572 = vunpack.c.l.b16 %v343
        %v573 = vunpack.c.l.b16 %v344
        %v574 = vunpack.c.l.b16 %v345
        %v575 = vunpack.c.l.b16 %v346
        %v576 = vunpack.c.l.b16 %v347
        %v577 = vunpack.c.l.b16 %v348
        %v578 = vunpack.c.l.b16 %v349
        %v579 = vunpack.c.l.b16 %v350
        %v580 = vunpack.c.l.b16 %v351
        %v581 = vunpack.c.l.b16 %v352
        %v582 = vunpack.c.l.b16 %v353
        %v583 = vunpack.c.l.b16 %v354
        %v584 = vunpack.c.l.b16 %v355
        %v585 = vunpack.c.l.b16 %v356
        %v586 = vunpack.c.l.b16 %v357
        %v587 = vunpack.c.l.b16 %v358
        %v588 = vunpack.c.l.b16 %v359
        %v589 = vunpack.c.l.b16 %v360
        %v590 = vunpack.c.l.b16 %v361
        %v591 = vunpack.c.l.b16 %v362
        %v592 = vunpack.c.l.b16 %v363
        %v593 = vunpack.c.l.b16 %v364
        %v594 = vunpack.c.l.b16 %v365
        %v595 = vunpack.c.l.b16 %v366
        %v596 = vunpack.c.l.b16 %v367
        %v597 = vunpack.c.l.b16 %v368
        %v598 = vunpack.c.l.b16 %v369
        %v599 = vunpack.c.l.b16 %v370
        %v600 = vunpack.c.l.b16 %v371
        %v601 = vunpack.c.l.b16 %v372
        %v602 = vunpack.c.l.b16 %v373
        %v603 = vunpack.c.l.b16 %v374
        %v604 = vunpack.c.l.b16 %v375
        %v605 = vunpack.c.l.b16 %v376
        %v606 = vunpack.c.l.b16 %v377
        %v607 = vunpack.c.l.b16 %v378
        %v608 = vunpack.c.l.b16 %v379
        %v609 = vunpack.c.l.b16 %v380
        %v610 = vunpack.c.l.b16 %v381
        %v611 = vunpack.c.l.b16 %v382
        %v612 = vunpack.c.l.b16 %v383
        %v613 = vunpack.c.l.b16 %v384
        %v614 = vunpack.c.l.b16 %v385
        %v615 = vunpack.c.l.b16 %v386
        %v616 = vunpack.c.l.b16 %v387
        %v617 = vunpack.c.l.b16 %v388
        %v618 = vunpack.c.l.b16 %v389
        %v619 = vunpack.c.l.b16 %v390
        %v620 = vunpack.c.l.b16 %v391
        %v621 = vunpack.c.l.b16 %v392
        %v622 = vunpack.c.l.b16 %v393
        %v623 = vunpack.c.l.b16 %v394
        %v624 = vunpack.c.l.b16 %v395
        %v625 = vunpack.c.l.b16 %v396
        %v626 = vunpack.c.l.b16 %v397
        %v627 = vunpack.c.l.b16 %v398
        %v628 = vunpack.c.l.b16 %v399
        %v629 = vunpack.c.l.b16 %v400
        %v630 = vunpack.c.l.b16 %v401
        %v631 = vunpack.c.l.b16 %v402
        %v632 = vunpack.c.l.b16 %v403
        %v633 = vunpack.c.l.b16 %v404
        %v634 = vunpack.c.l.b16 %v405
        %v635 = vunpack.c.l.b16 %v406
        %v636 = vunpack.c.l.b16 %v407
        %v637 = vunpack.c.l.b16 %v408
        %v638 = vunpack.c.l.b16 %v409
        %v639 = vunpack.c.l.b16 %v410
        %v640 = vunpack.c.l.b16 %v411
        %v641 = vunpack.c.l.b16 %v412
        %v642 = vunpack.c.l.b16 %v413
        %v643 = vunpack.c.l.b16 %v414
        %v644 = vunpack.c.l.b16 %v415
        %v645 = vunpack.c.l.b16 %v416
        %v646 = vunpack.c.l.b16 %v417
        %v647 = vunpack.c.l.b16 %v418
        %v648 = vunpack.c.l.b16 %v419
        %v649 = vpack.c.b16 %v554, %v553
        %v650 = vpack.c.b16 %v556, %v555
        %v651 = vpack.c.b16 %v558, %v557
        %v652 = vpack.c.b16 %v560, %v559
        %v653 = vpack.c.b16 %v562, %v561
        %v654 = vpack.c.b16 %v564, %v563
        %v655 = vpack.c.b16 %v566, %v565
        %v656 = vpack.c.b16 %v568, %v567
        %v657 = vpack.c.b16 %v570, %v569
        %v658 = vpack.c.b16 %v572, %v571
        %v659 = vpack.c.b16 %v574, %v573
        %v660 = vpack.c.b16 %v576, %v575
        %v661 = vpack.c.b16 %v578, %v577
        %v662 = vpack.c.b16 %v580, %v579
        %v663 = vpack.c.b16 %v582, %v581
        %v664 = vpack.c.b16 %v584, %v583
        %v665 = vpack.c.b16 %v586, %v585
        %v666 = vpack.c.b16 %v588, %v587
        %v667 = vpack.c.b16 %v590, %v589
        %v668 = vpack.c.b16 %v592, %v591
        %v669 = vpack.c.b16 %v594, %v593
        %v670 = vpack.c.b16 %v596, %v595
        %v671 = vpack.c.b16 %v598, %v597
        %v672 = vpack.c.b16 %v600, %v599
        %v673 = vpack.c.b16 %v602, %v601
        %v674 = vpack.c.b16 %v604, %v603
        %v675 = vpack.c.b16 %v606, %v605
        %v676 = vpack.c.b16 %v608, %v607
        %v677 = vpack.c.b16 %v610, %v609
        %v678 = vpack.c.b16 %v612, %v611
        %v679 = vpack.c.b16 %v614, %v613
        %v680 = vpack.c.b16 %v616, %v615
        %v681 = vpack.c.b16 %v618, %v617
        %v682 = vpack.c.b16 %v620, %v619
        %v683 = vpack.c.b16 %v622, %v621
        %v684 = vpack.c.b16 %v624, %v623
        %v685 = vpack.c.b16 %v626, %v625
        %v686 = vpack.c.b16 %v628, %v627
        %v687 = vpack.c.b16 %v630, %v629
        %v688 = vpack.c.b16 %v632, %v631
        %v689 = vpack.c.b16 %v634, %v633
        %v690 = vpack.c.b16 %v636, %v635
        %v691 = vpack.c.b16 %v638, %v637
        %v692 = vpack.c.b16 %v640, %v639
        %v693 = vpack.c.b16 %v642, %v641
        %v694 = vpack.c.b16 %v644, %v643
        %v695 = vpack.c.b16 %v646, %v645
        %v696 = vpack.c.b16 %v648, %v647
        %745 = vmatprep.subr.bf16.mxu0 0
        %746 = vmatpush1.bf16.msra.mxu0 %v649
        %747 = vmatprep.subr.bf16.mxu0 0
        %748 = vmatpush1.bf16.msra.mxu0 %v650
        %749 = vmatprep.subr.bf16.mxu0 0
        %750 = vmatpush1.bf16.msra.mxu0 %v651
        %751 = vmatprep.subr.bf16.mxu0 0
        %752 = vmatpush1.bf16.msra.mxu0 %v652
        %753 = vmatprep.subr.bf16.mxu0 0
        %754 = vmatpush1.bf16.msra.mxu0 %v653
        %755 = vmatprep.subr.bf16.mxu0 0
        %756 = vmatpush1.bf16.msra.mxu0 %v654
        %757 = vmatprep.subr.bf16.mxu0 0
        %758 = vmatpush1.bf16.msra.mxu0 %v655
        %759 = vmatprep.subr.bf16.mxu0 0
        %760 = vmatpush1.bf16.msra.mxu0 %v656
        %761 = vmatprep.subr.bf16.mxu0 0
        %762 = vmatpush1.bf16.msra.mxu0 %v657
        %763 = vmatprep.subr.bf16.mxu0 0
        %764 = vmatpush1.bf16.msra.mxu0 %v658
        %765 = vmatprep.subr.bf16.mxu0 0
        %766 = vmatpush1.bf16.msra.mxu0 %v659
        %767 = vmatprep.subr.bf16.mxu0 0
        %768 = vmatpush1.bf16.msra.mxu0 %v660
        %769 = vmatprep.subr.bf16.mxu0 0
        %770 = vmatpush1.bf16.msra.mxu0 %v661
        %771 = vmatprep.subr.bf16.mxu0 0
        %772 = vmatpush1.bf16.msra.mxu0 %v662
        %773 = vmatprep.subr.bf16.mxu0 0
        %774 = vmatpush1.bf16.msra.mxu0 %v663
        %775 = vmatprep.subr.bf16.mxu0 0
        %776 = vmatpush1.bf16.msra.mxu0 %v664
        %777 = vmatprep.mubr.bf16.mxu0 %v446
        %778 = vmatmul.mubr.bf16.gmra.mrb[0].mxu0 %v445
        %v779 = vpop.f32.mrb[0].mxu0
        %v780 = vadd.f32 %v425, %v779
        %v781 = vpop.f32.mrb[0].mxu0
        %v782 = vpop.f32.mrb[0].mxu0
        %v783 = vadd.f32 %v425, %v782
        %v784 = vpop.f32.mrb[0].mxu0
        %785 = vdwg.mxu0
        %786 = vmatprep.subr.bf16.mxu0 0
        %787 = vmatpush1.bf16.msra.mxu0 %v665
        %788 = vmatprep.subr.bf16.mxu0 0
        %789 = vmatpush1.bf16.msra.mxu0 %v666
        %790 = vmatprep.subr.bf16.mxu0 0
        %791 = vmatpush1.bf16.msra.mxu0 %v667
        %792 = vmatprep.subr.bf16.mxu0 0
        %793 = vmatpush1.bf16.msra.mxu0 %v668
        %794 = vmatprep.subr.bf16.mxu0 0
        %795 = vmatpush1.bf16.msra.mxu0 %v669
        %796 = vmatprep.subr.bf16.mxu0 0
        %797 = vmatpush1.bf16.msra.mxu0 %v670
        %798 = vmatprep.subr.bf16.mxu0 0
        %799 = vmatpush1.bf16.msra.mxu0 %v671
        %800 = vmatprep.subr.bf16.mxu0 0
        %801 = vmatpush1.bf16.msra.mxu0 %v672
        %802 = vmatprep.subr.bf16.mxu0 0
        %803 = vmatpush1.bf16.msra.mxu0 %v673
        %804 = vmatprep.subr.bf16.mxu0 0
        %805 = vmatpush1.bf16.msra.mxu0 %v674
        %806 = vmatprep.subr.bf16.mxu0 0
        %807 = vmatpush1.bf16.msra.mxu0 %v675
        %808 = vmatprep.subr.bf16.mxu0 0
        %809 = vmatpush1.bf16.msra.mxu0 %v676
        %810 = vmatprep.subr.bf16.mxu0 0
        %811 = vmatpush1.bf16.msra.mxu0 %v677
        %812 = vmatprep.subr.bf16.mxu0 0
        %813 = vmatpush1.bf16.msra.mxu0 %v678
        %814 = vmatprep.subr.bf16.mxu0 0
        %815 = vmatpush1.bf16.msra.mxu0 %v679
        %816 = vmatprep.subr.bf16.mxu0 0
        %817 = vmatpush1.bf16.msra.mxu0 %v680
        %818 = vmatprep.mubr.bf16.mxu0 %v448
        %819 = vmatmul.mubr.bf16.gmra.mrb[0].mxu0 %v447
        %v820 = vpop.f32.mrb[0].mxu0
        %v821 = vadd.f32 %v780, %v820
        %v822 = vpop.f32.mrb[0].mxu0
        %v823 = vpop.f32.mrb[0].mxu0
        %v824 = vadd.f32 %v783, %v823
        %v825 = vpop.f32.mrb[0].mxu0
        %826 = vdwg.mxu0
        %827 = vmatprep.subr.bf16.mxu0 0
        %828 = vmatpush1.bf16.msra.mxu0 %v681
        %829 = vmatprep.subr.bf16.mxu0 0
        %830 = vmatpush1.bf16.msra.mxu0 %v682
        %831 = vmatprep.subr.bf16.mxu0 0
        %832 = vmatpush1.bf16.msra.mxu0 %v683
        %833 = vmatprep.subr.bf16.mxu0 0
        %834 = vmatpush1.bf16.msra.mxu0 %v684
        %835 = vmatprep.subr.bf16.mxu0 0
        %836 = vmatpush1.bf16.msra.mxu0 %v685
        %837 = vmatprep.subr.bf16.mxu0 0
        %838 = vmatpush1.bf16.msra.mxu0 %v686
        %839 = vmatprep.subr.bf16.mxu0 0
        %840 = vmatpush1.bf16.msra.mxu0 %v687
        %841 = vmatprep.subr.bf16.mxu0 0
        %842 = vmatpush1.bf16.msra.mxu0 %v688
        %843 = vmatprep.subr.bf16.mxu0 0
        %844 = vmatpush1.bf16.msra.mxu0 %v689
        %845 = vmatprep.subr.bf16.mxu0 0
        %846 = vmatpush1.bf16.msra.mxu0 %v690
        %847 = vmatprep.subr.bf16.mxu0 0
        %848 = vmatpush1.bf16.msra.mxu0 %v691
        %849 = vmatprep.subr.bf16.mxu0 0
        %850 = vmatpush1.bf16.msra.mxu0 %v692
        %851 = vmatprep.subr.bf16.mxu0 0
        %852 = vmatpush1.bf16.msra.mxu0 %v693
        %853 = vmatprep.subr.bf16.mxu0 0
        %854 = vmatpush1.bf16.msra.mxu0 %v694
        %855 = vmatprep.subr.bf16.mxu0 0
        %856 = vmatpush1.bf16.msra.mxu0 %v695
        %857 = vmatprep.subr.bf16.mxu0 0
        %858 = vmatpush1.bf16.msra.mxu0 %v696
        %859 = vmatprep.mubr.bf16.mxu0 %v450
        %860 = vmatmul.mubr.bf16.gmra.mrb[0].mxu0 %v449
        %v861 = vpop.f32.mrb[0].mxu0
        %v862 = vadd.f32 %v821, %v861
        %v863 = vpop.f32.mrb[0].mxu0
        %v864 = vpop.f32.mrb[0].mxu0
        %v865 = vadd.f32 %v824, %v864
        %v866 = vpop.f32.mrb[0].mxu0
        %867 = vdwg.mxu0
        %v868 = vmax.f32 %v862, 0.0
        %v869 = vmax.f32 %v865, 0.0
        %v870 = vpack.c.bf16 %v869, %v868
        %v872 = vunpack.c.l.b16 %v870
        %v873 = vunpack.c.h.b16 %v870
        %v874 = vpack.c.b16 %v872, %v872
        %v875 = vpack.c.b16 %v873, %v873
        %vm878 = vcmask 257024
        %879 = vst.msk [vmem:[%s299] sm:$0xf] %vm878, %v874
        %880 = vst.msk [vmem:[%s299 + $0x4] sm:$0xf] %vm878, %v875
        %881 = vst.msk [vmem:[#allocation2] sm:$0xf] %vm878, 0
        %882 = vst.msk [vmem:[#allocation2 + $0x4] sm:$0xf] %vm878, 0
        %883 = vst.msk [vmem:[#allocation2 + $0x8] sm:$0xf] %vm878, 0
        %884 = vst.msk [vmem:[#allocation2 + $0xc] sm:$0xf] %vm878, 0
        %vm885 = vcmask 256000
        %886 = vst.msk [vmem:[#allocation2 + $0x10] sm:$0x7] %vm885, 0
        %v888 = vshll.u32 %v874, 16
        %v890 = vrot.slane %v888, 5
        %v891 = vshrl.u32 %v874, 16
        %v893 = vrot.slane %v891, 4
        %v894 = vor.u32 %v893, %v890
        %v895 = vrot.slane %v894, 4
        %vm898 = vcmask 257027
        %vm899 = vsmask.f32 7950
        %vm900 = vmand %vm898, %vm899
        %v901 = vld [vmem:[#allocation2] sm:$0x8]
        %v902 = vsel %vm900, %v890, %v901
        %903 = vst [vmem:[#allocation2] sm:$0x8] %v902
        %vm904 = vcmask 254976
        %vm905 = vsmask.f32 1280
        %vm906 = vmand %vm904, %vm905
        %v907 = vld [vmem:[#allocation2 + $0x4] sm:$0x3]
        %v908 = vsel %vm906, %v895, %v907
        %909 = vst [vmem:[#allocation2 + $0x4] sm:$0x3] %v908
        %v910 = vrot.slane %v891, 7
        %v911 = vor.u32 %v910, %v888
        %v912 = vrot.slane %v910, 4
        %vm915 = vcmask 257026
        %vm916 = vsmask.f32 7946
        %vm917 = vmand %vm915, %vm916
        %v918 = vld [vmem:[#allocation2 + $0x4] sm:$0xc]
        %v919 = vsel %vm917, %v911, %v918
        %920 = vst [vmem:[#allocation2 + $0x4] sm:$0xc] %v919
        %vm921 = vcmask 253952
        %vm922 = vsmask.f32 256
        %vm923 = vmand %vm921, %vm922
        %v924 = vld [vmem:[#allocation2 + $0x8] sm:$0x1]
        %v925 = vsel %vm923, %v912, %v924
        %926 = vst [vmem:[#allocation2 + $0x8] sm:$0x1] %v925
        %v928 = vshrl.u32 %v875, 16
        %v930 = vrot.slane %v928, 6
        %v931 = vshll.u32 %v875, 16
        %v933 = vrot.slane %v931, 7
        %v934 = vor.u32 %v930, %v933
        %vm936 = vcmask 257025
        %vm937 = vsmask.f32 3334
        %vm938 = vmand %vm936, %vm937
        %v939 = vld [vmem:[#allocation2 + $0x8] sm:$0xe]
        %v940 = vsel %vm938, %v934, %v939
        %941 = vst [vmem:[#allocation2 + $0x8] sm:$0xe] %v940
        %v942 = vrot.slane %v928, 5
        %v943 = vrot.slane %v931, 6
        %v944 = vor.u32 %v942, %v943
        %v945 = vrot.slane %v944, 4
        %vm947 = vcmask 256000
        %vm948 = vsmask.f32 2306
        %vm949 = vmand %vm947, %vm948
        %v950 = vld [vmem:[#allocation2 + $0xc] sm:$0x7]
        %v951 = vsel %vm949, %v945, %v950
        %952 = vst [vmem:[#allocation2 + $0xc] sm:$0x7] %v951
        %v953 = vld [vmem:[#allocation2] sm:$0xf]
        %v954 = vld [vmem:[#allocation2 + $0x4] sm:$0xf]
        %v955 = vld [vmem:[#allocation2 + $0x8] sm:$0xf]
        %v956 = vld [vmem:[#allocation2 + $0xc] sm:$0x1]
        %v957 = vld [vmem:[#allocation2] sm:$0xe]
        %v958 = vld [vmem:[#allocation2] sm:$0x8]
        %v959 = vld [vmem:[#allocation2 + $0xc] sm:$0x7]
        %v960 = vld [vmem:[#allocation2 + $0xc] sm:$0xf]
        %v961 = vld [vmem:[#allocation2 + $0x4] sm:$0xc]
        %v962 = vld [vmem:[#allocation2 + $0x10] sm:$0x3]
        %v963 = vld [vmem:[#allocation2 + $0x10] sm:$0x7]
        %v964 = vld [vmem:[#allocation2 + $0x4] sm:$0x8]
        %v968 = vunpack.c.l.b16 %v953
        %v969 = vunpack.c.l.b16 %v954
        %v970 = vunpack.c.l.b16 %v955
        %v971 = vpack.c.b16 %v969, %v968
        %v972 = vpack.c.b16 %v970, %v970
        %v974 = vunpack.c.l.b16 %v956
        %v975 = vpack.c.b16 %v974, %v970
        %vm976 = vsmask.f32 7424
        %v978 = vshrl.u32 %v971, 16
        %v980 = vshll.u32 %v971, 16
        %v982 = vrot.slane %v980, 1
        %v983 = vor.u32 %v978, %v982
        %v985 = vshll.u32 %v975, 16
        %v987 = vrot.slane %v985, 1
        %v988 = vsel %vm976, %v983, %v987
        %v989 = vshrl.u32 %v975, 16
        %v991 = vor.u32 %v989, %v987
        %992 = vrot.lane.b32.xlu0 %v988, 32
        %v993 = vpop.permute.xlu0 %992
        %994 = vrot.lane.b32.xlu0 %v991, 32
        %v995 = vpop.permute.xlu0 %994
        %v997 = vunpack.c.l.b16 %v957
        %v998 = vpack.c.b16 %v969, %v997
        %vm999 = vcmask 1046528
        %v1000 = vrot.slane %v998, 1
        %v1001 = vrot.slane %v975, 1
        %v1002 = vsel %vm999, %v1000, %v1001
        %1003 = vrot.lane.b32.xlu0 %v1002, 64
        %v1004 = vpop.permute.xlu0 %1003
        %1005 = vrot.lane.b32.xlu0 %v1001, 64
        %v1006 = vpop.permute.xlu0 %1005
        %v1009 = vunpack.c.l.b16 %v958
        %v1010 = vunpack.c.l.b16 %v959
        %v1011 = vpack.c.b16 %v969, %v1009
        %v1012 = vpack.c.b16 %v1010, %v970
        %vm1013 = vcmask 1044480
        %v1014 = vrot.slane %v1011, 3
        %v1015 = vrot.slane %v1012, 3
        %v1016 = vsel %vm1013, %v1014, %v1015
        %1017 = vrot.lane.b32.xlu0 %v1016, 96
        %v1018 = vpop.permute.xlu0 %1017
        %1019 = vrot.lane.b32.xlu0 %v1015, 96
        %v1020 = vpop.permute.xlu0 %1019
        %v1022 = vunpack.c.l.b16 %v960
        %v1023 = vpack.c.b16 %v1022, %v970
        %vm1024 = vsmask.f32 4352
        %v1026 = vshrl.u32 %v1011, 16
        %v1028 = vrot.slane %v1026, 3
        %v1029 = vshll.u32 %v1011, 16
        %v1031 = vrot.slane %v1029, 4
        %v1032 = vor.u32 %v1028, %v1031
        %v1034 = vshrl.u32 %v1023, 16
        %v1036 = vrot.slane %v1034, 3
        %v1037 = vshll.u32 %v1023, 16
        %v1039 = vrot.slane %v1037, 4
        %v1040 = vor.u32 %v1036, %v1039
        %v1041 = vsel %vm1024, %v1032, %v1040
        %v1042 = vpack.c.b16 %v970, %v969
        %v1043 = vpack.c.b16 %v1022, %v1022
        %1044 = vrot.lane.b32.xlu0 %v1042, 32
        %v1045 = vpop.permute.xlu0 %1044
        %1046 = vrot.lane.b32.xlu0 %v1043, 32
        %v1047 = vpop.permute.xlu0 %1046
        %v1050 = vunpack.c.l.b16 %v961
        %v1051 = vunpack.c.l.b16 %v962
        %v1052 = vpack.c.b16 %v970, %v1050
        %v1053 = vpack.c.b16 %v1051, %v1022
        %vm1054 = vcmask 1045504
        %v1055 = vrot.slane %v1052, 2
        %v1056 = vrot.slane %v1053, 2
        %v1057 = vsel %vm1054, %v1055, %v1056
        %1058 = vrot.lane.b32.xlu0 %v1057, 64
        %v1059 = vpop.permute.xlu0 %1058
        %1060 = vrot.lane.b32.xlu0 %v1056, 64
        %v1061 = vpop.permute.xlu0 %1060
        %v1063 = vunpack.c.l.b16 %v963
        %v1064 = vpack.c.b16 %v1063, %v1022
        %vm1065 = vsmask.f32 5376
        %v1067 = vshrl.u32 %v1052, 16
        %v1069 = vrot.slane %v1067, 2
        %v1070 = vshll.u32 %v1052, 16
        %v1072 = vrot.slane %v1070, 3
        %v1073 = vor.u32 %v1069, %v1072
        %v1075 = vshrl.u32 %v1064, 16
        %v1077 = vrot.slane %v1075, 2
        %v1078 = vshll.u32 %v1064, 16
        %v1080 = vrot.slane %v1078, 3
        %v1081 = vor.u32 %v1077, %v1080
        %v1082 = vsel %vm1065, %v1073, %v1081
        %1083 = vrot.lane.b32.xlu0 %v1082, 96
        %v1084 = vpop.permute.xlu0 %1083
        %1085 = vrot.lane.b32.xlu0 %v1081, 96
        %v1086 = vpop.permute.xlu0 %1085
        %v1088 = vunpack.c.l.b16 %v964
        %v1089 = vpack.c.b16 %v970, %v1088
        %v1090 = vrot.slane %v1089, 3
        %v1091 = vrot.slane %v1064, 3
        %v1092 = vsel %vm1013, %v1090, %v1091
        %vm1093 = vcmask 261120
        %v1095 = vsel %vm1093, %v971, %v993
        %v1098 = vsel %vm1093, %v972, %v995
        %vm1099 = vcmask 523264
        %v1101 = vsel %vm1099, %v1095, %v1004
        %v1103 = vsel %vm1099, %v1098, %v1006
        %vm1104 = vcmask 785408
        %v1106 = vsel %vm1104, %v1101, %v1018
        %v1109 = vsel %vm1104, %v1103, %v1020
        %v1113 = vsel %vm1093, %v1041, %v1045
        %v1116 = vsel %vm1093, %v1040, %v1047
        %v1118 = vsel %vm1099, %v1113, %v1059
        %v1120 = vsel %vm1099, %v1116, %v1061
        %v1122 = vsel %vm1104, %v1118, %v1084
        %v1125 = vsel %vm1104, %v1120, %v1086
        %v1127 = vld [vmem:[%s3] sm:$0xf]
        %v1128 = vld [vmem:[%s3 + $0x4] sm:$0xf]
        %v1129 = vld [vmem:[%s3 + $0x8] sm:$0xf]
        %v1130 = vld [vmem:[%s3 + $0xc] sm:$0xf]
        %v1131 = vld [vmem:[%s3 + $0x10] sm:$0xf]
        %v1132 = vld [vmem:[%s3 + $0x14] sm:$0xf]
        %v1133 = vld [vmem:[%s3 + $0x18] sm:$0xf]
        %v1134 = vld [vmem:[%s3 + $0x1c] sm:$0xf]
        %v1135 = vld [vmem:[%s3 + $0x20] sm:$0xf]
        %v1136 = vld [vmem:[%s3 + $0x24] sm:$0xf]
        %v1137 = vld [vmem:[%s3 + $0x28] sm:$0xf]
        %v1138 = vld [vmem:[%s3 + $0x2c] sm:$0xf]
        %v1139 = vld [vmem:[%s3 + $0x30] sm:$0xf]
        %v1140 = vld [vmem:[%s3 + $0x34] sm:$0xf]
        %v1141 = vld [vmem:[%s3 + $0x38] sm:$0xf]
        %v1142 = vld [vmem:[%s3 + $0x3c] sm:$0xf]
        %v1143 = vld [vmem:[%s3 + $0x40] sm:$0xf]
        %v1144 = vld [vmem:[%s3 + $0x44] sm:$0xf]
        %v1145 = vld [vmem:[%s3 + $0x48] sm:$0xf]
        %v1146 = vld [vmem:[%s3 + $0x4c] sm:$0xf]
        %v1147 = vld [vmem:[%s3 + $0x50] sm:$0xf]
        %v1148 = vld [vmem:[%s3 + $0x54] sm:$0xf]
        %v1149 = vld [vmem:[%s3 + $0x58] sm:$0xf]
        %v1150 = vld [vmem:[%s3 + $0x5c] sm:$0xf]
        %v1151 = vld [vmem:[%s3 + $0x60] sm:$0xf]
        %v1152 = vld [vmem:[%s3 + $0x64] sm:$0xf]
        %v1153 = vld [vmem:[%s3 + $0x68] sm:$0xf]
        %v1154 = vld [vmem:[%s3 + $0x6c] sm:$0xf]
        %v1155 = vld [vmem:[%s3 + $0x70] sm:$0xf]
        %v1156 = vld [vmem:[%s3 + $0x74] sm:$0xf]
        %v1157 = vld [vmem:[%s3 + $0x78] sm:$0xf]
        %v1158 = vld [vmem:[%s3 + $0x7c] sm:$0xf]
        %v1159 = vld [vmem:[%s3 + $0x80] sm:$0xf]
        %v1160 = vld [vmem:[%s3 + $0x84] sm:$0xf]
        %v1161 = vld [vmem:[%s3 + $0x88] sm:$0xf]
        %v1162 = vld [vmem:[%s3 + $0x8c] sm:$0xf]
        %v1163 = vld [vmem:[%s4] sm:$0x1]
        %v1165 = vlaneseq
        %v1166 = vshrl.u32 %v1165, 7
        %v1167 = vsub.s32 0, %v1166
        %v1168 = vrot.slane %v1163, %v1167
        %v1206 = vunpack.c.l.b16 %v1127
        %v1207 = vunpack.c.l.b16 %v1128
        %v1208 = vunpack.c.l.b16 %v1129
        %v1209 = vunpack.c.l.b16 %v1130
        %v1210 = vunpack.c.l.b16 %v1131
        %v1211 = vunpack.c.l.b16 %v1132
        %v1212 = vunpack.c.l.b16 %v1133
        %v1213 = vunpack.c.l.b16 %v1134
        %v1214 = vunpack.c.l.b16 %v1135
        %v1215 = vunpack.c.l.b16 %v1136
        %v1216 = vunpack.c.l.b16 %v1137
        %v1217 = vunpack.c.l.b16 %v1138
        %v1218 = vunpack.c.l.b16 %v1139
        %v1219 = vunpack.c.l.b16 %v1140
        %v1220 = vunpack.c.l.b16 %v1141
        %v1221 = vunpack.c.l.b16 %v1142
        %v1222 = vunpack.c.l.b16 %v1143
        %v1223 = vunpack.c.l.b16 %v1144
        %v1224 = vunpack.c.l.b16 %v1145
        %v1225 = vunpack.c.l.b16 %v1146
        %v1226 = vunpack.c.l.b16 %v1147
        %v1227 = vunpack.c.l.b16 %v1148
        %v1228 = vunpack.c.l.b16 %v1149
        %v1229 = vunpack.c.l.b16 %v1150
        %v1230 = vunpack.c.l.b16 %v1151
        %v1231 = vunpack.c.l.b16 %v1152
        %v1232 = vunpack.c.l.b16 %v1153
        %v1233 = vunpack.c.l.b16 %v1154
        %v1234 = vunpack.c.l.b16 %v1155
        %v1235 = vunpack.c.l.b16 %v1156
        %v1236 = vunpack.c.l.b16 %v1157
        %v1237 = vunpack.c.l.b16 %v1158
        %v1238 = vunpack.c.l.b16 %v1159
        %v1239 = vunpack.c.l.b16 %v1160
        %v1240 = vunpack.c.l.b16 %v1161
        %v1241 = vunpack.c.l.b16 %v1162
        %v1242 = vpack.c.b16 %v1207, %v1206
        %v1243 = vpack.c.b16 %v1209, %v1208
        %v1244 = vpack.c.b16 %v1211, %v1210
        %v1245 = vpack.c.b16 %v1213, %v1212
        %v1246 = vpack.c.b16 %v1215, %v1214
        %v1247 = vpack.c.b16 %v1217, %v1216
        %v1248 = vpack.c.b16 %v1219, %v1218
        %v1249 = vpack.c.b16 %v1221, %v1220
        %v1250 = vpack.c.b16 %v1223, %v1222
        %v1251 = vpack.c.b16 %v1225, %v1224
        %v1252 = vpack.c.b16 %v1227, %v1226
        %v1253 = vpack.c.b16 %v1229, %v1228
        %v1254 = vpack.c.b16 %v1231, %v1230
        %v1255 = vpack.c.b16 %v1233, %v1232
        %v1256 = vpack.c.b16 %v1235, %v1234
        %v1257 = vpack.c.b16 %v1237, %v1236
        %v1258 = vpack.c.b16 %v1239, %v1238
        %v1259 = vpack.c.b16 %v1241, %v1240
        %v1279 = vsel %vm1093, %v1092, 0
        %v1282 = vsel %vm1093, %v1091, 0
        %1284 = vmatprep.subr.bf16.mxu0 0
        %1285 = vmatpush1.bf16.msra.mxu0 %v1242
        %1286 = vmatprep.subr.bf16.mxu0 0
        %1287 = vmatpush1.bf16.msra.mxu0 %v1243
        %1288 = vmatprep.subr.bf16.mxu0 0
        %1289 = vmatpush1.bf16.msra.mxu0 %v1244
        %1290 = vmatprep.subr.bf16.mxu0 0
        %1291 = vmatpush1.bf16.msra.mxu0 %v1245
        %1292 = vmatprep.subr.bf16.mxu0 0
        %1293 = vmatpush1.bf16.msra.mxu0 %v1246
        %1294 = vmatprep.subr.bf16.mxu0 0
        %1295 = vmatpush1.bf16.msra.mxu0 %v1247
        %1296 = vmatprep.subr.bf16.mxu0 0
        %1297 = vmatpush1.bf16.msra.mxu0 %v1248
        %1298 = vmatprep.subr.bf16.mxu0 0
        %1299 = vmatpush1.bf16.msra.mxu0 %v1249
        %1300 = vmatprep.subr.bf16.mxu0 0
        %1301 = vmatpush1.bf16.msra.mxu0 %v1250
        %1302 = vmatprep.subr.bf16.mxu0 0
        %1303 = vmatpush1.bf16.msra.mxu0 %v1251
        %1304 = vmatprep.subr.bf16.mxu0 0
        %1305 = vmatpush1.bf16.msra.mxu0 %v1252
        %1306 = vmatprep.subr.bf16.mxu0 0
        %1307 = vmatpush1.bf16.msra.mxu0 %v1253
        %1308 = vmatprep.subr.bf16.mxu0 0
        %1309 = vmatpush1.bf16.msra.mxu0 %v1254
        %1310 = vmatprep.subr.bf16.mxu0 0
        %1311 = vmatpush1.bf16.msra.mxu0 %v1255
        %1312 = vmatprep.subr.bf16.mxu0 0
        %1313 = vmatpush1.bf16.msra.mxu0 %v1256
        %1314 = vmatprep.subr.bf16.mxu0 0
        %1315 = vmatpush1.bf16.msra.mxu0 %v1257
        %1316 = vmatprep.mubr.bf16.mxu0 %v1122
        %1317 = vmatmul.mubr.bf16.gmra.mrb[0].mxu0 %v1106
        %v1318 = vpop.f32.mrb[0].mxu0
        %v1319 = vadd.f32 %v1168, %v1318
        %v1320 = vpop.f32.mrb[0].mxu0
        %v1321 = vpop.f32.mrb[0].mxu0
        %v1322 = vadd.f32 %v1168, %v1321
        %v1323 = vpop.f32.mrb[0].mxu0
        %1324 = vmatprep.mubr.bf16.mxu0 %v1125
        %1325 = vmatmul.mubr.bf16.gmra.mrb[0].mxu0 %v1109
        %v1326 = vpop.f32.mrb[0].mxu0
        %v1327 = vadd.f32 %v1168, %v1326
        %v1328 = vpop.f32.mrb[0].mxu0
        %v1329 = vpop.f32.mrb[0].mxu0
        %v1330 = vpop.f32.mrb[0].mxu0
        %1331 = vdwg.mxu0
        %1332 = vmatprep.subr.bf16.mxu0 0
        %1333 = vmatpush1.bf16.msra.mxu0 %v1258
        %1334 = vmatprep.subr.bf16.mxu0 0
        %1335 = vmatpush1.bf16.msra.mxu0 %v1259
        %1336 = vmatprep.subr.bf16.mxu0 0
        %1337 = vmatpush1.bf16.msra.mxu0 0
        %1338 = vmatprep.subr.bf16.mxu0 0
        %1339 = vmatpush1.bf16.msra.mxu0 0
        %1340 = vmatprep.subr.bf16.mxu0 0
        %1341 = vmatpush1.bf16.msra.mxu0 0
        %1342 = vmatprep.subr.bf16.mxu0 0
        %1343 = vmatpush1.bf16.msra.mxu0 0
        %1344 = vmatprep.subr.bf16.mxu0 0
        %1345 = vmatpush1.bf16.msra.mxu0 0
        %1346 = vmatprep.subr.bf16.mxu0 0
        %1347 = vmatpush1.bf16.msra.mxu0 0
        %1348 = vmatprep.subr.bf16.mxu0 0
        %1349 = vmatpush1.bf16.msra.mxu0 0
        %1350 = vmatprep.subr.bf16.mxu0 0
        %1351 = vmatpush1.bf16.msra.mxu0 0
        %1352 = vmatprep.subr.bf16.mxu0 0
        %1353 = vmatpush1.bf16.msra.mxu0 0
        %1354 = vmatprep.subr.bf16.mxu0 0
        %1355 = vmatpush1.bf16.msra.mxu0 0
        %1356 = vmatprep.subr.bf16.mxu0 0
        %1357 = vmatpush1.bf16.msra.mxu0 0
        %1358 = vmatprep.subr.bf16.mxu0 0
        %1359 = vmatpush1.bf16.msra.mxu0 0
        %1360 = vmatprep.subr.bf16.mxu0 0
        %1361 = vmatpush1.bf16.msra.mxu0 0
        %1362 = vmatprep.subr.bf16.mxu0 0
        %1363 = vmatpush1.bf16.msra.mxu0 0
        %1364 = vmatprep.mubr.bf16.mxu0 0
        %1365 = vmatmul.mubr.bf16.gmra.mrb[0].mxu0 %v1279
        %v1366 = vpop.f32.mrb[0].mxu0
        %v1367 = vadd.f32 %v1319, %v1366
        %v1368 = vpop.f32.mrb[0].mxu0
        %v1369 = vpop.f32.mrb[0].mxu0
        %v1370 = vadd.f32 %v1322, %v1369
        %v1371 = vpop.f32.mrb[0].mxu0
        %1372 = vmatprep.mubr.bf16.mxu0 0
        %1373 = vmatmul.mubr.bf16.gmra.mrb[0].mxu0 %v1282
        %v1374 = vpop.f32.mrb[0].mxu0
        %v1375 = vadd.f32 %v1327, %v1374
        %v1376 = vpop.f32.mrb[0].mxu0
        %v1377 = vpop.f32.mrb[0].mxu0
        %v1378 = vpop.f32.mrb[0].mxu0
        %1379 = vdwg.mxu0
        %v1380 = vmax.f32 %v1367, 0.0
        %v1381 = vmax.f32 %v1370, 0.0
        %v1382 = vmax.f32 %v1375, 0.0
        %v1383 = vpack.c.bf16 %v1381, %v1380
        %v1384 = vpack.c.bf16 %v1382, %v1382
        %v1385 = vld [vmem:[%s5] sm:$0xf]
        %v1386 = vld [vmem:[%s5 + $0x4] sm:$0xf]
        %v1387 = vld [vmem:[%s5 + $0x8] sm:$0xf]
        %v1388 = vld [vmem:[%s5 + $0xc] sm:$0xf]
        %v1389 = vld [vmem:[%s6] sm:$0x1]
        %v1391 = vlaneseq
        %v1392 = vshrl.u32 %v1391, 7
        %v1393 = vsub.s32 0, %v1392
        %v1394 = vrot.slane %v1389, %v1393
        %v1400 = vunpack.c.l.b16 %v1385
        %v1401 = vunpack.c.l.b16 %v1386
        %v1402 = vunpack.c.l.b16 %v1387
        %v1403 = vunpack.c.l.b16 %v1388
        %v1404 = vpack.c.b16 %v1401, %v1400
        %v1405 = vpack.c.b16 %v1403, %v1402
        %v1409 = vsel %vm1093, %v1383, 0
        %v1412 = vsel %vm1093, %v1384, 0
        %1414 = vmatprep.subr.bf16.mxu0 0
        %1415 = vmatpush1.bf16.msra.mxu0 %v1404
        %1416 = vmatprep.subr.bf16.mxu0 0
        %1417 = vmatpush1.bf16.msra.mxu0 %v1405
        %1418 = vmatprep.subr.bf16.mxu0 0
        %1419 = vmatpush1.bf16.msra.mxu0 0
        %1420 = vmatprep.subr.bf16.mxu0 0
        %1421 = vmatpush1.bf16.msra.mxu0 0
        %1422 = vmatprep.subr.bf16.mxu0 0
        %1423 = vmatpush1.bf16.msra.mxu0 0
        %1424 = vmatprep.subr.bf16.mxu0 0
        %1425 = vmatpush1.bf16.msra.mxu0 0
        %1426 = vmatprep.subr.bf16.mxu0 0
        %1427 = vmatpush1.bf16.msra.mxu0 0
        %1428 = vmatprep.subr.bf16.mxu0 0
        %1429 = vmatpush1.bf16.msra.mxu0 0
        %1430 = vmatprep.subr.bf16.mxu0 0
        %1431 = vmatpush1.bf16.msra.mxu0 0
        %1432 = vmatprep.subr.bf16.mxu0 0
        %1433 = vmatpush1.bf16.msra.mxu0 0
        %1434 = vmatprep.subr.bf16.mxu0 0
        %1435 = vmatpush1.bf16.msra.mxu0 0
        %1436 = vmatprep.subr.bf16.mxu0 0
        %1437 = vmatpush1.bf16.msra.mxu0 0
        %1438 = vmatprep.subr.bf16.mxu0 0
        %1439 = vmatpush1.bf16.msra.mxu0 0
        %1440 = vmatprep.subr.bf16.mxu0 0
        %1441 = vmatpush1.bf16.msra.mxu0 0
        %1442 = vmatprep.subr.bf16.mxu0 0
        %1443 = vmatpush1.bf16.msra.mxu0 0
        %1444 = vmatprep.subr.bf16.mxu0 0
        %1445 = vmatpush1.bf16.msra.mxu0 0
        %1446 = vmatprep.mubr.bf16.mxu0 0
        %1447 = vmatmul.mubr.bf16.gmra.mrb[0].mxu0 %v1409
        %v1448 = vpop.f32.mrb[0].mxu0
        %v1449 = vadd.f32 %v1394, %v1448
        %v1450 = vpop.f32.mrb[0].mxu0
        %v1451 = vpop.f32.mrb[0].mxu0
        %v1452 = vadd.f32 %v1394, %v1451
        %v1453 = vpop.f32.mrb[0].mxu0
        %1454 = vmatprep.mubr.bf16.mxu0 0
        %1455 = vmatmul.mubr.bf16.gmra.mrb[0].mxu0 %v1412
        %v1456 = vpop.f32.mrb[0].mxu0
        %v1457 = vadd.f32 %v1394, %v1456
        %v1458 = vpop.f32.mrb[0].mxu0
        %v1459 = vpop.f32.mrb[0].mxu0
        %v1460 = vpop.f32.mrb[0].mxu0
        %1461 = vdwg.mxu0
        %1462 = vst [vmem:[%s316] sm:$0xff] %v1449
        %1463 = vst [vmem:[%s316 + $0x8] sm:$0xff] %v1452
        %1464 = vst [vmem:[%s316 + $0x10] sm:$0xff] %v1457
        %s1465 = sand.u32 %s183, 1
        %s1466 = scalar_lea.sflag [#allocation4], %s1465
        %s1467 = sand.u32 %s183, 1
        %s1468 = smul.addr %s1467, 8
        %s1469 = scalar_lea.vmem [#allocation3], %s1468
        %p1470 = scmp.lt.s32.totalorder %s23, 1
        %s1471 = scalar_select %p1470, %s23, 1
        %s1472 = smul.addr %s1471, 3
        %s1473 = smul.addr %s1472, 8
        %s1474 = scalar_lea.vmem %s8, %s1473
        // Predicated region
        $region49: #{faster_rcnn_forward.2} parent=47 // pred_check
          %p1475 = pneg %p193
        $region50: #{faster_rcnn_forward.2} parent=47 // pred_check_branch
          %1477 = sbr.rel (%p1475) target = $region52
        $region51: #{faster_rcnn_forward.2} parent=47 // pred_region
          %s1479 = ssub.s32 128, 128
          %1480 = vsyncadd %s1466, %s1479
          %s1481 = smul.addr %s23, 2
          %s1482 = smul.addr %s1481, 64
          %s1483 = scalar_lea.hbm %s7, %s1482
          %s1484 = sshll.u32 %s1469, 4
          %s1485 = int_to_ptr.vmem [resolvable:$true] %s1484
          %1490 = dma.vmem_to_hbm [thread:$0]  %s1485, 128, %s1483, %s1466, 64, 64, 4
        $region52: #{faster_rcnn_forward.2} parent=47 // pred_fallthru
          _
        // Predicated region
        $region53: #{faster_rcnn_forward.2} parent=47 // pred_check
          %p1491 = pneg %p219
        $region54: #{faster_rcnn_forward.2} parent=47 // pred_check_branch
          %1493 = sbr.rel (%p1491) target = $region56
        $region55: #{faster_rcnn_forward.2} parent=47 // pred_region
          _
        $region56: #{faster_rcnn_forward.2} parent=47 // pred_fallthru
          _
      $region48: #{faster_rcnn_forward.2} parent=5 // pred_fallthru
        _
      %p1494 = scmp.le.s32.totalorder 2, %s18
      // Predicated region
      $region57: #{faster_rcnn_forward.2} parent=5 // pred_check
        %p1495 = pneg %p1494
      $region58: #{faster_rcnn_forward.2} parent=5 // pred_check_branch
        %1497 = sbr.rel (%p1495) target = $region60
      $region59: #{faster_rcnn_forward.2} parent=5 // pred_region
        %s1498 = ssub.s32 %s18, 2
        // Predicated region
        $region61: #{faster_rcnn_forward.2} parent=59 // pred_check
          %p1499 = pneg %p199
        $region62: #{faster_rcnn_forward.2} parent=59 // pred_check_branch
          %1501 = sbr.rel (%p1499) target = $region64
        $region63: #{faster_rcnn_forward.2} parent=59 // pred_region
          %s1502 = sand.u32 %s184, 1
          %s1503 = scalar_lea.sflag [#allocation4], %s1502
          %s1504 = sand.u32 %s184, 1
          %s1505 = smul.addr %s1504, 8
          %s1506 = scalar_lea.vmem [#allocation3], %s1505
          %1507 = dma.done %s1503, 128
        $region64: #{faster_rcnn_forward.2} parent=59 // pred_fallthru
          _
        // Predicated region
        $region65: #{faster_rcnn_forward.2} parent=59 // pred_check
          %p1508 = pneg %p225
        $region66: #{faster_rcnn_forward.2} parent=59 // pred_check_branch
          %1510 = sbr.rel (%p1508) target = $region68
        $region67: #{faster_rcnn_forward.2} parent=59 // pred_region
          %p1511 = scmp.lt.s32.totalorder %s24, 1
          %s1512 = scalar_select %p1511, %s24, 1
          %s1513 = smul.addr %s1512, 3
          %s1514 = smul.addr %s1513, 8
          %s1515 = scalar_lea.vmem %s8, %s1514
        $region68: #{faster_rcnn_forward.2} parent=59 // pred_fallthru
          _
      $region60: #{faster_rcnn_forward.2} parent=5 // pred_fallthru
        _
    $region6: #{faster_rcnn_forward.2} parent=1 // loop_footer
      %s22 = sadd.s32 1, %s18
    $region7: #{faster_rcnn_forward.2} parent=1 // loop_footer_branch
      %17 = sbr.rel target = $region3
    $region8: #{faster_rcnn_forward.2} parent=1 // loop_exit
      _
    %1516 = vsyncpa [#allocation4], 1
    %s1517 = scalar_lea.sflag [#allocation4], 1
    %1518 = vsyncpa %s1517, 1

// kernel: faster_rcnn_forward.3
$region0: #{faster_rcnn_forward.3}
  #allocation0 [shape = 'u32[]', space=smem, size = 0x4, offset = 0x4, fixed_abs, tag = 'smem constant byte address 0x4 - core index']
  #allocation1 [shape = 'u32[144,128]{1,0:T(1,128)}', space=vmem, size = 0x12000, scoped, tag = 'internal scratch']
  %s0 = inlined_call_operand.vmem [shape: bf16[2,16,32], index: 0, kind: input, shape index: {}]
  %s1 = inlined_call_operand.vmem [shape: bf16[2,128,16], index: 1, kind: input, shape index: {}]
  %s2 = inlined_call_operand.vmem [shape: bf16[512,64], index: 2, kind: input, shape index: {}]
  %s3 = inlined_call_operand.vmem [shape: f32[1,64], index: 3, kind: input, shape index: {}]
  %s4 = inlined_call_operand.vmem [shape: bf16[64,64], index: 4, kind: input, shape index: {}]
  %s5 = inlined_call_operand.vmem [shape: f32[1,64], index: 5, kind: input, shape index: {}]
  %s6 = inlined_call_operand.vmem [shape: bf16[64,128], index: 6, kind: input, shape index: {}]
  %s7 = inlined_call_operand.vmem [shape: f32[1,128], index: 7, kind: input, shape index: {}]
  %s8 = inlined_call_operand.vmem [shape: f32[2,8,128], index: 8, kind: output, shape index: {}]
  %s9 = sld [smem:[#allocation0]]
  $region65: #{faster_rcnn_forward.3} parent=0
    _
  %s11 = ssub.s32 1, %s9
  %s12 = scalar_select 0, %s11, %s9
  loop: start=0, step=1, limit=4
  $region2: #{faster_rcnn_forward.3} parent=0 // loop_pre_header
    _
  $region3: #{faster_rcnn_forward.3} parent=0 // loop_header
    %s14 = sphi 0, %s18
    %p15 = scmp.ge.s32.totalorder %s14, 4
    %s24 = sphi 0, %s26
    %s27 = sphi 0, %s24
    %s28 = sphi 0, %s27
    %s44 = sphi 0, %s28
    %s50 = sphi 0, %s52
    %s53 = sphi 0, %s50
    %s54 = sphi 0, %s53
    %s70 = sphi 0, %s54
    %s74 = sphi 0, %s74
    %s76 = sphi 0, %s74
    %s77 = sphi 0, %s76
    %s91 = sphi 0, %s77
    %s95 = sphi 0, %s95
    %s97 = sphi 0, %s95
    %s98 = sphi 0, %s97
    %s112 = sphi 0, %s98
    %s116 = sphi 0, %s116
    %s118 = sphi 0, %s116
    %s119 = sphi 0, %s118
    %s133 = sphi 0, %s119
    %s137 = sphi 0, %s137
    %s139 = sphi 0, %s137
    %s140 = sphi 0, %s139
    %s154 = sphi 0, %s140
    %s158 = sphi 0, %s158
    %s160 = sphi 0, %s158
    %s161 = sphi 0, %s160
    %s175 = sphi 0, %s161
    %s179 = sphi 0, %s179
    %s181 = sphi 0, %s179
    %s182 = sphi 0, %s181
    %s196 = sphi 0, %s182
    %s202 = sphi 0, %s204
    %s205 = sphi 0, %s202
    %s206 = sphi 0, %s205
    %s222 = sphi 0, %s206
  $region4: #{faster_rcnn_forward.3} parent=0 // loop_header_branch
    %17 = sbr.rel (%p15) target = $region8
  $region5: #{faster_rcnn_forward.3} parent=0 // loop_body
    %s19 = ssub.s32 %s14, 1
    %s20 = ssub.s32 %s14, 2
    %s21 = sadd.s32 %s14, 1
    %s22 = ssub.s32 %s14, %s21
    %p23 = scmp.eq.s32.totalorder %s22, 0
    %s25 = sadd.s32 %s24, 1
    %s26 = scalar_select %p23, %s24, %s25
    %p29 = pneg %p23
    %p30 = scmp.eq.s32.totalorder %s14, 1
    %p31 = por %p29, %p30
    %p32 = scmp.ne.s32.totalorder %s24, %s27
    %p33 = scmp.eq.s32.totalorder %s14, 0
    %p34 = por %p32, %p33
    %p35 = scmp.ne.s32.totalorder %s24, %s27
    %p36 = scmp.eq.s32.totalorder %s19, 1
    %p37 = por %p35, %p36
    %p38 = scmp.ne.s32.totalorder %s27, %s28
    %p39 = scmp.eq.s32.totalorder %s19, 0
    %p40 = por %p38, %p39
    %p41 = scmp.ne.s32.totalorder %s27, %s28
    %p42 = scmp.eq.s32.totalorder %s20, 1
    %p43 = por %p41, %p42
    %p45 = scmp.ne.s32.totalorder %s28, %s44
    %p46 = scmp.eq.s32.totalorder %s20, 0
    %p47 = por %p45, %p46
    %s48 = ssub.s32 %s14, %s21
    %p49 = scmp.eq.s32.totalorder %s48, 0
    %s51 = sadd.s32 %s50, 1
    %s52 = scalar_select %p49, %s50, %s51
    %p55 = pneg %p49
    %p56 = scmp.eq.s32.totalorder %s14, 1
    %p57 = por %p55, %p56
    %p58 = scmp.ne.s32.totalorder %s50, %s53
    %p59 = scmp.eq.s32.totalorder %s14, 0
    %p60 = por %p58, %p59
    %p61 = scmp.ne.s32.totalorder %s50, %s53
    %p62 = scmp.eq.s32.totalorder %s19, 1
    %p63 = por %p61, %p62
    %p64 = scmp.ne.s32.totalorder %s53, %s54
    %p65 = scmp.eq.s32.totalorder %s19, 0
    %p66 = por %p64, %p65
    %p67 = scmp.ne.s32.totalorder %s53, %s54
    %p68 = scmp.eq.s32.totalorder %s20, 1
    %p69 = por %p67, %p68
    %p71 = scmp.ne.s32.totalorder %s54, %s70
    %p72 = scmp.eq.s32.totalorder %s20, 0
    %p73 = por %p71, %p72
    %s75 = sadd.s32 %s74, 1
    %p78 = scmp.eq.s32.totalorder %s14, 1
    %p79 = scmp.ne.s32.totalorder %s74, %s76
    %p80 = scmp.eq.s32.totalorder %s14, 0
    %p81 = por %p79, %p80
    %p82 = scmp.ne.s32.totalorder %s74, %s76
    %p83 = scmp.eq.s32.totalorder %s19, 1
    %p84 = por %p82, %p83
    %p85 = scmp.ne.s32.totalorder %s76, %s77
    %p86 = scmp.eq.s32.totalorder %s19, 0
    %p87 = por %p85, %p86
    %p88 = scmp.ne.s32.totalorder %s76, %s77
    %p89 = scmp.eq.s32.totalorder %s20, 1
    %p90 = por %p88, %p89
    %p92 = scmp.ne.s32.totalorder %s77, %s91
    %p93 = scmp.eq.s32.totalorder %s20, 0
    %p94 = por %p92, %p93
    %s96 = sadd.s32 %s95, 1
    %p99 = scmp.eq.s32.totalorder %s14, 1
    %p100 = scmp.ne.s32.totalorder %s95, %s97
    %p101 = scmp.eq.s32.totalorder %s14, 0
    %p102 = por %p100, %p101
    %p103 = scmp.ne.s32.totalorder %s95, %s97
    %p104 = scmp.eq.s32.totalorder %s19, 1
    %p105 = por %p103, %p104
    %p106 = scmp.ne.s32.totalorder %s97, %s98
    %p107 = scmp.eq.s32.totalorder %s19, 0
    %p108 = por %p106, %p107
    %p109 = scmp.ne.s32.totalorder %s97, %s98
    %p110 = scmp.eq.s32.totalorder %s20, 1
    %p111 = por %p109, %p110
    %p113 = scmp.ne.s32.totalorder %s98, %s112
    %p114 = scmp.eq.s32.totalorder %s20, 0
    %p115 = por %p113, %p114
    %s117 = sadd.s32 %s116, 1
    %p120 = scmp.eq.s32.totalorder %s14, 1
    %p121 = scmp.ne.s32.totalorder %s116, %s118
    %p122 = scmp.eq.s32.totalorder %s14, 0
    %p123 = por %p121, %p122
    %p124 = scmp.ne.s32.totalorder %s116, %s118
    %p125 = scmp.eq.s32.totalorder %s19, 1
    %p126 = por %p124, %p125
    %p127 = scmp.ne.s32.totalorder %s118, %s119
    %p128 = scmp.eq.s32.totalorder %s19, 0
    %p129 = por %p127, %p128
    %p130 = scmp.ne.s32.totalorder %s118, %s119
    %p131 = scmp.eq.s32.totalorder %s20, 1
    %p132 = por %p130, %p131
    %p134 = scmp.ne.s32.totalorder %s119, %s133
    %p135 = scmp.eq.s32.totalorder %s20, 0
    %p136 = por %p134, %p135
    %s138 = sadd.s32 %s137, 1
    %p141 = scmp.eq.s32.totalorder %s14, 1
    %p142 = scmp.ne.s32.totalorder %s137, %s139
    %p143 = scmp.eq.s32.totalorder %s14, 0
    %p144 = por %p142, %p143
    %p145 = scmp.ne.s32.totalorder %s137, %s139
    %p146 = scmp.eq.s32.totalorder %s19, 1
    %p147 = por %p145, %p146
    %p148 = scmp.ne.s32.totalorder %s139, %s140
    %p149 = scmp.eq.s32.totalorder %s19, 0
    %p150 = por %p148, %p149
    %p151 = scmp.ne.s32.totalorder %s139, %s140
    %p152 = scmp.eq.s32.totalorder %s20, 1
    %p153 = por %p151, %p152
    %p155 = scmp.ne.s32.totalorder %s140, %s154
    %p156 = scmp.eq.s32.totalorder %s20, 0
    %p157 = por %p155, %p156
    %s159 = sadd.s32 %s158, 1
    %p162 = scmp.eq.s32.totalorder %s14, 1
    %p163 = scmp.ne.s32.totalorder %s158, %s160
    %p164 = scmp.eq.s32.totalorder %s14, 0
    %p165 = por %p163, %p164
    %p166 = scmp.ne.s32.totalorder %s158, %s160
    %p167 = scmp.eq.s32.totalorder %s19, 1
    %p168 = por %p166, %p167
    %p169 = scmp.ne.s32.totalorder %s160, %s161
    %p170 = scmp.eq.s32.totalorder %s19, 0
    %p171 = por %p169, %p170
    %p172 = scmp.ne.s32.totalorder %s160, %s161
    %p173 = scmp.eq.s32.totalorder %s20, 1
    %p174 = por %p172, %p173
    %p176 = scmp.ne.s32.totalorder %s161, %s175
    %p177 = scmp.eq.s32.totalorder %s20, 0
    %p178 = por %p176, %p177
    %s180 = sadd.s32 %s179, 1
    %p183 = scmp.eq.s32.totalorder %s14, 1
    %p184 = scmp.ne.s32.totalorder %s179, %s181
    %p185 = scmp.eq.s32.totalorder %s14, 0
    %p186 = por %p184, %p185
    %p187 = scmp.ne.s32.totalorder %s179, %s181
    %p188 = scmp.eq.s32.totalorder %s19, 1
    %p189 = por %p187, %p188
    %p190 = scmp.ne.s32.totalorder %s181, %s182
    %p191 = scmp.eq.s32.totalorder %s19, 0
    %p192 = por %p190, %p191
    %p193 = scmp.ne.s32.totalorder %s181, %s182
    %p194 = scmp.eq.s32.totalorder %s20, 1
    %p195 = por %p193, %p194
    %p197 = scmp.ne.s32.totalorder %s182, %s196
    %p198 = scmp.eq.s32.totalorder %s20, 0
    %p199 = por %p197, %p198
    %s200 = ssub.s32 %s14, %s21
    %p201 = scmp.eq.s32.totalorder %s200, 0
    %s203 = sadd.s32 %s202, 1
    %s204 = scalar_select %p201, %s202, %s203
    %p207 = pneg %p201
    %p208 = scmp.eq.s32.totalorder %s14, 1
    %p209 = por %p207, %p208
    %p210 = scmp.ne.s32.totalorder %s202, %s205
    %p211 = scmp.eq.s32.totalorder %s14, 0
    %p212 = por %p210, %p211
    %p213 = scmp.ne.s32.totalorder %s202, %s205
    %p214 = scmp.eq.s32.totalorder %s19, 1
    %p215 = por %p213, %p214
    %p216 = scmp.ne.s32.totalorder %s205, %s206
    %p217 = scmp.eq.s32.totalorder %s19, 0
    %p218 = por %p216, %p217
    %p219 = scmp.ne.s32.totalorder %s205, %s206
    %p220 = scmp.eq.s32.totalorder %s20, 1
    %p221 = por %p219, %p220
    %p223 = scmp.ne.s32.totalorder %s206, %s222
    %p224 = scmp.eq.s32.totalorder %s20, 0
    %p225 = por %p223, %p224
    %p226 = scmp.le.s32.totalorder 1, %s14
    %p227 = scmp.lt.s32.totalorder %s14, 3
    %p228 = pnand %p226, %p227
    %p229 = pneg %p228
    // Predicated region
    $region9: #{faster_rcnn_forward.3} parent=5 // pred_check
      _
    $region10: #{faster_rcnn_forward.3} parent=5 // pred_check_branch
      %231 = sbr.rel (%p228) target = $region12
    $region11: #{faster_rcnn_forward.3} parent=5 // pred_region
      %s232 = ssub.s32 %s14, 1
      // Predicated region
      $region13: #{faster_rcnn_forward.3} parent=11 // pred_check
        %p233 = pneg %p87
      $region14: #{faster_rcnn_forward.3} parent=11 // pred_check_branch
        %235 = sbr.rel (%p233) target = $region16
      $region15: #{faster_rcnn_forward.3} parent=11 // pred_region
        _
      $region16: #{faster_rcnn_forward.3} parent=11 // pred_fallthru
        _
      // Predicated region
      $region17: #{faster_rcnn_forward.3} parent=11 // pred_check
        %p236 = pneg %p108
      $region18: #{faster_rcnn_forward.3} parent=11 // pred_check_branch
        %238 = sbr.rel (%p236) target = $region20
      $region19: #{faster_rcnn_forward.3} parent=11 // pred_region
        _
      $region20: #{faster_rcnn_forward.3} parent=11 // pred_fallthru
        _
      // Predicated region
      $region21: #{faster_rcnn_forward.3} parent=11 // pred_check
        %p239 = pneg %p129
      $region22: #{faster_rcnn_forward.3} parent=11 // pred_check_branch
        %241 = sbr.rel (%p239) target = $region24
      $region23: #{faster_rcnn_forward.3} parent=11 // pred_region
        _
      $region24: #{faster_rcnn_forward.3} parent=11 // pred_fallthru
        _
      // Predicated region
      $region25: #{faster_rcnn_forward.3} parent=11 // pred_check
        %p242 = pneg %p150
      $region26: #{faster_rcnn_forward.3} parent=11 // pred_check_branch
        %244 = sbr.rel (%p242) target = $region28
      $region27: #{faster_rcnn_forward.3} parent=11 // pred_region
        _
      $region28: #{faster_rcnn_forward.3} parent=11 // pred_fallthru
        _
      // Predicated region
      $region29: #{faster_rcnn_forward.3} parent=11 // pred_check
        %p245 = pneg %p171
      $region30: #{faster_rcnn_forward.3} parent=11 // pred_check_branch
        %247 = sbr.rel (%p245) target = $region32
      $region31: #{faster_rcnn_forward.3} parent=11 // pred_region
        _
      $region32: #{faster_rcnn_forward.3} parent=11 // pred_fallthru
        _
      // Predicated region
      $region33: #{faster_rcnn_forward.3} parent=11 // pred_check
        %p248 = pneg %p192
      $region34: #{faster_rcnn_forward.3} parent=11 // pred_check_branch
        %250 = sbr.rel (%p248) target = $region36
      $region35: #{faster_rcnn_forward.3} parent=11 // pred_region
        _
      $region36: #{faster_rcnn_forward.3} parent=11 // pred_fallthru
        _
    $region12: #{faster_rcnn_forward.3} parent=5 // pred_fallthru
      _
    %p251 = scmp.lt.s32.totalorder %s14, 2
    // Predicated region
    $region37: #{faster_rcnn_forward.3} parent=5 // pred_check
      %p252 = pneg %p251
    $region38: #{faster_rcnn_forward.3} parent=5 // pred_check_branch
      %254 = sbr.rel (%p252) target = $region40
    $region39: #{faster_rcnn_forward.3} parent=5 // pred_region
      // Predicated region
      $region41: #{faster_rcnn_forward.3} parent=39 // pred_check
        %p255 = pneg %p34
      $region42: #{faster_rcnn_forward.3} parent=39 // pred_check_branch
        %257 = sbr.rel (%p255) target = $region44
      $region43: #{faster_rcnn_forward.3} parent=39 // pred_region
        %p258 = scmp.lt.s32.totalorder %s14, 1
        %s259 = scalar_select %p258, %s14, 1
        %s260 = smul.addr %s259, 2
        %s261 = smul.addr %s260, 4
        %s262 = scalar_lea.vmem %s0, %s261
      $region44: #{faster_rcnn_forward.3} parent=39 // pred_fallthru
        _
      // Predicated region
      $region45: #{faster_rcnn_forward.3} parent=39 // pred_check
        %p263 = pneg %p60
      $region46: #{faster_rcnn_forward.3} parent=39 // pred_check_branch
        %265 = sbr.rel (%p263) target = $region48
      $region47: #{faster_rcnn_forward.3} parent=39 // pred_region
        %p266 = scmp.lt.s32.totalorder %s14, 1
        %s267 = scalar_select %p266, %s14, 1
        %s268 = smul.addr %s267, 16
        %s269 = smul.addr %s268, 4
        %s270 = scalar_lea.vmem %s1, %s269
      $region48: #{faster_rcnn_forward.3} parent=39 // pred_fallthru
        _
    $region40: #{faster_rcnn_forward.3} parent=5 // pred_fallthru
      _
    %p271 = scmp.le.s32.totalorder 1, %s14
    %p272 = scmp.lt.s32.totalorder %s14, 3
    %p273 = pnand %p271, %p272
    %p274 = pneg %p273
    // Predicated region
    $region49: #{faster_rcnn_forward.3} parent=5 // pred_check
      _
    $region50: #{faster_rcnn_forward.3} parent=5 // pred_check_branch
      %276 = sbr.rel (%p273) target = $region52
    $region51: #{faster_rcnn_forward.3} parent=5 // pred_region
      %s277 = ssub.s32 %s14, 1
      %p278 = scmp.lt.s32.totalorder %s19, 1
      %s279 = scalar_select %p278, %s19, 1
      %s280 = smul.addr %s279, 2
      %s281 = smul.addr %s280, 4
      %s282 = scalar_lea.vmem %s0, %s281
      %p283 = pneg %p40
      %p284 = pneg %p37
      %p285 = scmp.lt.s32.totalorder %s19, 1
      %s286 = scalar_select %p285, %s19, 1
      %s287 = smul.addr %s286, 16
      %s288 = smul.addr %s287, 4
      %s289 = scalar_lea.vmem %s1, %s288
      %p290 = pneg %p66
      %p291 = pneg %p63
      %p292 = pneg %p87
      %p293 = pneg %p84
      %p294 = pneg %p108
      %p295 = pneg %p105
      %p296 = pneg %p129
      %p297 = pneg %p126
      %p298 = pneg %p150
      %p299 = pneg %p147
      %p300 = pneg %p171
      %p301 = pneg %p168
      %p302 = pneg %p192
      %p303 = pneg %p189
      %p304 = pneg %p218
      %p305 = pneg %p215
      %p306 = scmp.lt.s32.totalorder %s19, 1
      %s307 = scalar_select %p306, %s19, 1
      %s308 = smul.addr %s307, 8
      %s309 = scalar_lea.vmem %s8, %s308
      %p310 = scmp.lt.s32.totalorder %s19, 1
      %s311 = scalar_select %p310, %s19, 1
      %s312 = smul.addr %s311, 2
      %s313 = smul.addr %s312, 4
      %s314 = scalar_lea.vmem %s0, %s313
      %p315 = scmp.lt.s32.totalorder %s19, 1
      %s316 = scalar_select %p315, %s19, 1
      %s317 = smul.addr %s316, 16
      %s318 = smul.addr %s317, 4
      %s319 = scalar_lea.vmem %s1, %s318
      %p320 = scmp.lt.s32.totalorder %s19, 1
      %s321 = scalar_select %p320, %s19, 1
      %s322 = smul.addr %s321, 8
      %s323 = scalar_lea.vmem %s8, %s322
      %v325 = vld [vmem:[%s319] sm:$0xf]
      %v326 = vld [vmem:[%s319 + $0x4] sm:$0xf]
      %v327 = vld [vmem:[%s319 + $0x8] sm:$0xf]
      %v328 = vld [vmem:[%s319 + $0xc] sm:$0xf]
      %v329 = vld [vmem:[%s319 + $0x10] sm:$0xf]
      %v330 = vld [vmem:[%s319 + $0x14] sm:$0xf]
      %v331 = vld [vmem:[%s319 + $0x18] sm:$0xf]
      %v332 = vld [vmem:[%s319 + $0x1c] sm:$0xf]
      %v333 = vld [vmem:[%s319 + $0x20] sm:$0xf]
      %v334 = vld [vmem:[%s319 + $0x24] sm:$0xf]
      %v335 = vld [vmem:[%s319 + $0x28] sm:$0xf]
      %v336 = vld [vmem:[%s319 + $0x2c] sm:$0xf]
      %v337 = vld [vmem:[%s319 + $0x30] sm:$0xf]
      %v338 = vld [vmem:[%s319 + $0x34] sm:$0xf]
      %v339 = vld [vmem:[%s319 + $0x38] sm:$0xf]
      %v340 = vld [vmem:[%s319 + $0x3c] sm:$0xf]
      %v341 = vld [vmem:[%s314] sm:$0xf]
      %v342 = vld [vmem:[%s314 + $0x4] sm:$0xf]
      %v359 = vunpack.c.l.b16 %v325
      %v360 = vunpack.c.l.b16 %v326
      %v361 = vunpack.c.l.b16 %v327
      %v362 = vunpack.c.l.b16 %v328
      %v363 = vunpack.c.l.b16 %v329
      %v364 = vunpack.c.l.b16 %v330
      %v365 = vunpack.c.l.b16 %v331
      %v366 = vunpack.c.l.b16 %v332
      %v367 = vunpack.c.l.b16 %v333
      %v368 = vunpack.c.l.b16 %v334
      %v369 = vunpack.c.l.b16 %v335
      %v370 = vunpack.c.l.b16 %v336
      %v371 = vunpack.c.l.b16 %v337
      %v372 = vunpack.c.l.b16 %v338
      %v373 = vunpack.c.l.b16 %v339
      %v374 = vunpack.c.l.b16 %v340
      %v375 = vpack.c.b16 %v360, %v359
      %v376 = vpack.c.b16 %v362, %v361
      %v377 = vpack.c.b16 %v364, %v363
      %v378 = vpack.c.b16 %v366, %v365
      %v379 = vpack.c.b16 %v368, %v367
      %v380 = vpack.c.b16 %v370, %v369
      %v381 = vpack.c.b16 %v372, %v371
      %v382 = vpack.c.b16 %v374, %v373
      %v385 = vunpack.c.l.b16 %v341
      %v386 = vunpack.c.l.b16 %v342
      %v387 = vpack.c.b16 %v386, %v385
      %vm389 = vcmask 130048
      %v391 = vsel %vm389, %v375, 0
      %v394 = vsel %vm389, %v376, 0
      %v397 = vsel %vm389, %v377, 0
      %v400 = vsel %vm389, %v378, 0
      %v403 = vsel %vm389, %v379, 0
      %v406 = vsel %vm389, %v380, 0
      %v409 = vsel %vm389, %v381, 0
      %v412 = vsel %vm389, %v382, 0
      %414 = vmatprep.subr.bf16.mxu0 0
      %415 = vmatpush1.bf16.msra.mxu0 %v387
      %416 = vmatprep.subr.bf16.mxu0 0
      %417 = vmatpush1.bf16.msra.mxu0 0
      %418 = vmatprep.subr.bf16.mxu0 0
      %419 = vmatpush1.bf16.msra.mxu0 0
      %420 = vmatprep.subr.bf16.mxu0 0
      %421 = vmatpush1.bf16.msra.mxu0 0
      %422 = vmatprep.subr.bf16.mxu0 0
      %423 = vmatpush1.bf16.msra.mxu0 0
      %424 = vmatprep.subr.bf16.mxu0 0
      %425 = vmatpush1.bf16.msra.mxu0 0
      %426 = vmatprep.subr.bf16.mxu0 0
      %427 = vmatpush1.bf16.msra.mxu0 0
      %428 = vmatprep.subr.bf16.mxu0 0
      %429 = vmatpush1.bf16.msra.mxu0 0
      %430 = vmatprep.subr.bf16.mxu0 0
      %431 = vmatpush1.bf16.msra.mxu0 0
      %432 = vmatprep.subr.bf16.mxu0 0
      %433 = vmatpush1.bf16.msra.mxu0 0
      %434 = vmatprep.subr.bf16.mxu0 0
      %435 = vmatpush1.bf16.msra.mxu0 0
      %436 = vmatprep.subr.bf16.mxu0 0
      %437 = vmatpush1.bf16.msra.mxu0 0
      %438 = vmatprep.subr.bf16.mxu0 0
      %439 = vmatpush1.bf16.msra.mxu0 0
      %440 = vmatprep.subr.bf16.mxu0 0
      %441 = vmatpush1.bf16.msra.mxu0 0
      %442 = vmatprep.subr.bf16.mxu0 0
      %443 = vmatpush1.bf16.msra.mxu0 0
      %444 = vmatprep.subr.bf16.mxu0 0
      %445 = vmatpush1.bf16.msra.mxu0 0
      %446 = vmatprep.mubr.bf16.mxu0 0
      %447 = vmatmul.mubr.bf16.gmra.mrb[0].mxu0 %v391
      %v448 = vpop.f32.mrb[0].mxu0
      %v449 = vadd.f32 0.0, %v448
      %v450 = vpop.f32.mrb[0].mxu0
      %v451 = vpop.f32.mrb[0].mxu0
      %v452 = vadd.f32 0.0, %v451
      %v453 = vpop.f32.mrb[0].mxu0
      %454 = vmatprep.mubr.bf16.mxu0 0
      %455 = vmatmul.mubr.bf16.gmra.mrb[0].mxu0 %v394
      %v456 = vpop.f32.mrb[0].mxu0
      %v457 = vadd.f32 0.0, %v456
      %v458 = vpop.f32.mrb[0].mxu0
      %v459 = vpop.f32.mrb[0].mxu0
      %v460 = vadd.f32 0.0, %v459
      %v461 = vpop.f32.mrb[0].mxu0
      %462 = vmatprep.mubr.bf16.mxu0 0
      %463 = vmatmul.mubr.bf16.gmra.mrb[0].mxu0 %v397
      %v464 = vpop.f32.mrb[0].mxu0
      %v465 = vadd.f32 0.0, %v464
      %v466 = vpop.f32.mrb[0].mxu0
      %v467 = vpop.f32.mrb[0].mxu0
      %v468 = vadd.f32 0.0, %v467
      %v469 = vpop.f32.mrb[0].mxu0
      %470 = vmatprep.mubr.bf16.mxu0 0
      %471 = vmatmul.mubr.bf16.gmra.mrb[0].mxu0 %v400
      %v472 = vpop.f32.mrb[0].mxu0
      %v473 = vadd.f32 0.0, %v472
      %v474 = vpop.f32.mrb[0].mxu0
      %v475 = vpop.f32.mrb[0].mxu0
      %v476 = vadd.f32 0.0, %v475
      %v477 = vpop.f32.mrb[0].mxu0
      %478 = vmatprep.mubr.bf16.mxu0 0
      %479 = vmatmul.mubr.bf16.gmra.mrb[0].mxu0 %v403
      %v480 = vpop.f32.mrb[0].mxu0
      %v481 = vadd.f32 0.0, %v480
      %v482 = vpop.f32.mrb[0].mxu0
      %v483 = vpop.f32.mrb[0].mxu0
      %v484 = vadd.f32 0.0, %v483
      %v485 = vpop.f32.mrb[0].mxu0
      %486 = vmatprep.mubr.bf16.mxu0 0
      %487 = vmatmul.mubr.bf16.gmra.mrb[0].mxu0 %v406
      %v488 = vpop.f32.mrb[0].mxu0
      %v489 = vadd.f32 0.0, %v488
      %v490 = vpop.f32.mrb[0].mxu0
      %v491 = vpop.f32.mrb[0].mxu0
      %v492 = vadd.f32 0.0, %v491
      %v493 = vpop.f32.mrb[0].mxu0
      %494 = vmatprep.mubr.bf16.mxu0 0
      %495 = vmatmul.mubr.bf16.gmra.mrb[0].mxu0 %v409
      %v496 = vpop.f32.mrb[0].mxu0
      %v497 = vadd.f32 0.0, %v496
      %v498 = vpop.f32.mrb[0].mxu0
      %v499 = vpop.f32.mrb[0].mxu0
      %v500 = vadd.f32 0.0, %v499
      %v501 = vpop.f32.mrb[0].mxu0
      %502 = vmatprep.mubr.bf16.mxu0 0
      %503 = vmatmul.mubr.bf16.gmra.mrb[0].mxu0 %v412
      %v504 = vpop.f32.mrb[0].mxu0
      %v505 = vadd.f32 0.0, %v504
      %v506 = vpop.f32.mrb[0].mxu0
      %v507 = vpop.f32.mrb[0].mxu0
      %v508 = vadd.f32 0.0, %v507
      %v509 = vpop.f32.mrb[0].mxu0
      %510 = vdwg.mxu0
      %v511 = vpack.c.bf16 %v452, %v449
      %v512 = vpack.c.bf16 %v460, %v457
      %v513 = vpack.c.bf16 %v468, %v465
      %v514 = vpack.c.bf16 %v476, %v473
      %v515 = vpack.c.bf16 %v484, %v481
      %v516 = vpack.c.bf16 %v492, %v489
      %v517 = vpack.c.bf16 %v500, %v497
      %v518 = vpack.c.bf16 %v508, %v505
      %v520 = vrot.slane %v511, 4
      %521 = vrot.lane.b32.xlu0 %v520, 32
      %v522 = vpop.permute.xlu0 %521
      %524 = vrot.lane.b32.xlu0 %v512, 64
      %v525 = vpop.permute.xlu0 %524
      %v526 = vrot.slane %v512, 4
      %527 = vrot.lane.b32.xlu0 %v526, 96
      %v528 = vpop.permute.xlu0 %527
      %v530 = vrot.slane %v513, 4
      %531 = vrot.lane.b32.xlu0 %v530, 32
      %v532 = vpop.permute.xlu0 %531
      %534 = vrot.lane.b32.xlu0 %v514, 64
      %v535 = vpop.permute.xlu0 %534
      %v536 = vrot.slane %v514, 4
      %537 = vrot.lane.b32.xlu0 %v536, 96
      %v538 = vpop.permute.xlu0 %537
      %v540 = vrot.slane %v515, 4
      %541 = vrot.lane.b32.xlu0 %v540, 32
      %v542 = vpop.permute.xlu0 %541
      %544 = vrot.lane.b32.xlu0 %v516, 64
      %v545 = vpop.permute.xlu0 %544
      %v546 = vrot.slane %v516, 4
      %547 = vrot.lane.b32.xlu0 %v546, 96
      %v548 = vpop.permute.xlu0 %547
      %v550 = vrot.slane %v517, 4
      %551 = vrot.lane.b32.xlu0 %v550, 32
      %v552 = vpop.permute.xlu0 %551
      %554 = vrot.lane.b32.xlu0 %v518, 64
      %v555 = vpop.permute.xlu0 %554
      %v556 = vrot.slane %v518, 4
      %557 = vrot.lane.b32.xlu0 %v556, 96
      %v558 = vpop.permute.xlu0 %557
      %vm559 = vcmask 261120
      %v562 = vsel %vm559, %v511, %v522
      %vm563 = vcmask 523264
      %v565 = vsel %vm563, %v562, %v525
      %vm566 = vcmask 785408
      %v568 = vsel %vm566, %v565, %v528
      %v572 = vsel %vm559, %v513, %v532
      %v574 = vsel %vm563, %v572, %v535
      %v576 = vsel %vm566, %v574, %v538
      %v580 = vsel %vm559, %v515, %v542
      %v582 = vsel %vm563, %v580, %v545
      %v584 = vsel %vm566, %v582, %v548
      %v588 = vsel %vm559, %v517, %v552
      %v590 = vsel %vm563, %v588, %v555
      %v592 = vsel %vm566, %v590, %v558
      %v594 = vld [vmem:[%s2] sm:$0xf]
      %v595 = vld [vmem:[%s2 + $0x4] sm:$0xf]
      %v596 = vld [vmem:[%s2 + $0x8] sm:$0xf]
      %v597 = vld [vmem:[%s2 + $0xc] sm:$0xf]
      %v598 = vld [vmem:[%s2 + $0x10] sm:$0xf]
      %v599 = vld [vmem:[%s2 + $0x14] sm:$0xf]
      %v600 = vld [vmem:[%s2 + $0x18] sm:$0xf]
      %v601 = vld [vmem:[%s2 + $0x1c] sm:$0xf]
      %v602 = vld [vmem:[%s2 + $0x20] sm:$0xf]
      %v603 = vld [vmem:[%s2 + $0x24] sm:$0xf]
      %v604 = vld [vmem:[%s2 + $0x28] sm:$0xf]
      %v605 = vld [vmem:[%s2 + $0x2c] sm:$0xf]
      %v606 = vld [vmem:[%s2 + $0x30] sm:$0xf]
      %v607 = vld [vmem:[%s2 + $0x34] sm:$0xf]
      %v608 = vld [vmem:[%s2 + $0x38] sm:$0xf]
      %v609 = vld [vmem:[%s2 + $0x3c] sm:$0xf]
      %v610 = vld [vmem:[%s2 + $0x40] sm:$0xf]
      %v611 = vld [vmem:[%s2 + $0x44] sm:$0xf]
      %v612 = vld [vmem:[%s2 + $0x48] sm:$0xf]
      %v613 = vld [vmem:[%s2 + $0x4c] sm:$0xf]
      %v614 = vld [vmem:[%s2 + $0x50] sm:$0xf]
      %v615 = vld [vmem:[%s2 + $0x54] sm:$0xf]
      %v616 = vld [vmem:[%s2 + $0x58] sm:$0xf]
      %v617 = vld [vmem:[%s2 + $0x5c] sm:$0xf]
      %v618 = vld [vmem:[%s2 + $0x60] sm:$0xf]
      %v619 = vld [vmem:[%s2 + $0x64] sm:$0xf]
      %v620 = vld [vmem:[%s2 + $0x68] sm:$0xf]
      %v621 = vld [vmem:[%s2 + $0x6c] sm:$0xf]
      %v622 = vld [vmem:[%s2 + $0x70] sm:$0xf]
      %v623 = vld [vmem:[%s2 + $0x74] sm:$0xf]
      %v624 = vld [vmem:[%s2 + $0x78] sm:$0xf]
      %v625 = vld [vmem:[%s2 + $0x7c] sm:$0xf]
      %v626 = vld [vmem:[%s2 + $0x80] sm:$0xf]
      %v627 = vld [vmem:[%s2 + $0x84] sm:$0xf]
      %v628 = vld [vmem:[%s2 + $0x88] sm:$0xf]
      %v629 = vld [vmem:[%s2 + $0x8c] sm:$0xf]
      %v630 = vld [vmem:[%s2 + $0x90] sm:$0xf]
      %v631 = vld [vmem:[%s2 + $0x94] sm:$0xf]
      %v632 = vld [vmem:[%s2 + $0x98] sm:$0xf]
      %v633 = vld [vmem:[%s2 + $0x9c] sm:$0xf]
      %v634 = vld [vmem:[%s2 + $0xa0] sm:$0xf]
      %v635 = vld [vmem:[%s2 + $0xa4] sm:$0xf]
      %v636 = vld [vmem:[%s2 + $0xa8] sm:$0xf]
      %v637 = vld [vmem:[%s2 + $0xac] sm:$0xf]
      %v638 = vld [vmem:[%s2 + $0xb0] sm:$0xf]
      %v639 = vld [vmem:[%s2 + $0xb4] sm:$0xf]
      %v640 = vld [vmem:[%s2 + $0xb8] sm:$0xf]
      %v641 = vld [vmem:[%s2 + $0xbc] sm:$0xf]
      %v642 = vld [vmem:[%s2 + $0xc0] sm:$0xf]
      %v643 = vld [vmem:[%s2 + $0xc4] sm:$0xf]
      %v644 = vld [vmem:[%s2 + $0xc8] sm:$0xf]
      %v645 = vld [vmem:[%s2 + $0xcc] sm:$0xf]
      %v646 = vld [vmem:[%s2 + $0xd0] sm:$0xf]
      %v647 = vld [vmem:[%s2 + $0xd4] sm:$0xf]
      %v648 = vld [vmem:[%s2 + $0xd8] sm:$0xf]
      %v649 = vld [vmem:[%s2 + $0xdc] sm:$0xf]
      %v650 = vld [vmem:[%s2 + $0xe0] sm:$0xf]
      %v651 = vld [vmem:[%s2 + $0xe4] sm:$0xf]
      %v652 = vld [vmem:[%s2 + $0xe8] sm:$0xf]
      %v653 = vld [vmem:[%s2 + $0xec] sm:$0xf]
      %v654 = vld [vmem:[%s2 + $0xf0] sm:$0xf]
      %v655 = vld [vmem:[%s2 + $0xf4] sm:$0xf]
      %v656 = vld [vmem:[%s2 + $0xf8] sm:$0xf]
      %v657 = vld [vmem:[%s2 + $0xfc] sm:$0xf]
      %v658 = vld [vmem:[%s3] sm:$0x1]
      %v660 = vlaneseq
      %v661 = vshrl.u32 %v660, 7
      %v662 = vsub.s32 0, %v661
      %v663 = vrot.slane %v658, %v662
      %v729 = vunpack.c.l.b16 %v594
      %v730 = vunpack.c.l.b16 %v595
      %v731 = vunpack.c.l.b16 %v596
      %v732 = vunpack.c.l.b16 %v597
      %v733 = vunpack.c.l.b16 %v598
      %v734 = vunpack.c.l.b16 %v599
      %v735 = vunpack.c.l.b16 %v600
      %v736 = vunpack.c.l.b16 %v601
      %v737 = vunpack.c.l.b16 %v602
      %v738 = vunpack.c.l.b16 %v603
      %v739 = vunpack.c.l.b16 %v604
      %v740 = vunpack.c.l.b16 %v605
      %v741 = vunpack.c.l.b16 %v606
      %v742 = vunpack.c.l.b16 %v607
      %v743 = vunpack.c.l.b16 %v608
      %v744 = vunpack.c.l.b16 %v609
      %v745 = vunpack.c.l.b16 %v610
      %v746 = vunpack.c.l.b16 %v611
      %v747 = vunpack.c.l.b16 %v612
      %v748 = vunpack.c.l.b16 %v613
      %v749 = vunpack.c.l.b16 %v614
      %v750 = vunpack.c.l.b16 %v615
      %v751 = vunpack.c.l.b16 %v616
      %v752 = vunpack.c.l.b16 %v617
      %v753 = vunpack.c.l.b16 %v618
      %v754 = vunpack.c.l.b16 %v619
      %v755 = vunpack.c.l.b16 %v620
      %v756 = vunpack.c.l.b16 %v621
      %v757 = vunpack.c.l.b16 %v622
      %v758 = vunpack.c.l.b16 %v623
      %v759 = vunpack.c.l.b16 %v624
      %v760 = vunpack.c.l.b16 %v625
      %v761 = vunpack.c.l.b16 %v626
      %v762 = vunpack.c.l.b16 %v627
      %v763 = vunpack.c.l.b16 %v628
      %v764 = vunpack.c.l.b16 %v629
      %v765 = vunpack.c.l.b16 %v630
      %v766 = vunpack.c.l.b16 %v631
      %v767 = vunpack.c.l.b16 %v632
      %v768 = vunpack.c.l.b16 %v633
      %v769 = vunpack.c.l.b16 %v634
      %v770 = vunpack.c.l.b16 %v635
      %v771 = vunpack.c.l.b16 %v636
      %v772 = vunpack.c.l.b16 %v637
      %v773 = vunpack.c.l.b16 %v638
      %v774 = vunpack.c.l.b16 %v639
      %v775 = vunpack.c.l.b16 %v640
      %v776 = vunpack.c.l.b16 %v641
      %v777 = vunpack.c.l.b16 %v642
      %v778 = vunpack.c.l.b16 %v643
      %v779 = vunpack.c.l.b16 %v644
      %v780 = vunpack.c.l.b16 %v645
      %v781 = vunpack.c.l.b16 %v646
      %v782 = vunpack.c.l.b16 %v647
      %v783 = vunpack.c.l.b16 %v648
      %v784 = vunpack.c.l.b16 %v649
      %v785 = vunpack.c.l.b16 %v650
      %v786 = vunpack.c.l.b16 %v651
      %v787 = vunpack.c.l.b16 %v652
      %v788 = vunpack.c.l.b16 %v653
      %v789 = vunpack.c.l.b16 %v654
      %v790 = vunpack.c.l.b16 %v655
      %v791 = vunpack.c.l.b16 %v656
      %v792 = vunpack.c.l.b16 %v657
      %v793 = vpack.c.b16 %v730, %v729
      %v794 = vpack.c.b16 %v732, %v731
      %v795 = vpack.c.b16 %v734, %v733
      %v796 = vpack.c.b16 %v736, %v735
      %v797 = vpack.c.b16 %v738, %v737
      %v798 = vpack.c.b16 %v740, %v739
      %v799 = vpack.c.b16 %v742, %v741
      %v800 = vpack.c.b16 %v744, %v743
      %v801 = vpack.c.b16 %v746, %v745
      %v802 = vpack.c.b16 %v748, %v747
      %v803 = vpack.c.b16 %v750, %v749
      %v804 = vpack.c.b16 %v752, %v751
      %v805 = vpack.c.b16 %v754, %v753
      %v806 = vpack.c.b16 %v756, %v755
      %v807 = vpack.c.b16 %v758, %v757
      %v808 = vpack.c.b16 %v760, %v759
      %v809 = vpack.c.b16 %v762, %v761
      %v810 = vpack.c.b16 %v764, %v763
      %v811 = vpack.c.b16 %v766, %v765
      %v812 = vpack.c.b16 %v768, %v767
      %v813 = vpack.c.b16 %v770, %v769
      %v814 = vpack.c.b16 %v772, %v771
      %v815 = vpack.c.b16 %v774, %v773
      %v816 = vpack.c.b16 %v776, %v775
      %v817 = vpack.c.b16 %v778, %v777
      %v818 = vpack.c.b16 %v780, %v779
      %v819 = vpack.c.b16 %v782, %v781
      %v820 = vpack.c.b16 %v784, %v783
      %v821 = vpack.c.b16 %v786, %v785
      %v822 = vpack.c.b16 %v788, %v787
      %v823 = vpack.c.b16 %v790, %v789
      %v824 = vpack.c.b16 %v792, %v791
      %857 = vmatprep.subr.bf16.mxu0 0
      %858 = vmatpush1.bf16.msra.mxu0 %v793
      %859 = vmatprep.subr.bf16.mxu0 0
      %860 = vmatpush1.bf16.msra.mxu0 %v794
      %861 = vmatprep.subr.bf16.mxu0 0
      %862 = vmatpush1.bf16.msra.mxu0 %v795
      %863 = vmatprep.subr.bf16.mxu0 0
      %864 = vmatpush1.bf16.msra.mxu0 %v796
      %865 = vmatprep.subr.bf16.mxu0 0
      %866 = vmatpush1.bf16.msra.mxu0 %v797
      %867 = vmatprep.subr.bf16.mxu0 0
      %868 = vmatpush1.bf16.msra.mxu0 %v798
      %869 = vmatprep.subr.bf16.mxu0 0
      %870 = vmatpush1.bf16.msra.mxu0 %v799
      %871 = vmatprep.subr.bf16.mxu0 0
      %872 = vmatpush1.bf16.msra.mxu0 %v800
      %873 = vmatprep.subr.bf16.mxu0 0
      %874 = vmatpush1.bf16.msra.mxu0 %v801
      %875 = vmatprep.subr.bf16.mxu0 0
      %876 = vmatpush1.bf16.msra.mxu0 %v802
      %877 = vmatprep.subr.bf16.mxu0 0
      %878 = vmatpush1.bf16.msra.mxu0 %v803
      %879 = vmatprep.subr.bf16.mxu0 0
      %880 = vmatpush1.bf16.msra.mxu0 %v804
      %881 = vmatprep.subr.bf16.mxu0 0
      %882 = vmatpush1.bf16.msra.mxu0 %v805
      %883 = vmatprep.subr.bf16.mxu0 0
      %884 = vmatpush1.bf16.msra.mxu0 %v806
      %885 = vmatprep.subr.bf16.mxu0 0
      %886 = vmatpush1.bf16.msra.mxu0 %v807
      %887 = vmatprep.subr.bf16.mxu0 0
      %888 = vmatpush1.bf16.msra.mxu0 %v808
      %889 = vmatprep.mubr.bf16.mxu0 %v576
      %890 = vmatmul.mubr.bf16.gmra.mrb[0].mxu0 %v568
      %v891 = vpop.f32.mrb[0].mxu0
      %v892 = vadd.f32 %v663, %v891
      %v893 = vpop.f32.mrb[0].mxu0
      %v894 = vpop.f32.mrb[0].mxu0
      %v895 = vpop.f32.mrb[0].mxu0
      %896 = vdwg.mxu0
      %897 = vmatprep.subr.bf16.mxu0 0
      %898 = vmatpush1.bf16.msra.mxu0 %v809
      %899 = vmatprep.subr.bf16.mxu0 0
      %900 = vmatpush1.bf16.msra.mxu0 %v810
      %901 = vmatprep.subr.bf16.mxu0 0
      %902 = vmatpush1.bf16.msra.mxu0 %v811
      %903 = vmatprep.subr.bf16.mxu0 0
      %904 = vmatpush1.bf16.msra.mxu0 %v812
      %905 = vmatprep.subr.bf16.mxu0 0
      %906 = vmatpush1.bf16.msra.mxu0 %v813
      %907 = vmatprep.subr.bf16.mxu0 0
      %908 = vmatpush1.bf16.msra.mxu0 %v814
      %909 = vmatprep.subr.bf16.mxu0 0
      %910 = vmatpush1.bf16.msra.mxu0 %v815
      %911 = vmatprep.subr.bf16.mxu0 0
      %912 = vmatpush1.bf16.msra.mxu0 %v816
      %913 = vmatprep.subr.bf16.mxu0 0
      %914 = vmatpush1.bf16.msra.mxu0 %v817
      %915 = vmatprep.subr.bf16.mxu0 0
      %916 = vmatpush1.bf16.msra.mxu0 %v818
      %917 = vmatprep.subr.bf16.mxu0 0
      %918 = vmatpush1.bf16.msra.mxu0 %v819
      %919 = vmatprep.subr.bf16.mxu0 0
      %920 = vmatpush1.bf16.msra.mxu0 %v820
      %921 = vmatprep.subr.bf16.mxu0 0
      %922 = vmatpush1.bf16.msra.mxu0 %v821
      %923 = vmatprep.subr.bf16.mxu0 0
      %924 = vmatpush1.bf16.msra.mxu0 %v822
      %925 = vmatprep.subr.bf16.mxu0 0
      %926 = vmatpush1.bf16.msra.mxu0 %v823
      %927 = vmatprep.subr.bf16.mxu0 0
      %928 = vmatpush1.bf16.msra.mxu0 %v824
      %929 = vmatprep.mubr.bf16.mxu0 %v592
      %930 = vmatmul.mubr.bf16.gmra.mrb[0].mxu0 %v584
      %v931 = vpop.f32.mrb[0].mxu0
      %v932 = vadd.f32 %v892, %v931
      %v933 = vpop.f32.mrb[0].mxu0
      %v934 = vpop.f32.mrb[0].mxu0
      %v935 = vpop.f32.mrb[0].mxu0
      %936 = vdwg.mxu0
      %v937 = vmax.f32 %v932, 0.0
      %v938 = vpack.c.bf16 %v937, %v937
      %v939 = vld [vmem:[%s4] sm:$0xf]
      %v940 = vld [vmem:[%s4 + $0x4] sm:$0xf]
      %v941 = vld [vmem:[%s4 + $0x8] sm:$0xf]
      %v942 = vld [vmem:[%s4 + $0xc] sm:$0xf]
      %v943 = vld [vmem:[%s4 + $0x10] sm:$0xf]
      %v944 = vld [vmem:[%s4 + $0x14] sm:$0xf]
      %v945 = vld [vmem:[%s4 + $0x18] sm:$0xf]
      %v946 = vld [vmem:[%s4 + $0x1c] sm:$0xf]
      %v947 = vld [vmem:[%s5] sm:$0x1]
      %v949 = vlaneseq
      %v950 = vshrl.u32 %v949, 7
      %v951 = vsub.s32 0, %v950
      %v952 = vrot.slane %v947, %v951
      %v962 = vunpack.c.l.b16 %v939
      %v963 = vunpack.c.l.b16 %v940
      %v964 = vunpack.c.l.b16 %v941
      %v965 = vunpack.c.l.b16 %v942
      %v966 = vunpack.c.l.b16 %v943
      %v967 = vunpack.c.l.b16 %v944
      %v968 = vunpack.c.l.b16 %v945
      %v969 = vunpack.c.l.b16 %v946
      %v970 = vpack.c.b16 %v963, %v962
      %v971 = vpack.c.b16 %v965, %v964
      %v972 = vpack.c.b16 %v967, %v966
      %v973 = vpack.c.b16 %v969, %v968
      %v979 = vsel %vm563, %v938, 0
      %981 = vmatprep.subr.bf16.mxu0 0
      %982 = vmatpush1.bf16.msra.mxu0 %v970
      %983 = vmatprep.subr.bf16.mxu0 0
      %984 = vmatpush1.bf16.msra.mxu0 %v971
      %985 = vmatprep.subr.bf16.mxu0 0
      %986 = vmatpush1.bf16.msra.mxu0 %v972
      %987 = vmatprep.subr.bf16.mxu0 0
      %988 = vmatpush1.bf16.msra.mxu0 %v973
      %989 = vmatprep.subr.bf16.mxu0 0
      %990 = vmatpush1.bf16.msra.mxu0 0
      %991 = vmatprep.subr.bf16.mxu0 0
      %992 = vmatpush1.bf16.msra.mxu0 0
      %993 = vmatprep.subr.bf16.mxu0 0
      %994 = vmatpush1.bf16.msra.mxu0 0
      %995 = vmatprep.subr.bf16.mxu0 0
      %996 = vmatpush1.bf16.msra.mxu0 0
      %997 = vmatprep.subr.bf16.mxu0 0
      %998 = vmatpush1.bf16.msra.mxu0 0
      %999 = vmatprep.subr.bf16.mxu0 0
      %1000 = vmatpush1.bf16.msra.mxu0 0
      %1001 = vmatprep.subr.bf16.mxu0 0
      %1002 = vmatpush1.bf16.msra.mxu0 0
      %1003 = vmatprep.subr.bf16.mxu0 0
      %1004 = vmatpush1.bf16.msra.mxu0 0
      %1005 = vmatprep.subr.bf16.mxu0 0
      %1006 = vmatpush1.bf16.msra.mxu0 0
      %1007 = vmatprep.subr.bf16.mxu0 0
      %1008 = vmatpush1.bf16.msra.mxu0 0
      %1009 = vmatprep.subr.bf16.mxu0 0
      %1010 = vmatpush1.bf16.msra.mxu0 0
      %1011 = vmatprep.subr.bf16.mxu0 0
      %1012 = vmatpush1.bf16.msra.mxu0 0
      %1013 = vmatprep.mubr.bf16.mxu0 0
      %1014 = vmatmul.mubr.bf16.gmra.mrb[0].mxu0 %v979
      %v1015 = vpop.f32.mrb[0].mxu0
      %v1016 = vadd.f32 %v952, %v1015
      %v1017 = vpop.f32.mrb[0].mxu0
      %v1018 = vpop.f32.mrb[0].mxu0
      %v1019 = vpop.f32.mrb[0].mxu0
      %1020 = vdwg.mxu0
      %v1021 = vmax.f32 %v1016, 0.0
      %v1022 = vpack.c.bf16 %v1021, %v1021
      %v1023 = vld [vmem:[%s6] sm:$0xf]
      %v1024 = vld [vmem:[%s6 + $0x4] sm:$0xf]
      %v1025 = vld [vmem:[%s6 + $0x8] sm:$0xf]
      %v1026 = vld [vmem:[%s6 + $0xc] sm:$0xf]
      %v1027 = vld [vmem:[%s6 + $0x10] sm:$0xf]
      %v1028 = vld [vmem:[%s6 + $0x14] sm:$0xf]
      %v1029 = vld [vmem:[%s6 + $0x18] sm:$0xf]
      %v1030 = vld [vmem:[%s6 + $0x1c] sm:$0xf]
      %v1031 = vld [vmem:[%s7] sm:$0x1]
      %v1033 = vlaneseq
      %v1034 = vshrl.u32 %v1033, 7
      %v1035 = vsub.s32 0, %v1034
      %v1036 = vrot.slane %v1031, %v1035
      %v1046 = vunpack.c.l.b16 %v1023
      %v1047 = vunpack.c.l.b16 %v1024
      %v1048 = vunpack.c.l.b16 %v1025
      %v1049 = vunpack.c.l.b16 %v1026
      %v1050 = vunpack.c.l.b16 %v1027
      %v1051 = vunpack.c.l.b16 %v1028
      %v1052 = vunpack.c.l.b16 %v1029
      %v1053 = vunpack.c.l.b16 %v1030
      %v1054 = vpack.c.b16 %v1047, %v1046
      %v1055 = vpack.c.b16 %v1049, %v1048
      %v1056 = vpack.c.b16 %v1051, %v1050
      %v1057 = vpack.c.b16 %v1053, %v1052
      %v1063 = vsel %vm563, %v1022, 0
      %1065 = vmatprep.subr.bf16.mxu0 0
      %1066 = vmatpush1.bf16.msra.mxu0 %v1054
      %1067 = vmatprep.subr.bf16.mxu0 0
      %1068 = vmatpush1.bf16.msra.mxu0 %v1055
      %1069 = vmatprep.subr.bf16.mxu0 0
      %1070 = vmatpush1.bf16.msra.mxu0 %v1056
      %1071 = vmatprep.subr.bf16.mxu0 0
      %1072 = vmatpush1.bf16.msra.mxu0 %v1057
      %1073 = vmatprep.subr.bf16.mxu0 0
      %1074 = vmatpush1.bf16.msra.mxu0 0
      %1075 = vmatprep.subr.bf16.mxu0 0
      %1076 = vmatpush1.bf16.msra.mxu0 0
      %1077 = vmatprep.subr.bf16.mxu0 0
      %1078 = vmatpush1.bf16.msra.mxu0 0
      %1079 = vmatprep.subr.bf16.mxu0 0
      %1080 = vmatpush1.bf16.msra.mxu0 0
      %1081 = vmatprep.subr.bf16.mxu0 0
      %1082 = vmatpush1.bf16.msra.mxu0 0
      %1083 = vmatprep.subr.bf16.mxu0 0
      %1084 = vmatpush1.bf16.msra.mxu0 0
      %1085 = vmatprep.subr.bf16.mxu0 0
      %1086 = vmatpush1.bf16.msra.mxu0 0
      %1087 = vmatprep.subr.bf16.mxu0 0
      %1088 = vmatpush1.bf16.msra.mxu0 0
      %1089 = vmatprep.subr.bf16.mxu0 0
      %1090 = vmatpush1.bf16.msra.mxu0 0
      %1091 = vmatprep.subr.bf16.mxu0 0
      %1092 = vmatpush1.bf16.msra.mxu0 0
      %1093 = vmatprep.subr.bf16.mxu0 0
      %1094 = vmatpush1.bf16.msra.mxu0 0
      %1095 = vmatprep.subr.bf16.mxu0 0
      %1096 = vmatpush1.bf16.msra.mxu0 0
      %1097 = vmatprep.mubr.bf16.mxu0 0
      %1098 = vmatmul.mubr.bf16.gmra.mrb[0].mxu0 %v1063
      %v1099 = vpop.f32.mrb[0].mxu0
      %v1100 = vadd.f32 %v1036, %v1099
      %v1101 = vpop.f32.mrb[0].mxu0
      %v1102 = vpop.f32.mrb[0].mxu0
      %v1103 = vpop.f32.mrb[0].mxu0
      %1104 = vdwg.mxu0
      %v1105 = vlaneseq
      %v1106 = vand.u32 %v1105, 127
      %vm1107 = vcmp.lt.s32.totalorder %v1106, 4
      %v1108 = vsel %vm1107, %v1100, -1e+30
      %1109 = vmax.xlane.f32.xlu0 %v1108
      %v1110 = vpop.xlane.xlu0 %1109
      %v1111 = vsub.f32 %v1100, %v1110
      %v1112 = vmul.f32 %v1111, 1.442695
      %v1113 = vpow.pop %v1112
      %v1114 = vsel %vm1107, %v1113, 0.0
      %1115 = vadd.xlane.f32.xlu0 %v1114
      %v1116 = vpop.xlane.xlu0 %1115
      %v1117 = vrcp.pop %v1116
      %v1118 = vmul.f32 %v1114, %v1117
      %v1119 = vsel %vm1107, %v1118, %v1100
      %1120 = vst [vmem:[%s323] sm:$0xff] %v1119
      %p1121 = scmp.lt.s32.totalorder %s19, 1
      %s1122 = scalar_select %p1121, %s19, 1
      %s1123 = smul.addr %s1122, 8
      %s1124 = scalar_lea.vmem %s8, %s1123
      // Predicated region
      $region53: #{faster_rcnn_forward.3} parent=51 // pred_check
        %p1125 = pneg %p215
      $region54: #{faster_rcnn_forward.3} parent=51 // pred_check_branch
        %1127 = sbr.rel (%p1125) target = $region56
      $region55: #{faster_rcnn_forward.3} parent=51 // pred_region
        _
      $region56: #{faster_rcnn_forward.3} parent=51 // pred_fallthru
        _
    $region52: #{faster_rcnn_forward.3} parent=5 // pred_fallthru
      _
    %p1128 = scmp.le.s32.totalorder 2, %s14
    // Predicated region
    $region57: #{faster_rcnn_forward.3} parent=5 // pred_check
      %p1129 = pneg %p1128
    $region58: #{faster_rcnn_forward.3} parent=5 // pred_check_branch
      %1131 = sbr.rel (%p1129) target = $region60
    $region59: #{faster_rcnn_forward.3} parent=5 // pred_region
      %s1132 = ssub.s32 %s14, 2
      // Predicated region
      $region61: #{faster_rcnn_forward.3} parent=59 // pred_check
        %p1133 = pneg %p221
      $region62: #{faster_rcnn_forward.3} parent=59 // pred_check_branch
        %1135 = sbr.rel (%p1133) target = $region64
      $region63: #{faster_rcnn_forward.3} parent=59 // pred_region
        %p1136 = scmp.lt.s32.totalorder %s20, 1
        %s1137 = scalar_select %p1136, %s20, 1
        %s1138 = smul.addr %s1137, 8
        %s1139 = scalar_lea.vmem %s8, %s1138
      $region64: #{faster_rcnn_forward.3} parent=59 // pred_fallthru
        _
    $region60: #{faster_rcnn_forward.3} parent=5 // pred_fallthru
      _
  $region6: #{faster_rcnn_forward.3} parent=0 // loop_footer
    %s18 = sadd.s32 1, %s14
  $region7: #{faster_rcnn_forward.3} parent=0 // loop_footer_branch
    %13 = sbr.rel target = $region3
  $region8: #{faster_rcnn_forward.3} parent=0 // loop_exit
    _

</llo_original>
